<compile_context>
chip_gen: v7x
topology: tpu7x:2x2x1
jax: 0.10.0
libtpu: 0.0.40
codegen_flags: <defaults>
</compile_context>

<pallas_src>
import functools

import jax
import jax.numpy as jnp
from jax.experimental import pallas as pl
from jax.experimental.pallas import tpu as pltpu


# ----------------------------- fused kernel ---------------------------------


def _residual_group_kernel(
    x_ref, masks_ref,
    c1w_ref, c1b_ref, c2w_ref, c2b_ref,
    d1w_ref, d1b_ref, d2w_ref, d2b_ref,
    tw_ref, tb_ref,
    o_ref,
    hpad_ref, xcol_ref,
    *, n_resblocks, H, W, C, pad):
    """One batch element: y = tail_conv(RCAB_{R-1}(...RCAB_0(x)...)) + x."""
    HW = H * W
    cdtype = xcol_ref.dtype                                    # MXU input dtype (bf16)

    def conv3x3(h, w_packed, b):
        # h: (C, HW) f32.  w_packed: (C, 9C) cdtype.  b: (C, 1) f32.
        # Single MXU matmul over the im2col buffer; output is lane-dense (HW lanes).
        hpad_ref[:, pad:pad + HW] = h                          # interior; halo stays 0
        k = 0
        for dh in (-1, 0, 1):
            for dw in (-1, 0, 1):
                off = dh * W + dw
                piece = hpad_ref[:, pad + off:pad + off + HW]  # (C, HW) shifted view
                if dh == 0 and dw == 0:
                    masked = piece
                else:
                    masked = piece * masks_ref[k]              # zero halo / row wrap
                xcol_ref[k * C:(k + 1) * C, :] = masked.astype(cdtype)
                k += 1
        acc = jnp.dot(w_packed, xcol_ref[...],                 # (C,9C)@(9C,HW)
                      preferred_element_type=jnp.float32)
        return acc + b

    x0 = x_ref[0].astype(jnp.float32)                          # (C, HW)
    hpad_ref[...] = jnp.zeros_like(hpad_ref)                   # zero the halo once

    res = x0
    for r in range(n_resblocks):
        h1 = jnp.maximum(conv3x3(res, c1w_ref[r], c1b_ref[r].astype(jnp.float32)), 0.0)
        h2 = conv3x3(h1, c2w_ref[r], c2b_ref[r].astype(jnp.float32))
        # Channel attention: GAP -> 1x1 -> ReLU -> 1x1 -> sigmoid -> scale
        gap = jnp.mean(h2, axis=1, keepdims=True)              # (C, 1)
        z = jnp.dot(d1w_ref[r].astype(jnp.float32), gap,
                    preferred_element_type=jnp.float32) + d1b_ref[r].astype(jnp.float32)
        z = jnp.maximum(z, 0.0)                                # (Cr, 1)
        z = jnp.dot(d2w_ref[r].astype(jnp.float32), z,
                    preferred_element_type=jnp.float32) + d2b_ref[r].astype(jnp.float32)
        gate = pl.reciprocal(1.0 + jnp.exp(-z), approx=True)   # sigmoid, (C, 1)
        res = h2 * gate + res                                  # RCAB residual
    y = conv3x3(res, tw_ref[...], tb_ref[...].astype(jnp.float32)) + x0   # group tail + skip
    o_ref[0] = y.astype(o_ref.dtype)


# ----------------------------- params & packing ------------------------------


def init_residual_group_params(key, n_feat, reduction, n_resblocks, dtype=jnp.float32):
    """PyTorch-like parameter layout: conv weights OIHW, CA weights (Cr,C)/(C,Cr)."""
    cr = max(n_feat // reduction, 1)
    keys = jax.random.split(key, n_resblocks * 8 + 2)

    def nrm(kk, shape, scale):
        return (scale * jax.random.normal(kk, shape)).astype(dtype)

    blocks = []
    k = 0
    for _ in range(n_resblocks):
        blocks.append({
            "c1_w": nrm(keys[k + 0], (n_feat, n_feat, 3, 3), 0.05),
            "c1_b": nrm(keys[k + 1], (n_feat,), 0.05),
            "c2_w": nrm(keys[k + 2], (n_feat, n_feat, 3, 3), 0.05),
            "c2_b": nrm(keys[k + 3], (n_feat,), 0.05),
            "d1_w": nrm(keys[k + 4], (cr, n_feat), 0.1),
            "d1_b": nrm(keys[k + 5], (cr,), 0.1),
            "d2_w": nrm(keys[k + 6], (n_feat, cr), 0.1),
            "d2_b": nrm(keys[k + 7], (n_feat,), 0.1),
        })
        k += 8
    return {"blocks": blocks,
            "tail_w": nrm(keys[k + 0], (n_feat, n_feat, 3, 3), 0.05),
            "tail_b": nrm(keys[k + 1], (n_feat,), 0.05)}


def _pack_conv_weight(w):
    # (Cout, Cin, 3, 3) OIHW -> (Cout, 9*Cin), tap-major (kh*3+kw), ci-minor.
    cout, cin = w.shape[0], w.shape[1]
    return jnp.transpose(w, (0, 2, 3, 1)).reshape(cout, 9 * cin)


def pack_residual_group_params(params, compute_dtype=jnp.bfloat16):
    blocks = params["blocks"]
    C = params["tail_w"].shape[0]
    return {
        "c1w": jnp.stack([_pack_conv_weight(b["c1_w"]) for b in blocks]).astype(compute_dtype),
        "c1b": jnp.stack([b["c1_b"].reshape(C, 1) for b in blocks]).astype(jnp.float32),
        "c2w": jnp.stack([_pack_conv_weight(b["c2_w"]) for b in blocks]).astype(compute_dtype),
        "c2b": jnp.stack([b["c2_b"].reshape(C, 1) for b in blocks]).astype(jnp.float32),
        "d1w": jnp.stack([b["d1_w"] for b in blocks]).astype(jnp.float32),
        "d1b": jnp.stack([b["d1_b"].reshape(-1, 1) for b in blocks]).astype(jnp.float32),
        "d2w": jnp.stack([b["d2_w"] for b in blocks]).astype(jnp.float32),
        "d2b": jnp.stack([b["d2_b"].reshape(C, 1) for b in blocks]).astype(jnp.float32),
        "tw": _pack_conv_weight(params["tail_w"]).astype(compute_dtype),
        "tb": params["tail_b"].reshape(C, 1).astype(jnp.float32),
    }


def _boundary_masks(H, W):
    hh, ww = jnp.meshgrid(jnp.arange(H), jnp.arange(W), indexing="ij")
    m = []
    for dh in (-1, 0, 1):
        for dw in (-1, 0, 1):
            valid = ((hh + dh >= 0) & (hh + dh < H) &
                     (ww + dw >= 0) & (ww + dw < W))
            m.append(valid.reshape(-1))
    return jnp.stack(m).astype(jnp.float32).reshape(9, 1, H * W)    # (9, 1, HW)


# ----------------------------- wrapper ---------------------------------------


def residual_group_forward(x_nchw, packed):
    """x_nchw: (N, C, H, W) like PyTorch. Returns (N, C, H, W)."""
    N, C, H, W = x_nchw.shape
    HW = H * W
    R = packed["c1w"].shape[0]
    cdtype = packed["c1w"].dtype
    pad = ((W + 1 + 127) // 128) * 128          # lane-aligned halo offset (>= W+1)

    x_flat = x_nchw.reshape(N, C, HW)           # free reshape, no transpose
    masks = _boundary_masks(H, W)

    kernel = functools.partial(_residual_group_kernel,
                               n_resblocks=R, H=H, W=W, C=C, pad=pad)

    def _full(shape):
        nd = len(shape)
        return pl.BlockSpec(shape, lambda n, _nd=nd: (0,) * _nd)

    in_specs = [
        pl.BlockSpec((1, C, HW), lambda n: (n, 0, 0)),   # x
        _full(masks.shape),                              # boundary masks
        _full(packed["c1w"].shape), _full(packed["c1b"].shape),
        _full(packed["c2w"].shape), _full(packed["c2b"].shape),
        _full(packed["d1w"].shape), _full(packed["d1b"].shape),
        _full(packed["d2w"].shape), _full(packed["d2b"].shape),
        _full(packed["tw"].shape), _full(packed["tb"].shape),
    ]

    out = pl.pallas_call(
        kernel,
        out_shape=jax.ShapeDtypeStruct((N, C, HW), x_nchw.dtype),
        grid=(N,),
        in_specs=in_specs,
        out_specs=pl.BlockSpec((1, C, HW), lambda n: (n, 0, 0)),
        scratch_shapes=[
            pltpu.VMEM((C, HW + 2 * pad), jnp.float32),  # zero-haloed activation
            pltpu.VMEM((9 * C, HW), cdtype),             # im2col buffer
        ],
        compiler_params=pltpu.CompilerParams(
            dimension_semantics=("parallel",),           # shard batch across TCs (v7x)
            vmem_limit_bytes=32 * 1024 * 1024,
        ),
    )(x_flat, masks,
      packed["c1w"], packed["c1b"], packed["c2w"], packed["c2b"],
      packed["d1w"], packed["d1b"], packed["d2w"], packed["d2b"],
      packed["tw"], packed["tb"])
    return out.reshape(N, C, H, W)


# ----------------------------- pure-JAX reference ----------------------------


def _reference_forward(x, params):
    def conv3x3_ref(h, w, b):
        y = jax.lax.conv_general_dilated(
            h, w, window_strides=(1, 1), padding=((1, 1), (1, 1)),
            dimension_numbers=("NCHW", "OIHW", "NCHW"))
        return y + b.reshape(1, -1, 1, 1)

    res = x
    for blk in params["blocks"]:
        h = jax.nn.relu(conv3x3_ref(res, blk["c1_w"], blk["c1_b"]))
        h = conv3x3_ref(h, blk["c2_w"], blk["c2_b"])
        gap = jnp.mean(h, axis=(2, 3))                                   # (N, C)
        z = jax.nn.relu(gap @ blk["d1_w"].T + blk["d1_b"])               # (N, Cr)
        z = jax.nn.sigmoid(z @ blk["d2_w"].T + blk["d2_b"])              # (N, C)
        res = h * z[:, :, None, None] + res
    return conv3x3_ref(res, params["tail_w"], params["tail_b"]) + x


# ----------------------------- main -------------------------------------------


if __name__ == "__main__":
    N, C, H, W = 2, 16, 16, 16       # n_feat = 16
    reduction = 4                     # channel // reduction = 4
    n_resblocks = 2                   # kernel_size = 3

    key = jax.random.PRNGKey(0)
    kx, kp = jax.random.split(key)
    x = jax.random.normal(kx, (N, C, H, W), dtype=jnp.float32)   # NCHW like PyTorch

    params = init_residual_group_params(kp, C, reduction, n_resblocks)
    packed = pack_residual_group_params(params, compute_dtype=jnp.bfloat16)

    out = residual_group_forward(x, packed)
    out = jax.block_until_ready(out)
    assert out.shape == (N, C, H, W)
    assert bool(jnp.all(jnp.isfinite(out)))

    # Loose functional check vs. f32 reference (kernel uses bf16 MXU inputs).
    ref = _reference_forward(x, params)
    err = float(jnp.max(jnp.abs(out - ref)) / (jnp.max(jnp.abs(ref)) + 1e-6))
    assert err < 0.05, f"mismatch vs reference: normalized max err = {err}"

    print("KERNEL_OK")
</pallas_src>

<mosaic_0001>
module attributes {stable_mosaic.version = 11 : i64} {
  func.func @_residual_group_kernel(%arg0: i32, %arg1: memref<1x16x256xf32, #tpu.memory_space<vmem>>, %arg2: memref<9x1x256xf32, #tpu.memory_space<vmem>>, %arg3: memref<2x16x144xbf16, #tpu.memory_space<vmem>>, %arg4: memref<2x16x1xf32, #tpu.memory_space<vmem>>, %arg5: memref<2x16x144xbf16, #tpu.memory_space<vmem>>, %arg6: memref<2x16x1xf32, #tpu.memory_space<vmem>>, %arg7: memref<2x4x16xf32, #tpu.memory_space<vmem>>, %arg8: memref<2x4x1xf32, #tpu.memory_space<vmem>>, %arg9: memref<2x16x4xf32, #tpu.memory_space<vmem>>, %arg10: memref<2x16x1xf32, #tpu.memory_space<vmem>>, %arg11: memref<16x144xbf16, #tpu.memory_space<vmem>>, %arg12: memref<16x1xf32, #tpu.memory_space<vmem>>, %arg13: memref<1x16x256xf32, #tpu.memory_space<vmem>>, %arg14: memref<16x512xf32, #tpu.memory_space<vmem>>, %arg15: memref<144x256xbf16, #tpu.memory_space<vmem>>) attributes {dimension_semantics = [#tpu.dimension_semantics<parallel>], iteration_bounds = array<i64: 2>, scalar_prefetch = 0 : i64, scratch_operands = 2 : i64, tpu.core_type = #tpu.core_type<tc>, window_params = [{transform_indices = @transform_0, window_bounds = array<i64: 1, 16, 256>}, {pipeline_mode = #tpu.pipeline_mode<synchronous>, transform_indices = @transform_1, window_bounds = array<i64: 9, 1, 256>}, {pipeline_mode = #tpu.pipeline_mode<synchronous>, transform_indices = @transform_2, window_bounds = array<i64: 2, 16, 144>}, {pipeline_mode = #tpu.pipeline_mode<synchronous>, transform_indices = @transform_3, window_bounds = array<i64: 2, 16, 1>}, {pipeline_mode = #tpu.pipeline_mode<synchronous>, transform_indices = @transform_4, window_bounds = array<i64: 2, 16, 144>}, {pipeline_mode = #tpu.pipeline_mode<synchronous>, transform_indices = @transform_5, window_bounds = array<i64: 2, 16, 1>}, {pipeline_mode = #tpu.pipeline_mode<synchronous>, transform_indices = @transform_6, window_bounds = array<i64: 2, 4, 16>}, {pipeline_mode = #tpu.pipeline_mode<synchronous>, transform_indices = @transform_7, window_bounds = array<i64: 2, 4, 1>}, {pipeline_mode = #tpu.pipeline_mode<synchronous>, transform_indices = @transform_8, window_bounds = array<i64: 2, 16, 4>}, {pipeline_mode = #tpu.pipeline_mode<synchronous>, transform_indices = @transform_9, window_bounds = array<i64: 2, 16, 1>}, {pipeline_mode = #tpu.pipeline_mode<synchronous>, transform_indices = @transform_10, window_bounds = array<i64: 16, 144>}, {pipeline_mode = #tpu.pipeline_mode<synchronous>, transform_indices = @transform_11, window_bounds = array<i64: 16, 1>}, {transform_indices = @transform_12, window_bounds = array<i64: 1, 16, 256>}]} {
    %c0 = arith.constant 0 : index
    %c0_0 = arith.constant 0 : index
    %c0_1 = arith.constant 0 : index
    %0 = vector.load %arg1[%c0, %c0_0, %c0_1] : memref<1x16x256xf32, #tpu.memory_space<vmem>>, vector<1x16x256xf32>
    %1 = vector.shape_cast %0 : vector<1x16x256xf32> to vector<16x256xf32>
    %cst = arith.constant 0.000000e+00 : f32
    %2 = vector.broadcast %cst : f32 to vector<16x512xf32>
    %c0_2 = arith.constant 0 : index
    %c0_3 = arith.constant 0 : index
    %3 = vector.load %arg14[%c0_2, %c0_3] : memref<16x512xf32, #tpu.memory_space<vmem>>, vector<16x512xf32>
    tpu.vector_store %arg14[%c0_2, %c0_3], %2 {strides = array<i32>} : memref<16x512xf32, #tpu.memory_space<vmem>>, vector<16x512xf32>,
    %c0_4 = arith.constant 0 : index
    %c0_5 = arith.constant 0 : index
    %c0_6 = arith.constant 0 : index
    %4 = vector.load %arg3[%c0_4, %c0_5, %c0_6] : memref<2x16x144xbf16, #tpu.memory_space<vmem>>, vector<1x16x144xbf16>
    %5 = vector.shape_cast %4 : vector<1x16x144xbf16> to vector<16x144xbf16>
    %c0_7 = arith.constant 0 : index
    %c0_8 = arith.constant 0 : index
    %c0_9 = arith.constant 0 : index
    %6 = vector.load %arg4[%c0_7, %c0_8, %c0_9] : memref<2x16x1xf32, #tpu.memory_space<vmem>>, vector<1x16x1xf32>
    %7 = vector.shape_cast %6 : vector<1x16x1xf32> to vector<16x1xf32>
    %c0_10 = arith.constant 0 : index
    %c128 = arith.constant 128 : index
    %8 = vector.load %arg14[%c0_10, %c128] : memref<16x512xf32, #tpu.memory_space<vmem>>, vector<16x256xf32>
    tpu.vector_store %arg14[%c0_10, %c128], %1 {strides = array<i32>} : memref<16x512xf32, #tpu.memory_space<vmem>>, vector<16x256xf32>,
    %c0_11 = arith.constant 0 : index
    %c111 = arith.constant 111 : index
    %9 = vector.load %arg14[%c0_11, %c111] : memref<16x512xf32, #tpu.memory_space<vmem>>, vector<16x256xf32>
    %c0_12 = arith.constant 0 : index
    %c0_13 = arith.constant 0 : index
    %c0_14 = arith.constant 0 : index
    %10 = vector.load %arg2[%c0_12, %c0_13, %c0_14] : memref<9x1x256xf32, #tpu.memory_space<vmem>>, vector<1x1x256xf32>
    %11 = vector.shape_cast %10 : vector<1x1x256xf32> to vector<1x256xf32>
    %12 = vector.broadcast %11 : vector<1x256xf32> to vector<16x256xf32>
    %13 = arith.mulf %9, %12 : vector<16x256xf32>
    %14 = arith.truncf %13 : vector<16x256xf32> to vector<16x256xbf16>
    %c0_15 = arith.constant 0 : index
    %c0_16 = arith.constant 0 : index
    %15 = vector.load %arg15[%c0_15, %c0_16] : memref<144x256xbf16, #tpu.memory_space<vmem>>, vector<16x256xbf16>
    tpu.vector_store %arg15[%c0_15, %c0_16], %14 {strides = array<i32>} : memref<144x256xbf16, #tpu.memory_space<vmem>>, vector<16x256xbf16>,
    %c0_17 = arith.constant 0 : index
    %c112 = arith.constant 112 : index
    %16 = vector.load %arg14[%c0_17, %c112] : memref<16x512xf32, #tpu.memory_space<vmem>>, vector<16x256xf32>
    %c1 = arith.constant 1 : index
    %c0_18 = arith.constant 0 : index
    %c0_19 = arith.constant 0 : index
    %17 = vector.load %arg2[%c1, %c0_18, %c0_19] : memref<9x1x256xf32, #tpu.memory_space<vmem>>, vector<1x1x256xf32>
    %18 = vector.shape_cast %17 : vector<1x1x256xf32> to vector<1x256xf32>
    %19 = vector.broadcast %18 : vector<1x256xf32> to vector<16x256xf32>
    %20 = arith.mulf %16, %19 : vector<16x256xf32>
    %21 = arith.truncf %20 : vector<16x256xf32> to vector<16x256xbf16>
    %c16 = arith.constant 16 : index
    %c0_20 = arith.constant 0 : index
    %22 = vector.load %arg15[%c16, %c0_20] : memref<144x256xbf16, #tpu.memory_space<vmem>>, vector<16x256xbf16>
    tpu.vector_store %arg15[%c16, %c0_20], %21 {strides = array<i32>} : memref<144x256xbf16, #tpu.memory_space<vmem>>, vector<16x256xbf16>,
    %c0_21 = arith.constant 0 : index
    %c113 = arith.constant 113 : index
    %23 = vector.load %arg14[%c0_21, %c113] : memref<16x512xf32, #tpu.memory_space<vmem>>, vector<16x256xf32>
    %c2 = arith.constant 2 : index
    %c0_22 = arith.constant 0 : index
    %c0_23 = arith.constant 0 : index
    %24 = vector.load %arg2[%c2, %c0_22, %c0_23] : memref<9x1x256xf32, #tpu.memory_space<vmem>>, vector<1x1x256xf32>
    %25 = vector.shape_cast %24 : vector<1x1x256xf32> to vector<1x256xf32>
    %26 = vector.broadcast %25 : vector<1x256xf32> to vector<16x256xf32>
    %27 = arith.mulf %23, %26 : vector<16x256xf32>
    %28 = arith.truncf %27 : vector<16x256xf32> to vector<16x256xbf16>
    %c32 = arith.constant 32 : index
    %c0_24 = arith.constant 0 : index
    %29 = vector.load %arg15[%c32, %c0_24] : memref<144x256xbf16, #tpu.memory_space<vmem>>, vector<16x256xbf16>
    tpu.vector_store %arg15[%c32, %c0_24], %28 {strides = array<i32>} : memref<144x256xbf16, #tpu.memory_space<vmem>>, vector<16x256xbf16>,
    %c0_25 = arith.constant 0 : index
    %c127 = arith.constant 127 : index
    %30 = vector.load %arg14[%c0_25, %c127] : memref<16x512xf32, #tpu.memory_space<vmem>>, vector<16x256xf32>
    %c3 = arith.constant 3 : index
    %c0_26 = arith.constant 0 : index
    %c0_27 = arith.constant 0 : index
    %31 = vector.load %arg2[%c3, %c0_26, %c0_27] : memref<9x1x256xf32, #tpu.memory_space<vmem>>, vector<1x1x256xf32>
    %32 = vector.shape_cast %31 : vector<1x1x256xf32> to vector<1x256xf32>
    %33 = vector.broadcast %32 : vector<1x256xf32> to vector<16x256xf32>
    %34 = arith.mulf %30, %33 : vector<16x256xf32>
    %35 = arith.truncf %34 : vector<16x256xf32> to vector<16x256xbf16>
    %c48 = arith.constant 48 : index
    %c0_28 = arith.constant 0 : index
    %36 = vector.load %arg15[%c48, %c0_28] : memref<144x256xbf16, #tpu.memory_space<vmem>>, vector<16x256xbf16>
    tpu.vector_store %arg15[%c48, %c0_28], %35 {strides = array<i32>} : memref<144x256xbf16, #tpu.memory_space<vmem>>, vector<16x256xbf16>,
    %c0_29 = arith.constant 0 : index
    %c128_30 = arith.constant 128 : index
    %37 = vector.load %arg14[%c0_29, %c128_30] : memref<16x512xf32, #tpu.memory_space<vmem>>, vector<16x256xf32>
    %38 = arith.truncf %37 : vector<16x256xf32> to vector<16x256xbf16>
    %c64 = arith.constant 64 : index
    %c0_31 = arith.constant 0 : index
    %39 = vector.load %arg15[%c64, %c0_31] : memref<144x256xbf16, #tpu.memory_space<vmem>>, vector<16x256xbf16>
    tpu.vector_store %arg15[%c64, %c0_31], %38 {strides = array<i32>} : memref<144x256xbf16, #tpu.memory_space<vmem>>, vector<16x256xbf16>,
    %c0_32 = arith.constant 0 : index
    %c129 = arith.constant 129 : index
    %40 = vector.load %arg14[%c0_32, %c129] : memref<16x512xf32, #tpu.memory_space<vmem>>, vector<16x256xf32>
    %c5 = arith.constant 5 : index
    %c0_33 = arith.constant 0 : index
    %c0_34 = arith.constant 0 : index
    %41 = vector.load %arg2[%c5, %c0_33, %c0_34] : memref<9x1x256xf32, #tpu.memory_space<vmem>>, vector<1x1x256xf32>
    %42 = vector.shape_cast %41 : vector<1x1x256xf32> to vector<1x256xf32>
    %43 = vector.broadcast %42 : vector<1x256xf32> to vector<16x256xf32>
    %44 = arith.mulf %40, %43 : vector<16x256xf32>
    %45 = arith.truncf %44 : vector<16x256xf32> to vector<16x256xbf16>
    %c80 = arith.constant 80 : index
    %c0_35 = arith.constant 0 : index
    %46 = vector.load %arg15[%c80, %c0_35] : memref<144x256xbf16, #tpu.memory_space<vmem>>, vector<16x256xbf16>
    tpu.vector_store %arg15[%c80, %c0_35], %45 {strides = array<i32>} : memref<144x256xbf16, #tpu.memory_space<vmem>>, vector<16x256xbf16>,
    %c0_36 = arith.constant 0 : index
    %c143 = arith.constant 143 : index
    %47 = vector.load %arg14[%c0_36, %c143] : memref<16x512xf32, #tpu.memory_space<vmem>>, vector<16x256xf32>
    %c6 = arith.constant 6 : index
    %c0_37 = arith.constant 0 : index
    %c0_38 = arith.constant 0 : index
    %48 = vector.load %arg2[%c6, %c0_37, %c0_38] : memref<9x1x256xf32, #tpu.memory_space<vmem>>, vector<1x1x256xf32>
    %49 = vector.shape_cast %48 : vector<1x1x256xf32> to vector<1x256xf32>
    %50 = vector.broadcast %49 : vector<1x256xf32> to vector<16x256xf32>
    %51 = arith.mulf %47, %50 : vector<16x256xf32>
    %52 = arith.truncf %51 : vector<16x256xf32> to vector<16x256xbf16>
    %c96 = arith.constant 96 : index
    %c0_39 = arith.constant 0 : index
    %53 = vector.load %arg15[%c96, %c0_39] : memref<144x256xbf16, #tpu.memory_space<vmem>>, vector<16x256xbf16>
    tpu.vector_store %arg15[%c96, %c0_39], %52 {strides = array<i32>} : memref<144x256xbf16, #tpu.memory_space<vmem>>, vector<16x256xbf16>,
    %c0_40 = arith.constant 0 : index
    %c144 = arith.constant 144 : index
    %54 = vector.load %arg14[%c0_40, %c144] : memref<16x512xf32, #tpu.memory_space<vmem>>, vector<16x256xf32>
    %c7 = arith.constant 7 : index
    %c0_41 = arith.constant 0 : index
    %c0_42 = arith.constant 0 : index
    %55 = vector.load %arg2[%c7, %c0_41, %c0_42] : memref<9x1x256xf32, #tpu.memory_space<vmem>>, vector<1x1x256xf32>
    %56 = vector.shape_cast %55 : vector<1x1x256xf32> to vector<1x256xf32>
    %57 = vector.broadcast %56 : vector<1x256xf32> to vector<16x256xf32>
    %58 = arith.mulf %54, %57 : vector<16x256xf32>
    %59 = arith.truncf %58 : vector<16x256xf32> to vector<16x256xbf16>
    %c112_43 = arith.constant 112 : index
    %c0_44 = arith.constant 0 : index
    %60 = vector.load %arg15[%c112_43, %c0_44] : memref<144x256xbf16, #tpu.memory_space<vmem>>, vector<16x256xbf16>
    tpu.vector_store %arg15[%c112_43, %c0_44], %59 {strides = array<i32>} : memref<144x256xbf16, #tpu.memory_space<vmem>>, vector<16x256xbf16>,
    %c0_45 = arith.constant 0 : index
    %c145 = arith.constant 145 : index
    %61 = vector.load %arg14[%c0_45, %c145] : memref<16x512xf32, #tpu.memory_space<vmem>>, vector<16x256xf32>
    %c8 = arith.constant 8 : index
    %c0_46 = arith.constant 0 : index
    %c0_47 = arith.constant 0 : index
    %62 = vector.load %arg2[%c8, %c0_46, %c0_47] : memref<9x1x256xf32, #tpu.memory_space<vmem>>, vector<1x1x256xf32>
    %63 = vector.shape_cast %62 : vector<1x1x256xf32> to vector<1x256xf32>
    %64 = vector.broadcast %63 : vector<1x256xf32> to vector<16x256xf32>
    %65 = arith.mulf %61, %64 : vector<16x256xf32>
    %66 = arith.truncf %65 : vector<16x256xf32> to vector<16x256xbf16>
    %c128_48 = arith.constant 128 : index
    %c0_49 = arith.constant 0 : index
    %67 = vector.load %arg15[%c128_48, %c0_49] : memref<144x256xbf16, #tpu.memory_space<vmem>>, vector<16x256xbf16>
    tpu.vector_store %arg15[%c128_48, %c0_49], %66 {strides = array<i32>} : memref<144x256xbf16, #tpu.memory_space<vmem>>, vector<16x256xbf16>,
    %c0_50 = arith.constant 0 : index
    %c0_51 = arith.constant 0 : index
    %68 = vector.load %arg15[%c0_50, %c0_51] : memref<144x256xbf16, #tpu.memory_space<vmem>>, vector<144x256xbf16>
    %cst_52 = arith.constant dense<0.000000e+00> : vector<16x256xf32>
    %69 = tpu.matmul %5, %68, %cst_52 {dimension_numbers = #tpu.dot_dimension_numbers<[1], [0], [0], [1], [0, 0, 1, 1], [], []>} : vector<16x144xbf16>, vector<144x256xbf16>, vector<16x256xf32> -> vector<16x256xf32>
    %70 = vector.broadcast %7 : vector<16x1xf32> to vector<16x256xf32>
    %71 = arith.addf %69, %70 : vector<16x256xf32>
    %cst_53 = arith.constant 0.000000e+00 : f32
    %72 = vector.broadcast %cst_53 : f32 to vector<16x256xf32>
    %73 = arith.maximumf %71, %72 : vector<16x256xf32>
    %c0_54 = arith.constant 0 : index
    %c0_55 = arith.constant 0 : index
    %c0_56 = arith.constant 0 : index
    %74 = vector.load %arg5[%c0_54, %c0_55, %c0_56] : memref<2x16x144xbf16, #tpu.memory_space<vmem>>, vector<1x16x144xbf16>
    %75 = vector.shape_cast %74 : vector<1x16x144xbf16> to vector<16x144xbf16>
    %c0_57 = arith.constant 0 : index
    %c0_58 = arith.constant 0 : index
    %c0_59 = arith.constant 0 : index
    %76 = vector.load %arg6[%c0_57, %c0_58, %c0_59] : memref<2x16x1xf32, #tpu.memory_space<vmem>>, vector<1x16x1xf32>
    %77 = vector.shape_cast %76 : vector<1x16x1xf32> to vector<16x1xf32>
    %c0_60 = arith.constant 0 : index
    %c128_61 = arith.constant 128 : index
    %78 = vector.load %arg14[%c0_60, %c128_61] : memref<16x512xf32, #tpu.memory_space<vmem>>, vector<16x256xf32>
    tpu.vector_store %arg14[%c0_60, %c128_61], %73 {strides = array<i32>} : memref<16x512xf32, #tpu.memory_space<vmem>>, vector<16x256xf32>,
    %c0_62 = arith.constant 0 : index
    %c111_63 = arith.constant 111 : index
    %79 = vector.load %arg14[%c0_62, %c111_63] : memref<16x512xf32, #tpu.memory_space<vmem>>, vector<16x256xf32>
    %c0_64 = arith.constant 0 : index
    %c0_65 = arith.constant 0 : index
    %c0_66 = arith.constant 0 : index
    %80 = vector.load %arg2[%c0_64, %c0_65, %c0_66] : memref<9x1x256xf32, #tpu.memory_space<vmem>>, vector<1x1x256xf32>
    %81 = vector.shape_cast %80 : vector<1x1x256xf32> to vector<1x256xf32>
    %82 = vector.broadcast %81 : vector<1x256xf32> to vector<16x256xf32>
    %83 = arith.mulf %79, %82 : vector<16x256xf32>
    %84 = arith.truncf %83 : vector<16x256xf32> to vector<16x256xbf16>
    %c0_67 = arith.constant 0 : index
    %c0_68 = arith.constant 0 : index
    %85 = vector.load %arg15[%c0_67, %c0_68] : memref<144x256xbf16, #tpu.memory_space<vmem>>, vector<16x256xbf16>
    tpu.vector_store %arg15[%c0_67, %c0_68], %84 {strides = array<i32>} : memref<144x256xbf16, #tpu.memory_space<vmem>>, vector<16x256xbf16>,
    %c0_69 = arith.constant 0 : index
    %c112_70 = arith.constant 112 : index
    %86 = vector.load %arg14[%c0_69, %c112_70] : memref<16x512xf32, #tpu.memory_space<vmem>>, vector<16x256xf32>
    %c1_71 = arith.constant 1 : index
    %c0_72 = arith.constant 0 : index
    %c0_73 = arith.constant 0 : index
    %87 = vector.load %arg2[%c1_71, %c0_72, %c0_73] : memref<9x1x256xf32, #tpu.memory_space<vmem>>, vector<1x1x256xf32>
    %88 = vector.shape_cast %87 : vector<1x1x256xf32> to vector<1x256xf32>
    %89 = vector.broadcast %88 : vector<1x256xf32> to vector<16x256xf32>
    %90 = arith.mulf %86, %89 : vector<16x256xf32>
    %91 = arith.truncf %90 : vector<16x256xf32> to vector<16x256xbf16>
    %c16_74 = arith.constant 16 : index
    %c0_75 = arith.constant 0 : index
    %92 = vector.load %arg15[%c16_74, %c0_75] : memref<144x256xbf16, #tpu.memory_space<vmem>>, vector<16x256xbf16>
    tpu.vector_store %arg15[%c16_74, %c0_75], %91 {strides = array<i32>} : memref<144x256xbf16, #tpu.memory_space<vmem>>, vector<16x256xbf16>,
    %c0_76 = arith.constant 0 : index
    %c113_77 = arith.constant 113 : index
    %93 = vector.load %arg14[%c0_76, %c113_77] : memref<16x512xf32, #tpu.memory_space<vmem>>, vector<16x256xf32>
    %c2_78 = arith.constant 2 : index
    %c0_79 = arith.constant 0 : index
    %c0_80 = arith.constant 0 : index
    %94 = vector.load %arg2[%c2_78, %c0_79, %c0_80] : memref<9x1x256xf32, #tpu.memory_space<vmem>>, vector<1x1x256xf32>
    %95 = vector.shape_cast %94 : vector<1x1x256xf32> to vector<1x256xf32>
    %96 = vector.broadcast %95 : vector<1x256xf32> to vector<16x256xf32>
    %97 = arith.mulf %93, %96 : vector<16x256xf32>
    %98 = arith.truncf %97 : vector<16x256xf32> to vector<16x256xbf16>
    %c32_81 = arith.constant 32 : index
    %c0_82 = arith.constant 0 : index
    %99 = vector.load %arg15[%c32_81, %c0_82] : memref<144x256xbf16, #tpu.memory_space<vmem>>, vector<16x256xbf16>
    tpu.vector_store %arg15[%c32_81, %c0_82], %98 {strides = array<i32>} : memref<144x256xbf16, #tpu.memory_space<vmem>>, vector<16x256xbf16>,
    %c0_83 = arith.constant 0 : index
    %c127_84 = arith.constant 127 : index
    %100 = vector.load %arg14[%c0_83, %c127_84] : memref<16x512xf32, #tpu.memory_space<vmem>>, vector<16x256xf32>
    %c3_85 = arith.constant 3 : index
    %c0_86 = arith.constant 0 : index
    %c0_87 = arith.constant 0 : index
    %101 = vector.load %arg2[%c3_85, %c0_86, %c0_87] : memref<9x1x256xf32, #tpu.memory_space<vmem>>, vector<1x1x256xf32>
    %102 = vector.shape_cast %101 : vector<1x1x256xf32> to vector<1x256xf32>
    %103 = vector.broadcast %102 : vector<1x256xf32> to vector<16x256xf32>
    %104 = arith.mulf %100, %103 : vector<16x256xf32>
    %105 = arith.truncf %104 : vector<16x256xf32> to vector<16x256xbf16>
    %c48_88 = arith.constant 48 : index
    %c0_89 = arith.constant 0 : index
    %106 = vector.load %arg15[%c48_88, %c0_89] : memref<144x256xbf16, #tpu.memory_space<vmem>>, vector<16x256xbf16>
    tpu.vector_store %arg15[%c48_88, %c0_89], %105 {strides = array<i32>} : memref<144x256xbf16, #tpu.memory_space<vmem>>, vector<16x256xbf16>,
    %c0_90 = arith.constant 0 : index
    %c128_91 = arith.constant 128 : index
    %107 = vector.load %arg14[%c0_90, %c128_91] : memref<16x512xf32, #tpu.memory_space<vmem>>, vector<16x256xf32>
    %108 = arith.truncf %107 : vector<16x256xf32> to vector<16x256xbf16>
    %c64_92 = arith.constant 64 : index
    %c0_93 = arith.constant 0 : index
    %109 = vector.load %arg15[%c64_92, %c0_93] : memref<144x256xbf16, #tpu.memory_space<vmem>>, vector<16x256xbf16>
    tpu.vector_store %arg15[%c64_92, %c0_93], %108 {strides = array<i32>} : memref<144x256xbf16, #tpu.memory_space<vmem>>, vector<16x256xbf16>,
    %c0_94 = arith.constant 0 : index
    %c129_95 = arith.constant 129 : index
    %110 = vector.load %arg14[%c0_94, %c129_95] : memref<16x512xf32, #tpu.memory_space<vmem>>, vector<16x256xf32>
    %c5_96 = arith.constant 5 : index
    %c0_97 = arith.constant 0 : index
    %c0_98 = arith.constant 0 : index
    %111 = vector.load %arg2[%c5_96, %c0_97, %c0_98] : memref<9x1x256xf32, #tpu.memory_space<vmem>>, vector<1x1x256xf32>
    %112 = vector.shape_cast %111 : vector<1x1x256xf32> to vector<1x256xf32>
    %113 = vector.broadcast %112 : vector<1x256xf32> to vector<16x256xf32>
    %114 = arith.mulf %110, %113 : vector<16x256xf32>
    %115 = arith.truncf %114 : vector<16x256xf32> to vector<16x256xbf16>
    %c80_99 = arith.constant 80 : index
    %c0_100 = arith.constant 0 : index
    %116 = vector.load %arg15[%c80_99, %c0_100] : memref<144x256xbf16, #tpu.memory_space<vmem>>, vector<16x256xbf16>
    tpu.vector_store %arg15[%c80_99, %c0_100], %115 {strides = array<i32>} : memref<144x256xbf16, #tpu.memory_space<vmem>>, vector<16x256xbf16>,
    %c0_101 = arith.constant 0 : index
    %c143_102 = arith.constant 143 : index
    %117 = vector.load %arg14[%c0_101, %c143_102] : memref<16x512xf32, #tpu.memory_space<vmem>>, vector<16x256xf32>
    %c6_103 = arith.constant 6 : index
    %c0_104 = arith.constant 0 : index
    %c0_105 = arith.constant 0 : index
    %118 = vector.load %arg2[%c6_103, %c0_104, %c0_105] : memref<9x1x256xf32, #tpu.memory_space<vmem>>, vector<1x1x256xf32>
    %119 = vector.shape_cast %118 : vector<1x1x256xf32> to vector<1x256xf32>
    %120 = vector.broadcast %119 : vector<1x256xf32> to vector<16x256xf32>
    %121 = arith.mulf %117, %120 : vector<16x256xf32>
    %122 = arith.truncf %121 : vector<16x256xf32> to vector<16x256xbf16>
    %c96_106 = arith.constant 96 : index
    %c0_107 = arith.constant 0 : index
    %123 = vector.load %arg15[%c96_106, %c0_107] : memref<144x256xbf16, #tpu.memory_space<vmem>>, vector<16x256xbf16>
    tpu.vector_store %arg15[%c96_106, %c0_107], %122 {strides = array<i32>} : memref<144x256xbf16, #tpu.memory_space<vmem>>, vector<16x256xbf16>,
    %c0_108 = arith.constant 0 : index
    %c144_109 = arith.constant 144 : index
    %124 = vector.load %arg14[%c0_108, %c144_109] : memref<16x512xf32, #tpu.memory_space<vmem>>, vector<16x256xf32>
    %c7_110 = arith.constant 7 : index
    %c0_111 = arith.constant 0 : index
    %c0_112 = arith.constant 0 : index
    %125 = vector.load %arg2[%c7_110, %c0_111, %c0_112] : memref<9x1x256xf32, #tpu.memory_space<vmem>>, vector<1x1x256xf32>
    %126 = vector.shape_cast %125 : vector<1x1x256xf32> to vector<1x256xf32>
    %127 = vector.broadcast %126 : vector<1x256xf32> to vector<16x256xf32>
    %128 = arith.mulf %124, %127 : vector<16x256xf32>
    %129 = arith.truncf %128 : vector<16x256xf32> to vector<16x256xbf16>
    %c112_113 = arith.constant 112 : index
    %c0_114 = arith.constant 0 : index
    %130 = vector.load %arg15[%c112_113, %c0_114] : memref<144x256xbf16, #tpu.memory_space<vmem>>, vector<16x256xbf16>
    tpu.vector_store %arg15[%c112_113, %c0_114], %129 {strides = array<i32>} : memref<144x256xbf16, #tpu.memory_space<vmem>>, vector<16x256xbf16>,
    %c0_115 = arith.constant 0 : index
    %c145_116 = arith.constant 145 : index
    %131 = vector.load %arg14[%c0_115, %c145_116] : memref<16x512xf32, #tpu.memory_space<vmem>>, vector<16x256xf32>
    %c8_117 = arith.constant 8 : index
    %c0_118 = arith.constant 0 : index
    %c0_119 = arith.constant 0 : index
    %132 = vector.load %arg2[%c8_117, %c0_118, %c0_119] : memref<9x1x256xf32, #tpu.memory_space<vmem>>, vector<1x1x256xf32>
    %133 = vector.shape_cast %132 : vector<1x1x256xf32> to vector<1x256xf32>
    %134 = vector.broadcast %133 : vector<1x256xf32> to vector<16x256xf32>
    %135 = arith.mulf %131, %134 : vector<16x256xf32>
    %136 = arith.truncf %135 : vector<16x256xf32> to vector<16x256xbf16>
    %c128_120 = arith.constant 128 : index
    %c0_121 = arith.constant 0 : index
    %137 = vector.load %arg15[%c128_120, %c0_121] : memref<144x256xbf16, #tpu.memory_space<vmem>>, vector<16x256xbf16>
    tpu.vector_store %arg15[%c128_120, %c0_121], %136 {strides = array<i32>} : memref<144x256xbf16, #tpu.memory_space<vmem>>, vector<16x256xbf16>,
    %c0_122 = arith.constant 0 : index
    %c0_123 = arith.constant 0 : index
    %138 = vector.load %arg15[%c0_122, %c0_123] : memref<144x256xbf16, #tpu.memory_space<vmem>>, vector<144x256xbf16>
    %cst_124 = arith.constant dense<0.000000e+00> : vector<16x256xf32>
    %139 = tpu.matmul %75, %138, %cst_124 {dimension_numbers = #tpu.dot_dimension_numbers<[1], [0], [0], [1], [0, 0, 1, 1], [], []>} : vector<16x144xbf16>, vector<144x256xbf16>, vector<16x256xf32> -> vector<16x256xf32>
    %140 = vector.broadcast %77 : vector<16x1xf32> to vector<16x256xf32>
    %141 = arith.addf %139, %140 : vector<16x256xf32>
    %cst_125 = arith.constant dense<0.000000e+00> : vector<16xf32>
    %142 = vector.multi_reduction <add>, %141, %cst_125 [1] : vector<16x256xf32> to vector<16xf32>
    %143 = vector.shape_cast %142 : vector<16xf32> to vector<16x1xf32>
    %cst_126 = arith.constant 2.560000e+02 : f32
    %144 = vector.broadcast %cst_126 : f32 to vector<16x1xf32>
    %145 = arith.divf %143, %144 : vector<16x1xf32>
    %c0_127 = arith.constant 0 : index
    %c0_128 = arith.constant 0 : index
    %c0_129 = arith.constant 0 : index
    %146 = vector.load %arg7[%c0_127, %c0_128, %c0_129] : memref<2x4x16xf32, #tpu.memory_space<vmem>>, vector<1x4x16xf32>
    %147 = vector.shape_cast %146 : vector<1x4x16xf32> to vector<4x16xf32>
    %cst_130 = arith.constant dense<0.000000e+00> : vector<4x1xf32>
    %148 = tpu.matmul %147, %145, %cst_130 {dimension_numbers = #tpu.dot_dimension_numbers<[1], [0], [0], [1], [0, 0, 1, 1], [], []>} : vector<4x16xf32>, vector<16x1xf32>, vector<4x1xf32> -> vector<4x1xf32>
    %c0_131 = arith.constant 0 : index
    %c0_132 = arith.constant 0 : index
    %c0_133 = arith.constant 0 : index
    %149 = vector.load %arg8[%c0_131, %c0_132, %c0_133] : memref<2x4x1xf32, #tpu.memory_space<vmem>>, vector<1x4x1xf32>
    %150 = vector.shape_cast %149 : vector<1x4x1xf32> to vector<4x1xf32>
    %151 = arith.addf %148, %150 : vector<4x1xf32>
    %cst_134 = arith.constant 0.000000e+00 : f32
    %152 = vector.broadcast %cst_134 : f32 to vector<4x1xf32>
    %153 = arith.maximumf %151, %152 : vector<4x1xf32>
    %c0_135 = arith.constant 0 : index
    %c0_136 = arith.constant 0 : index
    %c0_137 = arith.constant 0 : index
    %154 = vector.load %arg9[%c0_135, %c0_136, %c0_137] : memref<2x16x4xf32, #tpu.memory_space<vmem>>, vector<1x16x4xf32>
    %155 = vector.shape_cast %154 : vector<1x16x4xf32> to vector<16x4xf32>
    %cst_138 = arith.constant dense<0.000000e+00> : vector<16x1xf32>
    %156 = tpu.matmul %155, %153, %cst_138 {dimension_numbers = #tpu.dot_dimension_numbers<[1], [0], [0], [1], [0, 0, 1, 1], [], []>} : vector<16x4xf32>, vector<4x1xf32>, vector<16x1xf32> -> vector<16x1xf32>
    %c0_139 = arith.constant 0 : index
    %c0_140 = arith.constant 0 : index
    %c0_141 = arith.constant 0 : index
    %157 = vector.load %arg10[%c0_139, %c0_140, %c0_141] : memref<2x16x1xf32, #tpu.memory_space<vmem>>, vector<1x16x1xf32>
    %158 = vector.shape_cast %157 : vector<1x16x1xf32> to vector<16x1xf32>
    %159 = arith.addf %156, %158 : vector<16x1xf32>
    %cst_142 = arith.constant 0.000000e+00 : f32
    %160 = vector.broadcast %cst_142 : f32 to vector<16x1xf32>
    %161 = arith.subf %160, %159 : vector<16x1xf32>
    %162 = math.exp %161 : vector<16x1xf32>
    %cst_143 = arith.constant 1.000000e+00 : f32
    %163 = vector.broadcast %cst_143 : f32 to vector<16x1xf32>
    %164 = arith.addf %163, %162 : vector<16x1xf32>
    %165 = tpu.reciprocal %164 {approx = true} : vector<16x1xf32> -> vector<16x1xf32>
    %166 = vector.broadcast %165 : vector<16x1xf32> to vector<16x256xf32>
    %167 = arith.mulf %141, %166 : vector<16x256xf32>
    %168 = arith.addf %167, %1 : vector<16x256xf32>
    %c1_144 = arith.constant 1 : index
    %c0_145 = arith.constant 0 : index
    %c0_146 = arith.constant 0 : index
    %169 = vector.load %arg3[%c1_144, %c0_145, %c0_146] : memref<2x16x144xbf16, #tpu.memory_space<vmem>>, vector<1x16x144xbf16>
    %170 = vector.shape_cast %169 : vector<1x16x144xbf16> to vector<16x144xbf16>
    %c1_147 = arith.constant 1 : index
    %c0_148 = arith.constant 0 : index
    %c0_149 = arith.constant 0 : index
    %171 = vector.load %arg4[%c1_147, %c0_148, %c0_149] : memref<2x16x1xf32, #tpu.memory_space<vmem>>, vector<1x16x1xf32>
    %172 = vector.shape_cast %171 : vector<1x16x1xf32> to vector<16x1xf32>
    %c0_150 = arith.constant 0 : index
    %c128_151 = arith.constant 128 : index
    %173 = vector.load %arg14[%c0_150, %c128_151] : memref<16x512xf32, #tpu.memory_space<vmem>>, vector<16x256xf32>
    tpu.vector_store %arg14[%c0_150, %c128_151], %168 {strides = array<i32>} : memref<16x512xf32, #tpu.memory_space<vmem>>, vector<16x256xf32>,
    %c0_152 = arith.constant 0 : index
    %c111_153 = arith.constant 111 : index
    %174 = vector.load %arg14[%c0_152, %c111_153] : memref<16x512xf32, #tpu.memory_space<vmem>>, vector<16x256xf32>
    %c0_154 = arith.constant 0 : index
    %c0_155 = arith.constant 0 : index
    %c0_156 = arith.constant 0 : index
    %175 = vector.load %arg2[%c0_154, %c0_155, %c0_156] : memref<9x1x256xf32, #tpu.memory_space<vmem>>, vector<1x1x256xf32>
    %176 = vector.shape_cast %175 : vector<1x1x256xf32> to vector<1x256xf32>
    %177 = vector.broadcast %176 : vector<1x256xf32> to vector<16x256xf32>
    %178 = arith.mulf %174, %177 : vector<16x256xf32>
    %179 = arith.truncf %178 : vector<16x256xf32> to vector<16x256xbf16>
    %c0_157 = arith.constant 0 : index
    %c0_158 = arith.constant 0 : index
    %180 = vector.load %arg15[%c0_157, %c0_158] : memref<144x256xbf16, #tpu.memory_space<vmem>>, vector<16x256xbf16>
    tpu.vector_store %arg15[%c0_157, %c0_158], %179 {strides = array<i32>} : memref<144x256xbf16, #tpu.memory_space<vmem>>, vector<16x256xbf16>,
    %c0_159 = arith.constant 0 : index
    %c112_160 = arith.constant 112 : index
    %181 = vector.load %arg14[%c0_159, %c112_160] : memref<16x512xf32, #tpu.memory_space<vmem>>, vector<16x256xf32>
    %c1_161 = arith.constant 1 : index
    %c0_162 = arith.constant 0 : index
    %c0_163 = arith.constant 0 : index
    %182 = vector.load %arg2[%c1_161, %c0_162, %c0_163] : memref<9x1x256xf32, #tpu.memory_space<vmem>>, vector<1x1x256xf32>
    %183 = vector.shape_cast %182 : vector<1x1x256xf32> to vector<1x256xf32>
    %184 = vector.broadcast %183 : vector<1x256xf32> to vector<16x256xf32>
    %185 = arith.mulf %181, %184 : vector<16x256xf32>
    %186 = arith.truncf %185 : vector<16x256xf32> to vector<16x256xbf16>
    %c16_164 = arith.constant 16 : index
    %c0_165 = arith.constant 0 : index
    %187 = vector.load %arg15[%c16_164, %c0_165] : memref<144x256xbf16, #tpu.memory_space<vmem>>, vector<16x256xbf16>
    tpu.vector_store %arg15[%c16_164, %c0_165], %186 {strides = array<i32>} : memref<144x256xbf16, #tpu.memory_space<vmem>>, vector<16x256xbf16>,
    %c0_166 = arith.constant 0 : index
    %c113_167 = arith.constant 113 : index
    %188 = vector.load %arg14[%c0_166, %c113_167] : memref<16x512xf32, #tpu.memory_space<vmem>>, vector<16x256xf32>
    %c2_168 = arith.constant 2 : index
    %c0_169 = arith.constant 0 : index
    %c0_170 = arith.constant 0 : index
    %189 = vector.load %arg2[%c2_168, %c0_169, %c0_170] : memref<9x1x256xf32, #tpu.memory_space<vmem>>, vector<1x1x256xf32>
    %190 = vector.shape_cast %189 : vector<1x1x256xf32> to vector<1x256xf32>
    %191 = vector.broadcast %190 : vector<1x256xf32> to vector<16x256xf32>
    %192 = arith.mulf %188, %191 : vector<16x256xf32>
    %193 = arith.truncf %192 : vector<16x256xf32> to vector<16x256xbf16>
    %c32_171 = arith.constant 32 : index
    %c0_172 = arith.constant 0 : index
    %194 = vector.load %arg15[%c32_171, %c0_172] : memref<144x256xbf16, #tpu.memory_space<vmem>>, vector<16x256xbf16>
    tpu.vector_store %arg15[%c32_171, %c0_172], %193 {strides = array<i32>} : memref<144x256xbf16, #tpu.memory_space<vmem>>, vector<16x256xbf16>,
    %c0_173 = arith.constant 0 : index
    %c127_174 = arith.constant 127 : index
    %195 = vector.load %arg14[%c0_173, %c127_174] : memref<16x512xf32, #tpu.memory_space<vmem>>, vector<16x256xf32>
    %c3_175 = arith.constant 3 : index
    %c0_176 = arith.constant 0 : index
    %c0_177 = arith.constant 0 : index
    %196 = vector.load %arg2[%c3_175, %c0_176, %c0_177] : memref<9x1x256xf32, #tpu.memory_space<vmem>>, vector<1x1x256xf32>
    %197 = vector.shape_cast %196 : vector<1x1x256xf32> to vector<1x256xf32>
    %198 = vector.broadcast %197 : vector<1x256xf32> to vector<16x256xf32>
    %199 = arith.mulf %195, %198 : vector<16x256xf32>
    %200 = arith.truncf %199 : vector<16x256xf32> to vector<16x256xbf16>
    %c48_178 = arith.constant 48 : index
    %c0_179 = arith.constant 0 : index
    %201 = vector.load %arg15[%c48_178, %c0_179] : memref<144x256xbf16, #tpu.memory_space<vmem>>, vector<16x256xbf16>
    tpu.vector_store %arg15[%c48_178, %c0_179], %200 {strides = array<i32>} : memref<144x256xbf16, #tpu.memory_space<vmem>>, vector<16x256xbf16>,
    %c0_180 = arith.constant 0 : index
    %c128_181 = arith.constant 128 : index
    %202 = vector.load %arg14[%c0_180, %c128_181] : memref<16x512xf32, #tpu.memory_space<vmem>>, vector<16x256xf32>
    %203 = arith.truncf %202 : vector<16x256xf32> to vector<16x256xbf16>
    %c64_182 = arith.constant 64 : index
    %c0_183 = arith.constant 0 : index
    %204 = vector.load %arg15[%c64_182, %c0_183] : memref<144x256xbf16, #tpu.memory_space<vmem>>, vector<16x256xbf16>
    tpu.vector_store %arg15[%c64_182, %c0_183], %203 {strides = array<i32>} : memref<144x256xbf16, #tpu.memory_space<vmem>>, vector<16x256xbf16>,
    %c0_184 = arith.constant 0 : index
    %c129_185 = arith.constant 129 : index
    %205 = vector.load %arg14[%c0_184, %c129_185] : memref<16x512xf32, #tpu.memory_space<vmem>>, vector<16x256xf32>
    %c5_186 = arith.constant 5 : index
    %c0_187 = arith.constant 0 : index
    %c0_188 = arith.constant 0 : index
    %206 = vector.load %arg2[%c5_186, %c0_187, %c0_188] : memref<9x1x256xf32, #tpu.memory_space<vmem>>, vector<1x1x256xf32>
    %207 = vector.shape_cast %206 : vector<1x1x256xf32> to vector<1x256xf32>
    %208 = vector.broadcast %207 : vector<1x256xf32> to vector<16x256xf32>
    %209 = arith.mulf %205, %208 : vector<16x256xf32>
    %210 = arith.truncf %209 : vector<16x256xf32> to vector<16x256xbf16>
    %c80_189 = arith.constant 80 : index
    %c0_190 = arith.constant 0 : index
    %211 = vector.load %arg15[%c80_189, %c0_190] : memref<144x256xbf16, #tpu.memory_space<vmem>>, vector<16x256xbf16>
    tpu.vector_store %arg15[%c80_189, %c0_190], %210 {strides = array<i32>} : memref<144x256xbf16, #tpu.memory_space<vmem>>, vector<16x256xbf16>,
    %c0_191 = arith.constant 0 : index
    %c143_192 = arith.constant 143 : index
    %212 = vector.load %arg14[%c0_191, %c143_192] : memref<16x512xf32, #tpu.memory_space<vmem>>, vector<16x256xf32>
    %c6_193 = arith.constant 6 : index
    %c0_194 = arith.constant 0 : index
    %c0_195 = arith.constant 0 : index
    %213 = vector.load %arg2[%c6_193, %c0_194, %c0_195] : memref<9x1x256xf32, #tpu.memory_space<vmem>>, vector<1x1x256xf32>
    %214 = vector.shape_cast %213 : vector<1x1x256xf32> to vector<1x256xf32>
    %215 = vector.broadcast %214 : vector<1x256xf32> to vector<16x256xf32>
    %216 = arith.mulf %212, %215 : vector<16x256xf32>
    %217 = arith.truncf %216 : vector<16x256xf32> to vector<16x256xbf16>
    %c96_196 = arith.constant 96 : index
    %c0_197 = arith.constant 0 : index
    %218 = vector.load %arg15[%c96_196, %c0_197] : memref<144x256xbf16, #tpu.memory_space<vmem>>, vector<16x256xbf16>
    tpu.vector_store %arg15[%c96_196, %c0_197], %217 {strides = array<i32>} : memref<144x256xbf16, #tpu.memory_space<vmem>>, vector<16x256xbf16>,
    %c0_198 = arith.constant 0 : index
    %c144_199 = arith.constant 144 : index
    %219 = vector.load %arg14[%c0_198, %c144_199] : memref<16x512xf32, #tpu.memory_space<vmem>>, vector<16x256xf32>
    %c7_200 = arith.constant 7 : index
    %c0_201 = arith.constant 0 : index
    %c0_202 = arith.constant 0 : index
    %220 = vector.load %arg2[%c7_200, %c0_201, %c0_202] : memref<9x1x256xf32, #tpu.memory_space<vmem>>, vector<1x1x256xf32>
    %221 = vector.shape_cast %220 : vector<1x1x256xf32> to vector<1x256xf32>
    %222 = vector.broadcast %221 : vector<1x256xf32> to vector<16x256xf32>
    %223 = arith.mulf %219, %222 : vector<16x256xf32>
    %224 = arith.truncf %223 : vector<16x256xf32> to vector<16x256xbf16>
    %c112_203 = arith.constant 112 : index
    %c0_204 = arith.constant 0 : index
    %225 = vector.load %arg15[%c112_203, %c0_204] : memref<144x256xbf16, #tpu.memory_space<vmem>>, vector<16x256xbf16>
    tpu.vector_store %arg15[%c112_203, %c0_204], %224 {strides = array<i32>} : memref<144x256xbf16, #tpu.memory_space<vmem>>, vector<16x256xbf16>,
    %c0_205 = arith.constant 0 : index
    %c145_206 = arith.constant 145 : index
    %226 = vector.load %arg14[%c0_205, %c145_206] : memref<16x512xf32, #tpu.memory_space<vmem>>, vector<16x256xf32>
    %c8_207 = arith.constant 8 : index
    %c0_208 = arith.constant 0 : index
    %c0_209 = arith.constant 0 : index
    %227 = vector.load %arg2[%c8_207, %c0_208, %c0_209] : memref<9x1x256xf32, #tpu.memory_space<vmem>>, vector<1x1x256xf32>
    %228 = vector.shape_cast %227 : vector<1x1x256xf32> to vector<1x256xf32>
    %229 = vector.broadcast %228 : vector<1x256xf32> to vector<16x256xf32>
    %230 = arith.mulf %226, %229 : vector<16x256xf32>
    %231 = arith.truncf %230 : vector<16x256xf32> to vector<16x256xbf16>
    %c128_210 = arith.constant 128 : index
    %c0_211 = arith.constant 0 : index
    %232 = vector.load %arg15[%c128_210, %c0_211] : memref<144x256xbf16, #tpu.memory_space<vmem>>, vector<16x256xbf16>
    tpu.vector_store %arg15[%c128_210, %c0_211], %231 {strides = array<i32>} : memref<144x256xbf16, #tpu.memory_space<vmem>>, vector<16x256xbf16>,
    %c0_212 = arith.constant 0 : index
    %c0_213 = arith.constant 0 : index
    %233 = vector.load %arg15[%c0_212, %c0_213] : memref<144x256xbf16, #tpu.memory_space<vmem>>, vector<144x256xbf16>
    %cst_214 = arith.constant dense<0.000000e+00> : vector<16x256xf32>
    %234 = tpu.matmul %170, %233, %cst_214 {dimension_numbers = #tpu.dot_dimension_numbers<[1], [0], [0], [1], [0, 0, 1, 1], [], []>} : vector<16x144xbf16>, vector<144x256xbf16>, vector<16x256xf32> -> vector<16x256xf32>
    %235 = vector.broadcast %172 : vector<16x1xf32> to vector<16x256xf32>
    %236 = arith.addf %234, %235 : vector<16x256xf32>
    %cst_215 = arith.constant 0.000000e+00 : f32
    %237 = vector.broadcast %cst_215 : f32 to vector<16x256xf32>
    %238 = arith.maximumf %236, %237 : vector<16x256xf32>
    %c1_216 = arith.constant 1 : index
    %c0_217 = arith.constant 0 : index
    %c0_218 = arith.constant 0 : index
    %239 = vector.load %arg5[%c1_216, %c0_217, %c0_218] : memref<2x16x144xbf16, #tpu.memory_space<vmem>>, vector<1x16x144xbf16>
    %240 = vector.shape_cast %239 : vector<1x16x144xbf16> to vector<16x144xbf16>
    %c1_219 = arith.constant 1 : index
    %c0_220 = arith.constant 0 : index
    %c0_221 = arith.constant 0 : index
    %241 = vector.load %arg6[%c1_219, %c0_220, %c0_221] : memref<2x16x1xf32, #tpu.memory_space<vmem>>, vector<1x16x1xf32>
    %242 = vector.shape_cast %241 : vector<1x16x1xf32> to vector<16x1xf32>
    %c0_222 = arith.constant 0 : index
    %c128_223 = arith.constant 128 : index
    %243 = vector.load %arg14[%c0_222, %c128_223] : memref<16x512xf32, #tpu.memory_space<vmem>>, vector<16x256xf32>
    tpu.vector_store %arg14[%c0_222, %c128_223], %238 {strides = array<i32>} : memref<16x512xf32, #tpu.memory_space<vmem>>, vector<16x256xf32>,
    %c0_224 = arith.constant 0 : index
    %c111_225 = arith.constant 111 : index
    %244 = vector.load %arg14[%c0_224, %c111_225] : memref<16x512xf32, #tpu.memory_space<vmem>>, vector<16x256xf32>
    %c0_226 = arith.constant 0 : index
    %c0_227 = arith.constant 0 : index
    %c0_228 = arith.constant 0 : index
    %245 = vector.load %arg2[%c0_226, %c0_227, %c0_228] : memref<9x1x256xf32, #tpu.memory_space<vmem>>, vector<1x1x256xf32>
    %246 = vector.shape_cast %245 : vector<1x1x256xf32> to vector<1x256xf32>
    %247 = vector.broadcast %246 : vector<1x256xf32> to vector<16x256xf32>
    %248 = arith.mulf %244, %247 : vector<16x256xf32>
    %249 = arith.truncf %248 : vector<16x256xf32> to vector<16x256xbf16>
    %c0_229 = arith.constant 0 : index
    %c0_230 = arith.constant 0 : index
    %250 = vector.load %arg15[%c0_229, %c0_230] : memref<144x256xbf16, #tpu.memory_space<vmem>>, vector<16x256xbf16>
    tpu.vector_store %arg15[%c0_229, %c0_230], %249 {strides = array<i32>} : memref<144x256xbf16, #tpu.memory_space<vmem>>, vector<16x256xbf16>,
    %c0_231 = arith.constant 0 : index
    %c112_232 = arith.constant 112 : index
    %251 = vector.load %arg14[%c0_231, %c112_232] : memref<16x512xf32, #tpu.memory_space<vmem>>, vector<16x256xf32>
    %c1_233 = arith.constant 1 : index
    %c0_234 = arith.constant 0 : index
    %c0_235 = arith.constant 0 : index
    %252 = vector.load %arg2[%c1_233, %c0_234, %c0_235] : memref<9x1x256xf32, #tpu.memory_space<vmem>>, vector<1x1x256xf32>
    %253 = vector.shape_cast %252 : vector<1x1x256xf32> to vector<1x256xf32>
    %254 = vector.broadcast %253 : vector<1x256xf32> to vector<16x256xf32>
    %255 = arith.mulf %251, %254 : vector<16x256xf32>
    %256 = arith.truncf %255 : vector<16x256xf32> to vector<16x256xbf16>
    %c16_236 = arith.constant 16 : index
    %c0_237 = arith.constant 0 : index
    %257 = vector.load %arg15[%c16_236, %c0_237] : memref<144x256xbf16, #tpu.memory_space<vmem>>, vector<16x256xbf16>
    tpu.vector_store %arg15[%c16_236, %c0_237], %256 {strides = array<i32>} : memref<144x256xbf16, #tpu.memory_space<vmem>>, vector<16x256xbf16>,
    %c0_238 = arith.constant 0 : index
    %c113_239 = arith.constant 113 : index
    %258 = vector.load %arg14[%c0_238, %c113_239] : memref<16x512xf32, #tpu.memory_space<vmem>>, vector<16x256xf32>
    %c2_240 = arith.constant 2 : index
    %c0_241 = arith.constant 0 : index
    %c0_242 = arith.constant 0 : index
    %259 = vector.load %arg2[%c2_240, %c0_241, %c0_242] : memref<9x1x256xf32, #tpu.memory_space<vmem>>, vector<1x1x256xf32>
    %260 = vector.shape_cast %259 : vector<1x1x256xf32> to vector<1x256xf32>
    %261 = vector.broadcast %260 : vector<1x256xf32> to vector<16x256xf32>
    %262 = arith.mulf %258, %261 : vector<16x256xf32>
    %263 = arith.truncf %262 : vector<16x256xf32> to vector<16x256xbf16>
    %c32_243 = arith.constant 32 : index
    %c0_244 = arith.constant 0 : index
    %264 = vector.load %arg15[%c32_243, %c0_244] : memref<144x256xbf16, #tpu.memory_space<vmem>>, vector<16x256xbf16>
    tpu.vector_store %arg15[%c32_243, %c0_244], %263 {strides = array<i32>} : memref<144x256xbf16, #tpu.memory_space<vmem>>, vector<16x256xbf16>,
    %c0_245 = arith.constant 0 : index
    %c127_246 = arith.constant 127 : index
    %265 = vector.load %arg14[%c0_245, %c127_246] : memref<16x512xf32, #tpu.memory_space<vmem>>, vector<16x256xf32>
    %c3_247 = arith.constant 3 : index
    %c0_248 = arith.constant 0 : index
    %c0_249 = arith.constant 0 : index
    %266 = vector.load %arg2[%c3_247, %c0_248, %c0_249] : memref<9x1x256xf32, #tpu.memory_space<vmem>>, vector<1x1x256xf32>
    %267 = vector.shape_cast %266 : vector<1x1x256xf32> to vector<1x256xf32>
    %268 = vector.broadcast %267 : vector<1x256xf32> to vector<16x256xf32>
    %269 = arith.mulf %265, %268 : vector<16x256xf32>
    %270 = arith.truncf %269 : vector<16x256xf32> to vector<16x256xbf16>
    %c48_250 = arith.constant 48 : index
    %c0_251 = arith.constant 0 : index
    %271 = vector.load %arg15[%c48_250, %c0_251] : memref<144x256xbf16, #tpu.memory_space<vmem>>, vector<16x256xbf16>
    tpu.vector_store %arg15[%c48_250, %c0_251], %270 {strides = array<i32>} : memref<144x256xbf16, #tpu.memory_space<vmem>>, vector<16x256xbf16>,
    %c0_252 = arith.constant 0 : index
    %c128_253 = arith.constant 128 : index
    %272 = vector.load %arg14[%c0_252, %c128_253] : memref<16x512xf32, #tpu.memory_space<vmem>>, vector<16x256xf32>
    %273 = arith.truncf %272 : vector<16x256xf32> to vector<16x256xbf16>
    %c64_254 = arith.constant 64 : index
    %c0_255 = arith.constant 0 : index
    %274 = vector.load %arg15[%c64_254, %c0_255] : memref<144x256xbf16, #tpu.memory_space<vmem>>, vector<16x256xbf16>
    tpu.vector_store %arg15[%c64_254, %c0_255], %273 {strides = array<i32>} : memref<144x256xbf16, #tpu.memory_space<vmem>>, vector<16x256xbf16>,
    %c0_256 = arith.constant 0 : index
    %c129_257 = arith.constant 129 : index
    %275 = vector.load %arg14[%c0_256, %c129_257] : memref<16x512xf32, #tpu.memory_space<vmem>>, vector<16x256xf32>
    %c5_258 = arith.constant 5 : index
    %c0_259 = arith.constant 0 : index
    %c0_260 = arith.constant 0 : index
    %276 = vector.load %arg2[%c5_258, %c0_259, %c0_260] : memref<9x1x256xf32, #tpu.memory_space<vmem>>, vector<1x1x256xf32>
    %277 = vector.shape_cast %276 : vector<1x1x256xf32> to vector<1x256xf32>
    %278 = vector.broadcast %277 : vector<1x256xf32> to vector<16x256xf32>
    %279 = arith.mulf %275, %278 : vector<16x256xf32>
    %280 = arith.truncf %279 : vector<16x256xf32> to vector<16x256xbf16>
    %c80_261 = arith.constant 80 : index
    %c0_262 = arith.constant 0 : index
    %281 = vector.load %arg15[%c80_261, %c0_262] : memref<144x256xbf16, #tpu.memory_space<vmem>>, vector<16x256xbf16>
    tpu.vector_store %arg15[%c80_261, %c0_262], %280 {strides = array<i32>} : memref<144x256xbf16, #tpu.memory_space<vmem>>, vector<16x256xbf16>,
    %c0_263 = arith.constant 0 : index
    %c143_264 = arith.constant 143 : index
    %282 = vector.load %arg14[%c0_263, %c143_264] : memref<16x512xf32, #tpu.memory_space<vmem>>, vector<16x256xf32>
    %c6_265 = arith.constant 6 : index
    %c0_266 = arith.constant 0 : index
    %c0_267 = arith.constant 0 : index
    %283 = vector.load %arg2[%c6_265, %c0_266, %c0_267] : memref<9x1x256xf32, #tpu.memory_space<vmem>>, vector<1x1x256xf32>
    %284 = vector.shape_cast %283 : vector<1x1x256xf32> to vector<1x256xf32>
    %285 = vector.broadcast %284 : vector<1x256xf32> to vector<16x256xf32>
    %286 = arith.mulf %282, %285 : vector<16x256xf32>
    %287 = arith.truncf %286 : vector<16x256xf32> to vector<16x256xbf16>
    %c96_268 = arith.constant 96 : index
    %c0_269 = arith.constant 0 : index
    %288 = vector.load %arg15[%c96_268, %c0_269] : memref<144x256xbf16, #tpu.memory_space<vmem>>, vector<16x256xbf16>
    tpu.vector_store %arg15[%c96_268, %c0_269], %287 {strides = array<i32>} : memref<144x256xbf16, #tpu.memory_space<vmem>>, vector<16x256xbf16>,
    %c0_270 = arith.constant 0 : index
    %c144_271 = arith.constant 144 : index
    %289 = vector.load %arg14[%c0_270, %c144_271] : memref<16x512xf32, #tpu.memory_space<vmem>>, vector<16x256xf32>
    %c7_272 = arith.constant 7 : index
    %c0_273 = arith.constant 0 : index
    %c0_274 = arith.constant 0 : index
    %290 = vector.load %arg2[%c7_272, %c0_273, %c0_274] : memref<9x1x256xf32, #tpu.memory_space<vmem>>, vector<1x1x256xf32>
    %291 = vector.shape_cast %290 : vector<1x1x256xf32> to vector<1x256xf32>
    %292 = vector.broadcast %291 : vector<1x256xf32> to vector<16x256xf32>
    %293 = arith.mulf %289, %292 : vector<16x256xf32>
    %294 = arith.truncf %293 : vector<16x256xf32> to vector<16x256xbf16>
    %c112_275 = arith.constant 112 : index
    %c0_276 = arith.constant 0 : index
    %295 = vector.load %arg15[%c112_275, %c0_276] : memref<144x256xbf16, #tpu.memory_space<vmem>>, vector<16x256xbf16>
    tpu.vector_store %arg15[%c112_275, %c0_276], %294 {strides = array<i32>} : memref<144x256xbf16, #tpu.memory_space<vmem>>, vector<16x256xbf16>,
    %c0_277 = arith.constant 0 : index
    %c145_278 = arith.constant 145 : index
    %296 = vector.load %arg14[%c0_277, %c145_278] : memref<16x512xf32, #tpu.memory_space<vmem>>, vector<16x256xf32>
    %c8_279 = arith.constant 8 : index
    %c0_280 = arith.constant 0 : index
    %c0_281 = arith.constant 0 : index
    %297 = vector.load %arg2[%c8_279, %c0_280, %c0_281] : memref<9x1x256xf32, #tpu.memory_space<vmem>>, vector<1x1x256xf32>
    %298 = vector.shape_cast %297 : vector<1x1x256xf32> to vector<1x256xf32>
    %299 = vector.broadcast %298 : vector<1x256xf32> to vector<16x256xf32>
    %300 = arith.mulf %296, %299 : vector<16x256xf32>
    %301 = arith.truncf %300 : vector<16x256xf32> to vector<16x256xbf16>
    %c128_282 = arith.constant 128 : index
    %c0_283 = arith.constant 0 : index
    %302 = vector.load %arg15[%c128_282, %c0_283] : memref<144x256xbf16, #tpu.memory_space<vmem>>, vector<16x256xbf16>
    tpu.vector_store %arg15[%c128_282, %c0_283], %301 {strides = array<i32>} : memref<144x256xbf16, #tpu.memory_space<vmem>>, vector<16x256xbf16>,
    %c0_284 = arith.constant 0 : index
    %c0_285 = arith.constant 0 : index
    %303 = vector.load %arg15[%c0_284, %c0_285] : memref<144x256xbf16, #tpu.memory_space<vmem>>, vector<144x256xbf16>
    %cst_286 = arith.constant dense<0.000000e+00> : vector<16x256xf32>
    %304 = tpu.matmul %240, %303, %cst_286 {dimension_numbers = #tpu.dot_dimension_numbers<[1], [0], [0], [1], [0, 0, 1, 1], [], []>} : vector<16x144xbf16>, vector<144x256xbf16>, vector<16x256xf32> -> vector<16x256xf32>
    %305 = vector.broadcast %242 : vector<16x1xf32> to vector<16x256xf32>
    %306 = arith.addf %304, %305 : vector<16x256xf32>
    %cst_287 = arith.constant dense<0.000000e+00> : vector<16xf32>
    %307 = vector.multi_reduction <add>, %306, %cst_287 [1] : vector<16x256xf32> to vector<16xf32>
    %308 = vector.shape_cast %307 : vector<16xf32> to vector<16x1xf32>
    %cst_288 = arith.constant 2.560000e+02 : f32
    %309 = vector.broadcast %cst_288 : f32 to vector<16x1xf32>
    %310 = arith.divf %308, %309 : vector<16x1xf32>
    %c1_289 = arith.constant 1 : index
    %c0_290 = arith.constant 0 : index
    %c0_291 = arith.constant 0 : index
    %311 = vector.load %arg7[%c1_289, %c0_290, %c0_291] : memref<2x4x16xf32, #tpu.memory_space<vmem>>, vector<1x4x16xf32>
    %312 = vector.shape_cast %311 : vector<1x4x16xf32> to vector<4x16xf32>
    %cst_292 = arith.constant dense<0.000000e+00> : vector<4x1xf32>
    %313 = tpu.matmul %312, %310, %cst_292 {dimension_numbers = #tpu.dot_dimension_numbers<[1], [0], [0], [1], [0, 0, 1, 1], [], []>} : vector<4x16xf32>, vector<16x1xf32>, vector<4x1xf32> -> vector<4x1xf32>
    %c1_293 = arith.constant 1 : index
    %c0_294 = arith.constant 0 : index
    %c0_295 = arith.constant 0 : index
    %314 = vector.load %arg8[%c1_293, %c0_294, %c0_295] : memref<2x4x1xf32, #tpu.memory_space<vmem>>, vector<1x4x1xf32>
    %315 = vector.shape_cast %314 : vector<1x4x1xf32> to vector<4x1xf32>
    %316 = arith.addf %313, %315 : vector<4x1xf32>
    %cst_296 = arith.constant 0.000000e+00 : f32
    %317 = vector.broadcast %cst_296 : f32 to vector<4x1xf32>
    %318 = arith.maximumf %316, %317 : vector<4x1xf32>
    %c1_297 = arith.constant 1 : index
    %c0_298 = arith.constant 0 : index
    %c0_299 = arith.constant 0 : index
    %319 = vector.load %arg9[%c1_297, %c0_298, %c0_299] : memref<2x16x4xf32, #tpu.memory_space<vmem>>, vector<1x16x4xf32>
    %320 = vector.shape_cast %319 : vector<1x16x4xf32> to vector<16x4xf32>
    %cst_300 = arith.constant dense<0.000000e+00> : vector<16x1xf32>
    %321 = tpu.matmul %320, %318, %cst_300 {dimension_numbers = #tpu.dot_dimension_numbers<[1], [0], [0], [1], [0, 0, 1, 1], [], []>} : vector<16x4xf32>, vector<4x1xf32>, vector<16x1xf32> -> vector<16x1xf32>
    %c1_301 = arith.constant 1 : index
    %c0_302 = arith.constant 0 : index
    %c0_303 = arith.constant 0 : index
    %322 = vector.load %arg10[%c1_301, %c0_302, %c0_303] : memref<2x16x1xf32, #tpu.memory_space<vmem>>, vector<1x16x1xf32>
    %323 = vector.shape_cast %322 : vector<1x16x1xf32> to vector<16x1xf32>
    %324 = arith.addf %321, %323 : vector<16x1xf32>
    %cst_304 = arith.constant 0.000000e+00 : f32
    %325 = vector.broadcast %cst_304 : f32 to vector<16x1xf32>
    %326 = arith.subf %325, %324 : vector<16x1xf32>
    %327 = math.exp %326 : vector<16x1xf32>
    %cst_305 = arith.constant 1.000000e+00 : f32
    %328 = vector.broadcast %cst_305 : f32 to vector<16x1xf32>
    %329 = arith.addf %328, %327 : vector<16x1xf32>
    %330 = tpu.reciprocal %329 {approx = true} : vector<16x1xf32> -> vector<16x1xf32>
    %331 = vector.broadcast %330 : vector<16x1xf32> to vector<16x256xf32>
    %332 = arith.mulf %306, %331 : vector<16x256xf32>
    %333 = arith.addf %332, %168 : vector<16x256xf32>
    %c0_306 = arith.constant 0 : index
    %c0_307 = arith.constant 0 : index
    %334 = vector.load %arg11[%c0_306, %c0_307] : memref<16x144xbf16, #tpu.memory_space<vmem>>, vector<16x144xbf16>
    %c0_308 = arith.constant 0 : index
    %c0_309 = arith.constant 0 : index
    %335 = vector.load %arg12[%c0_308, %c0_309] : memref<16x1xf32, #tpu.memory_space<vmem>>, vector<16x1xf32>
    %c0_310 = arith.constant 0 : index
    %c128_311 = arith.constant 128 : index
    %336 = vector.load %arg14[%c0_310, %c128_311] : memref<16x512xf32, #tpu.memory_space<vmem>>, vector<16x256xf32>
    tpu.vector_store %arg14[%c0_310, %c128_311], %333 {strides = array<i32>} : memref<16x512xf32, #tpu.memory_space<vmem>>, vector<16x256xf32>,
    %c0_312 = arith.constant 0 : index
    %c111_313 = arith.constant 111 : index
    %337 = vector.load %arg14[%c0_312, %c111_313] : memref<16x512xf32, #tpu.memory_space<vmem>>, vector<16x256xf32>
    %c0_314 = arith.constant 0 : index
    %c0_315 = arith.constant 0 : index
    %c0_316 = arith.constant 0 : index
    %338 = vector.load %arg2[%c0_314, %c0_315, %c0_316] : memref<9x1x256xf32, #tpu.memory_space<vmem>>, vector<1x1x256xf32>
    %339 = vector.shape_cast %338 : vector<1x1x256xf32> to vector<1x256xf32>
    %340 = vector.broadcast %339 : vector<1x256xf32> to vector<16x256xf32>
    %341 = arith.mulf %337, %340 : vector<16x256xf32>
    %342 = arith.truncf %341 : vector<16x256xf32> to vector<16x256xbf16>
    %c0_317 = arith.constant 0 : index
    %c0_318 = arith.constant 0 : index
    %343 = vector.load %arg15[%c0_317, %c0_318] : memref<144x256xbf16, #tpu.memory_space<vmem>>, vector<16x256xbf16>
    tpu.vector_store %arg15[%c0_317, %c0_318], %342 {strides = array<i32>} : memref<144x256xbf16, #tpu.memory_space<vmem>>, vector<16x256xbf16>,
    %c0_319 = arith.constant 0 : index
    %c112_320 = arith.constant 112 : index
    %344 = vector.load %arg14[%c0_319, %c112_320] : memref<16x512xf32, #tpu.memory_space<vmem>>, vector<16x256xf32>
    %c1_321 = arith.constant 1 : index
    %c0_322 = arith.constant 0 : index
    %c0_323 = arith.constant 0 : index
    %345 = vector.load %arg2[%c1_321, %c0_322, %c0_323] : memref<9x1x256xf32, #tpu.memory_space<vmem>>, vector<1x1x256xf32>
    %346 = vector.shape_cast %345 : vector<1x1x256xf32> to vector<1x256xf32>
    %347 = vector.broadcast %346 : vector<1x256xf32> to vector<16x256xf32>
    %348 = arith.mulf %344, %347 : vector<16x256xf32>
    %349 = arith.truncf %348 : vector<16x256xf32> to vector<16x256xbf16>
    %c16_324 = arith.constant 16 : index
    %c0_325 = arith.constant 0 : index
    %350 = vector.load %arg15[%c16_324, %c0_325] : memref<144x256xbf16, #tpu.memory_space<vmem>>, vector<16x256xbf16>
    tpu.vector_store %arg15[%c16_324, %c0_325], %349 {strides = array<i32>} : memref<144x256xbf16, #tpu.memory_space<vmem>>, vector<16x256xbf16>,
    %c0_326 = arith.constant 0 : index
    %c113_327 = arith.constant 113 : index
    %351 = vector.load %arg14[%c0_326, %c113_327] : memref<16x512xf32, #tpu.memory_space<vmem>>, vector<16x256xf32>
    %c2_328 = arith.constant 2 : index
    %c0_329 = arith.constant 0 : index
    %c0_330 = arith.constant 0 : index
    %352 = vector.load %arg2[%c2_328, %c0_329, %c0_330] : memref<9x1x256xf32, #tpu.memory_space<vmem>>, vector<1x1x256xf32>
    %353 = vector.shape_cast %352 : vector<1x1x256xf32> to vector<1x256xf32>
    %354 = vector.broadcast %353 : vector<1x256xf32> to vector<16x256xf32>
    %355 = arith.mulf %351, %354 : vector<16x256xf32>
    %356 = arith.truncf %355 : vector<16x256xf32> to vector<16x256xbf16>
    %c32_331 = arith.constant 32 : index
    %c0_332 = arith.constant 0 : index
    %357 = vector.load %arg15[%c32_331, %c0_332] : memref<144x256xbf16, #tpu.memory_space<vmem>>, vector<16x256xbf16>
    tpu.vector_store %arg15[%c32_331, %c0_332], %356 {strides = array<i32>} : memref<144x256xbf16, #tpu.memory_space<vmem>>, vector<16x256xbf16>,
    %c0_333 = arith.constant 0 : index
    %c127_334 = arith.constant 127 : index
    %358 = vector.load %arg14[%c0_333, %c127_334] : memref<16x512xf32, #tpu.memory_space<vmem>>, vector<16x256xf32>
    %c3_335 = arith.constant 3 : index
    %c0_336 = arith.constant 0 : index
    %c0_337 = arith.constant 0 : index
    %359 = vector.load %arg2[%c3_335, %c0_336, %c0_337] : memref<9x1x256xf32, #tpu.memory_space<vmem>>, vector<1x1x256xf32>
    %360 = vector.shape_cast %359 : vector<1x1x256xf32> to vector<1x256xf32>
    %361 = vector.broadcast %360 : vector<1x256xf32> to vector<16x256xf32>
    %362 = arith.mulf %358, %361 : vector<16x256xf32>
    %363 = arith.truncf %362 : vector<16x256xf32> to vector<16x256xbf16>
    %c48_338 = arith.constant 48 : index
    %c0_339 = arith.constant 0 : index
    %364 = vector.load %arg15[%c48_338, %c0_339] : memref<144x256xbf16, #tpu.memory_space<vmem>>, vector<16x256xbf16>
    tpu.vector_store %arg15[%c48_338, %c0_339], %363 {strides = array<i32>} : memref<144x256xbf16, #tpu.memory_space<vmem>>, vector<16x256xbf16>,
    %c0_340 = arith.constant 0 : index
    %c128_341 = arith.constant 128 : index
    %365 = vector.load %arg14[%c0_340, %c128_341] : memref<16x512xf32, #tpu.memory_space<vmem>>, vector<16x256xf32>
    %366 = arith.truncf %365 : vector<16x256xf32> to vector<16x256xbf16>
    %c64_342 = arith.constant 64 : index
    %c0_343 = arith.constant 0 : index
    %367 = vector.load %arg15[%c64_342, %c0_343] : memref<144x256xbf16, #tpu.memory_space<vmem>>, vector<16x256xbf16>
    tpu.vector_store %arg15[%c64_342, %c0_343], %366 {strides = array<i32>} : memref<144x256xbf16, #tpu.memory_space<vmem>>, vector<16x256xbf16>,
    %c0_344 = arith.constant 0 : index
    %c129_345 = arith.constant 129 : index
    %368 = vector.load %arg14[%c0_344, %c129_345] : memref<16x512xf32, #tpu.memory_space<vmem>>, vector<16x256xf32>
    %c5_346 = arith.constant 5 : index
    %c0_347 = arith.constant 0 : index
    %c0_348 = arith.constant 0 : index
    %369 = vector.load %arg2[%c5_346, %c0_347, %c0_348] : memref<9x1x256xf32, #tpu.memory_space<vmem>>, vector<1x1x256xf32>
    %370 = vector.shape_cast %369 : vector<1x1x256xf32> to vector<1x256xf32>
    %371 = vector.broadcast %370 : vector<1x256xf32> to vector<16x256xf32>
    %372 = arith.mulf %368, %371 : vector<16x256xf32>
    %373 = arith.truncf %372 : vector<16x256xf32> to vector<16x256xbf16>
    %c80_349 = arith.constant 80 : index
    %c0_350 = arith.constant 0 : index
    %374 = vector.load %arg15[%c80_349, %c0_350] : memref<144x256xbf16, #tpu.memory_space<vmem>>, vector<16x256xbf16>
    tpu.vector_store %arg15[%c80_349, %c0_350], %373 {strides = array<i32>} : memref<144x256xbf16, #tpu.memory_space<vmem>>, vector<16x256xbf16>,
    %c0_351 = arith.constant 0 : index
    %c143_352 = arith.constant 143 : index
    %375 = vector.load %arg14[%c0_351, %c143_352] : memref<16x512xf32, #tpu.memory_space<vmem>>, vector<16x256xf32>
    %c6_353 = arith.constant 6 : index
    %c0_354 = arith.constant 0 : index
    %c0_355 = arith.constant 0 : index
    %376 = vector.load %arg2[%c6_353, %c0_354, %c0_355] : memref<9x1x256xf32, #tpu.memory_space<vmem>>, vector<1x1x256xf32>
    %377 = vector.shape_cast %376 : vector<1x1x256xf32> to vector<1x256xf32>
    %378 = vector.broadcast %377 : vector<1x256xf32> to vector<16x256xf32>
    %379 = arith.mulf %375, %378 : vector<16x256xf32>
    %380 = arith.truncf %379 : vector<16x256xf32> to vector<16x256xbf16>
    %c96_356 = arith.constant 96 : index
    %c0_357 = arith.constant 0 : index
    %381 = vector.load %arg15[%c96_356, %c0_357] : memref<144x256xbf16, #tpu.memory_space<vmem>>, vector<16x256xbf16>
    tpu.vector_store %arg15[%c96_356, %c0_357], %380 {strides = array<i32>} : memref<144x256xbf16, #tpu.memory_space<vmem>>, vector<16x256xbf16>,
    %c0_358 = arith.constant 0 : index
    %c144_359 = arith.constant 144 : index
    %382 = vector.load %arg14[%c0_358, %c144_359] : memref<16x512xf32, #tpu.memory_space<vmem>>, vector<16x256xf32>
    %c7_360 = arith.constant 7 : index
    %c0_361 = arith.constant 0 : index
    %c0_362 = arith.constant 0 : index
    %383 = vector.load %arg2[%c7_360, %c0_361, %c0_362] : memref<9x1x256xf32, #tpu.memory_space<vmem>>, vector<1x1x256xf32>
    %384 = vector.shape_cast %383 : vector<1x1x256xf32> to vector<1x256xf32>
    %385 = vector.broadcast %384 : vector<1x256xf32> to vector<16x256xf32>
    %386 = arith.mulf %382, %385 : vector<16x256xf32>
    %387 = arith.truncf %386 : vector<16x256xf32> to vector<16x256xbf16>
    %c112_363 = arith.constant 112 : index
    %c0_364 = arith.constant 0 : index
    %388 = vector.load %arg15[%c112_363, %c0_364] : memref<144x256xbf16, #tpu.memory_space<vmem>>, vector<16x256xbf16>
    tpu.vector_store %arg15[%c112_363, %c0_364], %387 {strides = array<i32>} : memref<144x256xbf16, #tpu.memory_space<vmem>>, vector<16x256xbf16>,
    %c0_365 = arith.constant 0 : index
    %c145_366 = arith.constant 145 : index
    %389 = vector.load %arg14[%c0_365, %c145_366] : memref<16x512xf32, #tpu.memory_space<vmem>>, vector<16x256xf32>
    %c8_367 = arith.constant 8 : index
    %c0_368 = arith.constant 0 : index
    %c0_369 = arith.constant 0 : index
    %390 = vector.load %arg2[%c8_367, %c0_368, %c0_369] : memref<9x1x256xf32, #tpu.memory_space<vmem>>, vector<1x1x256xf32>
    %391 = vector.shape_cast %390 : vector<1x1x256xf32> to vector<1x256xf32>
    %392 = vector.broadcast %391 : vector<1x256xf32> to vector<16x256xf32>
    %393 = arith.mulf %389, %392 : vector<16x256xf32>
    %394 = arith.truncf %393 : vector<16x256xf32> to vector<16x256xbf16>
    %c128_370 = arith.constant 128 : index
    %c0_371 = arith.constant 0 : index
    %395 = vector.load %arg15[%c128_370, %c0_371] : memref<144x256xbf16, #tpu.memory_space<vmem>>, vector<16x256xbf16>
    tpu.vector_store %arg15[%c128_370, %c0_371], %394 {strides = array<i32>} : memref<144x256xbf16, #tpu.memory_space<vmem>>, vector<16x256xbf16>,
    %c0_372 = arith.constant 0 : index
    %c0_373 = arith.constant 0 : index
    %396 = vector.load %arg15[%c0_372, %c0_373] : memref<144x256xbf16, #tpu.memory_space<vmem>>, vector<144x256xbf16>
    %cst_374 = arith.constant dense<0.000000e+00> : vector<16x256xf32>
    %397 = tpu.matmul %334, %396, %cst_374 {dimension_numbers = #tpu.dot_dimension_numbers<[1], [0], [0], [1], [0, 0, 1, 1], [], []>} : vector<16x144xbf16>, vector<144x256xbf16>, vector<16x256xf32> -> vector<16x256xf32>
    %398 = vector.broadcast %335 : vector<16x1xf32> to vector<16x256xf32>
    %399 = arith.addf %397, %398 : vector<16x256xf32>
    %400 = arith.addf %399, %1 : vector<16x256xf32>
    %c0_375 = arith.constant 0 : index
    %c0_376 = arith.constant 0 : index
    %c0_377 = arith.constant 0 : index
    %401 = vector.load %arg13[%c0_375, %c0_376, %c0_377] : memref<1x16x256xf32, #tpu.memory_space<vmem>>, vector<1x16x256xf32>
    %402 = vector.shape_cast %401 : vector<1x16x256xf32> to vector<16x256xf32>
    %403 = vector.shape_cast %400 : vector<16x256xf32> to vector<1x16x256xf32>
    tpu.vector_store %arg13[%c0_375, %c0_376, %c0_377], %403 {strides = array<i32>} : memref<1x16x256xf32, #tpu.memory_space<vmem>>, vector<1x16x256xf32>,
    return
  }
  func.func @transform_0(%arg0: i32) -> (i32, i32, i32) {
    %c0_i32 = arith.constant 0 : i32
    %c0_i32_0 = arith.constant 0 : i32
    %c0_i32_1 = arith.constant 0 : i32
    return %arg0, %c0_i32, %c0_i32_0 : i32, i32, i32
  }
  func.func @transform_1(%arg0: i32) -> (i32, i32, i32) {
    %c0_i32 = arith.constant 0 : i32
    %c0_i32_0 = arith.constant 0 : i32
    %c0_i32_1 = arith.constant 0 : i32
    %c0_i32_2 = arith.constant 0 : i32
    return %c0_i32, %c0_i32_0, %c0_i32_1 : i32, i32, i32
  }
  func.func @transform_2(%arg0: i32) -> (i32, i32, i32) {
    %c0_i32 = arith.constant 0 : i32
    %c0_i32_0 = arith.constant 0 : i32
    %c0_i32_1 = arith.constant 0 : i32
    %c0_i32_2 = arith.constant 0 : i32
    return %c0_i32, %c0_i32_0, %c0_i32_1 : i32, i32, i32
  }
  func.func @transform_3(%arg0: i32) -> (i32, i32, i32) {
    %c0_i32 = arith.constant 0 : i32
    %c0_i32_0 = arith.constant 0 : i32
    %c0_i32_1 = arith.constant 0 : i32
    %c0_i32_2 = arith.constant 0 : i32
    return %c0_i32, %c0_i32_0, %c0_i32_1 : i32, i32, i32
  }
  func.func @transform_4(%arg0: i32) -> (i32, i32, i32) {
    %c0_i32 = arith.constant 0 : i32
    %c0_i32_0 = arith.constant 0 : i32
    %c0_i32_1 = arith.constant 0 : i32
    %c0_i32_2 = arith.constant 0 : i32
    return %c0_i32, %c0_i32_0, %c0_i32_1 : i32, i32, i32
  }
  func.func @transform_5(%arg0: i32) -> (i32, i32, i32) {
    %c0_i32 = arith.constant 0 : i32
    %c0_i32_0 = arith.constant 0 : i32
    %c0_i32_1 = arith.constant 0 : i32
    %c0_i32_2 = arith.constant 0 : i32
    return %c0_i32, %c0_i32_0, %c0_i32_1 : i32, i32, i32
  }
  func.func @transform_6(%arg0: i32) -> (i32, i32, i32) {
    %c0_i32 = arith.constant 0 : i32
    %c0_i32_0 = arith.constant 0 : i32
    %c0_i32_1 = arith.constant 0 : i32
    %c0_i32_2 = arith.constant 0 : i32
    return %c0_i32, %c0_i32_0, %c0_i32_1 : i32, i32, i32
  }
  func.func @transform_7(%arg0: i32) -> (i32, i32, i32) {
    %c0_i32 = arith.constant 0 : i32
    %c0_i32_0 = arith.constant 0 : i32
    %c0_i32_1 = arith.constant 0 : i32
    %c0_i32_2 = arith.constant 0 : i32
    return %c0_i32, %c0_i32_0, %c0_i32_1 : i32, i32, i32
  }
  func.func @transform_8(%arg0: i32) -> (i32, i32, i32) {
    %c0_i32 = arith.constant 0 : i32
    %c0_i32_0 = arith.constant 0 : i32
    %c0_i32_1 = arith.constant 0 : i32
    %c0_i32_2 = arith.constant 0 : i32
    return %c0_i32, %c0_i32_0, %c0_i32_1 : i32, i32, i32
  }
  func.func @transform_9(%arg0: i32) -> (i32, i32, i32) {
    %c0_i32 = arith.constant 0 : i32
    %c0_i32_0 = arith.constant 0 : i32
    %c0_i32_1 = arith.constant 0 : i32
    %c0_i32_2 = arith.constant 0 : i32
    return %c0_i32, %c0_i32_0, %c0_i32_1 : i32, i32, i32
  }
  func.func @transform_10(%arg0: i32) -> (i32, i32) {
    %c0_i32 = arith.constant 0 : i32
    %c0_i32_0 = arith.constant 0 : i32
    %c0_i32_1 = arith.constant 0 : i32
    return %c0_i32, %c0_i32_0 : i32, i32
  }
  func.func @transform_11(%arg0: i32) -> (i32, i32) {
    %c0_i32 = arith.constant 0 : i32
    %c0_i32_0 = arith.constant 0 : i32
    %c0_i32_1 = arith.constant 0 : i32
    return %c0_i32, %c0_i32_0 : i32, i32
  }
  func.func @transform_12(%arg0: i32) -> (i32, i32, i32) {
    %c0_i32 = arith.constant 0 : i32
    %c0_i32_0 = arith.constant 0 : i32
    %c0_i32_1 = arith.constant 0 : i32
    return %arg0, %c0_i32, %c0_i32_0 : i32, i32, i32
  }
}

</mosaic_0001>

<llo_original>
// kernel: tpu_custom_call.1
$region0: #{tpu_custom_call.1}
  #allocation0 [shape = 'u32[]', space=smem, size = 0x4, offset = 0x4, fixed_abs, tag = 'smem constant byte address 0x4 - core index']
  #allocation1 [shape = 'u32[144,128]{1,0:T(1,128)}', space=vmem, size = 0x12000, scoped, tag = 'internal scratch']
  #allocation2 [shape = 'f32[16,512]{1,0:T(8,128)}', space=vmem, size = 0x8000, scoped, tag = 'scratch operand']
  #allocation3 [shape = 'bf16[144,256]{1,0:T(16,128)(2,1)}', space=vmem, size = 0x12000, scoped, tag = 'scratch operand']
  %s0 = inlined_call_operand.vmem [shape: f32[2,16,256], index: 0, kind: input, shape index: {}]
  %s1 = inlined_call_operand.vmem [shape: f32[9,1,256], index: 1, kind: input, shape index: {}]
  %s2 = inlined_call_operand.vmem [shape: bf16[2,16,144], index: 2, kind: input, shape index: {}]
  %s3 = inlined_call_operand.vmem [shape: f32[2,16,1], index: 3, kind: input, shape index: {}]
  %s4 = inlined_call_operand.vmem [shape: bf16[2,16,144], index: 4, kind: input, shape index: {}]
  %s5 = inlined_call_operand.vmem [shape: f32[2,16,1], index: 5, kind: input, shape index: {}]
  %s6 = inlined_call_operand.vmem [shape: f32[2,4,16], index: 6, kind: input, shape index: {}]
  %s7 = inlined_call_operand.vmem [shape: f32[2,4,1], index: 7, kind: input, shape index: {}]
  %s8 = inlined_call_operand.vmem [shape: f32[2,16,4], index: 8, kind: input, shape index: {}]
  %s9 = inlined_call_operand.vmem [shape: f32[2,16,1], index: 9, kind: input, shape index: {}]
  %s10 = inlined_call_operand.vmem [shape: bf16[16,144], index: 10, kind: input, shape index: {}]
  %s11 = inlined_call_operand.vmem [shape: f32[16,1], index: 11, kind: input, shape index: {}]
  %s12 = inlined_call_operand.hbm [shape: f32[2,16,256], index: 12, kind: output, shape index: {}]
  %s13 = sld [smem:[#allocation0]]
  $region81: #{tpu_custom_call.1} parent=0
    _
  %s15 = ssub.s32 1, %s13
  %s16 = scalar_select 0, %s15, %s13
  $region1: #{tpu_custom_call.1} parent=0
    #allocation4 [shape = 'u8[32768]{0}', space=vmem, size = 0x8000, scoped, tag = 'output window, operand 0']
    #allocation5 [shape = 's32[2]{0}', space=sflag, size = 0x8, scoped, tag = 'scoped memory for tpu_custom_call.1']
    %17 = vsyncpa [#allocation5], 0
    %s18 = scalar_lea.sflag [#allocation5], 1
    %19 = vsyncpa %s18, 0
    loop: start=0, step=1, limit=4
    $region2: #{tpu_custom_call.1} parent=1 // loop_pre_header
      _
    $region3: #{tpu_custom_call.1} parent=1 // loop_header
      %s21 = sphi 0, %s25
      %p22 = scmp.ge.s32.totalorder %s21, 4
      %s31 = sphi 0, %s33
      %s34 = sphi 0, %s31
      %s35 = sphi 0, %s34
      %s51 = sphi 0, %s35
      %s55 = sphi 0, %s55
      %s57 = sphi 0, %s55
      %s58 = sphi 0, %s57
      %s72 = sphi 0, %s58
      %s76 = sphi 0, %s76
      %s78 = sphi 0, %s76
      %s79 = sphi 0, %s78
      %s93 = sphi 0, %s79
      %s97 = sphi 0, %s97
      %s99 = sphi 0, %s97
      %s100 = sphi 0, %s99
      %s114 = sphi 0, %s100
      %s118 = sphi 0, %s118
      %s120 = sphi 0, %s118
      %s121 = sphi 0, %s120
      %s135 = sphi 0, %s121
      %s139 = sphi 0, %s139
      %s141 = sphi 0, %s139
      %s142 = sphi 0, %s141
      %s156 = sphi 0, %s142
      %s160 = sphi 0, %s160
      %s162 = sphi 0, %s160
      %s163 = sphi 0, %s162
      %s177 = sphi 0, %s163
      %s181 = sphi 0, %s181
      %s183 = sphi 0, %s181
      %s184 = sphi 0, %s183
      %s198 = sphi 0, %s184
      %s202 = sphi 0, %s202
      %s204 = sphi 0, %s202
      %s205 = sphi 0, %s204
      %s219 = sphi 0, %s205
      %s223 = sphi 0, %s223
      %s225 = sphi 0, %s223
      %s226 = sphi 0, %s225
      %s240 = sphi 0, %s226
      %s244 = sphi 0, %s244
      %s246 = sphi 0, %s244
      %s247 = sphi 0, %s246
      %s261 = sphi 0, %s247
      %s265 = sphi 0, %s265
      %s267 = sphi 0, %s265
      %s268 = sphi 0, %s267
      %s282 = sphi 0, %s268
      %s288 = sphi 0, %s290
      %s291 = sphi 0, %s288
      %s292 = sphi 0, %s291
      %s308 = sphi 0, %s292
    $region4: #{tpu_custom_call.1} parent=1 // loop_header_branch
      %24 = sbr.rel (%p22) target = $region8
    $region5: #{tpu_custom_call.1} parent=1 // loop_body
      %s26 = ssub.s32 %s21, 1
      %s27 = ssub.s32 %s21, 2
      %s28 = sadd.s32 %s21, 1
      %s29 = ssub.s32 %s21, %s28
      %p30 = scmp.eq.s32.totalorder %s29, 0
      %s32 = sadd.s32 %s31, 1
      %s33 = scalar_select %p30, %s31, %s32
      %p36 = pneg %p30
      %p37 = scmp.eq.s32.totalorder %s21, 1
      %p38 = por %p36, %p37
      %p39 = scmp.ne.s32.totalorder %s31, %s34
      %p40 = scmp.eq.s32.totalorder %s21, 0
      %p41 = por %p39, %p40
      %p42 = scmp.ne.s32.totalorder %s31, %s34
      %p43 = scmp.eq.s32.totalorder %s26, 1
      %p44 = por %p42, %p43
      %p45 = scmp.ne.s32.totalorder %s34, %s35
      %p46 = scmp.eq.s32.totalorder %s26, 0
      %p47 = por %p45, %p46
      %p48 = scmp.ne.s32.totalorder %s34, %s35
      %p49 = scmp.eq.s32.totalorder %s27, 1
      %p50 = por %p48, %p49
      %p52 = scmp.ne.s32.totalorder %s35, %s51
      %p53 = scmp.eq.s32.totalorder %s27, 0
      %p54 = por %p52, %p53
      %s56 = sadd.s32 %s55, 1
      %p59 = scmp.eq.s32.totalorder %s21, 1
      %p60 = scmp.ne.s32.totalorder %s55, %s57
      %p61 = scmp.eq.s32.totalorder %s21, 0
      %p62 = por %p60, %p61
      %p63 = scmp.ne.s32.totalorder %s55, %s57
      %p64 = scmp.eq.s32.totalorder %s26, 1
      %p65 = por %p63, %p64
      %p66 = scmp.ne.s32.totalorder %s57, %s58
      %p67 = scmp.eq.s32.totalorder %s26, 0
      %p68 = por %p66, %p67
      %p69 = scmp.ne.s32.totalorder %s57, %s58
      %p70 = scmp.eq.s32.totalorder %s27, 1
      %p71 = por %p69, %p70
      %p73 = scmp.ne.s32.totalorder %s58, %s72
      %p74 = scmp.eq.s32.totalorder %s27, 0
      %p75 = por %p73, %p74
      %s77 = sadd.s32 %s76, 1
      %p80 = scmp.eq.s32.totalorder %s21, 1
      %p81 = scmp.ne.s32.totalorder %s76, %s78
      %p82 = scmp.eq.s32.totalorder %s21, 0
      %p83 = por %p81, %p82
      %p84 = scmp.ne.s32.totalorder %s76, %s78
      %p85 = scmp.eq.s32.totalorder %s26, 1
      %p86 = por %p84, %p85
      %p87 = scmp.ne.s32.totalorder %s78, %s79
      %p88 = scmp.eq.s32.totalorder %s26, 0
      %p89 = por %p87, %p88
      %p90 = scmp.ne.s32.totalorder %s78, %s79
      %p91 = scmp.eq.s32.totalorder %s27, 1
      %p92 = por %p90, %p91
      %p94 = scmp.ne.s32.totalorder %s79, %s93
      %p95 = scmp.eq.s32.totalorder %s27, 0
      %p96 = por %p94, %p95
      %s98 = sadd.s32 %s97, 1
      %p101 = scmp.eq.s32.totalorder %s21, 1
      %p102 = scmp.ne.s32.totalorder %s97, %s99
      %p103 = scmp.eq.s32.totalorder %s21, 0
      %p104 = por %p102, %p103
      %p105 = scmp.ne.s32.totalorder %s97, %s99
      %p106 = scmp.eq.s32.totalorder %s26, 1
      %p107 = por %p105, %p106
      %p108 = scmp.ne.s32.totalorder %s99, %s100
      %p109 = scmp.eq.s32.totalorder %s26, 0
      %p110 = por %p108, %p109
      %p111 = scmp.ne.s32.totalorder %s99, %s100
      %p112 = scmp.eq.s32.totalorder %s27, 1
      %p113 = por %p111, %p112
      %p115 = scmp.ne.s32.totalorder %s100, %s114
      %p116 = scmp.eq.s32.totalorder %s27, 0
      %p117 = por %p115, %p116
      %s119 = sadd.s32 %s118, 1
      %p122 = scmp.eq.s32.totalorder %s21, 1
      %p123 = scmp.ne.s32.totalorder %s118, %s120
      %p124 = scmp.eq.s32.totalorder %s21, 0
      %p125 = por %p123, %p124
      %p126 = scmp.ne.s32.totalorder %s118, %s120
      %p127 = scmp.eq.s32.totalorder %s26, 1
      %p128 = por %p126, %p127
      %p129 = scmp.ne.s32.totalorder %s120, %s121
      %p130 = scmp.eq.s32.totalorder %s26, 0
      %p131 = por %p129, %p130
      %p132 = scmp.ne.s32.totalorder %s120, %s121
      %p133 = scmp.eq.s32.totalorder %s27, 1
      %p134 = por %p132, %p133
      %p136 = scmp.ne.s32.totalorder %s121, %s135
      %p137 = scmp.eq.s32.totalorder %s27, 0
      %p138 = por %p136, %p137
      %s140 = sadd.s32 %s139, 1
      %p143 = scmp.eq.s32.totalorder %s21, 1
      %p144 = scmp.ne.s32.totalorder %s139, %s141
      %p145 = scmp.eq.s32.totalorder %s21, 0
      %p146 = por %p144, %p145
      %p147 = scmp.ne.s32.totalorder %s139, %s141
      %p148 = scmp.eq.s32.totalorder %s26, 1
      %p149 = por %p147, %p148
      %p150 = scmp.ne.s32.totalorder %s141, %s142
      %p151 = scmp.eq.s32.totalorder %s26, 0
      %p152 = por %p150, %p151
      %p153 = scmp.ne.s32.totalorder %s141, %s142
      %p154 = scmp.eq.s32.totalorder %s27, 1
      %p155 = por %p153, %p154
      %p157 = scmp.ne.s32.totalorder %s142, %s156
      %p158 = scmp.eq.s32.totalorder %s27, 0
      %p159 = por %p157, %p158
      %s161 = sadd.s32 %s160, 1
      %p164 = scmp.eq.s32.totalorder %s21, 1
      %p165 = scmp.ne.s32.totalorder %s160, %s162
      %p166 = scmp.eq.s32.totalorder %s21, 0
      %p167 = por %p165, %p166
      %p168 = scmp.ne.s32.totalorder %s160, %s162
      %p169 = scmp.eq.s32.totalorder %s26, 1
      %p170 = por %p168, %p169
      %p171 = scmp.ne.s32.totalorder %s162, %s163
      %p172 = scmp.eq.s32.totalorder %s26, 0
      %p173 = por %p171, %p172
      %p174 = scmp.ne.s32.totalorder %s162, %s163
      %p175 = scmp.eq.s32.totalorder %s27, 1
      %p176 = por %p174, %p175
      %p178 = scmp.ne.s32.totalorder %s163, %s177
      %p179 = scmp.eq.s32.totalorder %s27, 0
      %p180 = por %p178, %p179
      %s182 = sadd.s32 %s181, 1
      %p185 = scmp.eq.s32.totalorder %s21, 1
      %p186 = scmp.ne.s32.totalorder %s181, %s183
      %p187 = scmp.eq.s32.totalorder %s21, 0
      %p188 = por %p186, %p187
      %p189 = scmp.ne.s32.totalorder %s181, %s183
      %p190 = scmp.eq.s32.totalorder %s26, 1
      %p191 = por %p189, %p190
      %p192 = scmp.ne.s32.totalorder %s183, %s184
      %p193 = scmp.eq.s32.totalorder %s26, 0
      %p194 = por %p192, %p193
      %p195 = scmp.ne.s32.totalorder %s183, %s184
      %p196 = scmp.eq.s32.totalorder %s27, 1
      %p197 = por %p195, %p196
      %p199 = scmp.ne.s32.totalorder %s184, %s198
      %p200 = scmp.eq.s32.totalorder %s27, 0
      %p201 = por %p199, %p200
      %s203 = sadd.s32 %s202, 1
      %p206 = scmp.eq.s32.totalorder %s21, 1
      %p207 = scmp.ne.s32.totalorder %s202, %s204
      %p208 = scmp.eq.s32.totalorder %s21, 0
      %p209 = por %p207, %p208
      %p210 = scmp.ne.s32.totalorder %s202, %s204
      %p211 = scmp.eq.s32.totalorder %s26, 1
      %p212 = por %p210, %p211
      %p213 = scmp.ne.s32.totalorder %s204, %s205
      %p214 = scmp.eq.s32.totalorder %s26, 0
      %p215 = por %p213, %p214
      %p216 = scmp.ne.s32.totalorder %s204, %s205
      %p217 = scmp.eq.s32.totalorder %s27, 1
      %p218 = por %p216, %p217
      %p220 = scmp.ne.s32.totalorder %s205, %s219
      %p221 = scmp.eq.s32.totalorder %s27, 0
      %p222 = por %p220, %p221
      %s224 = sadd.s32 %s223, 1
      %p227 = scmp.eq.s32.totalorder %s21, 1
      %p228 = scmp.ne.s32.totalorder %s223, %s225
      %p229 = scmp.eq.s32.totalorder %s21, 0
      %p230 = por %p228, %p229
      %p231 = scmp.ne.s32.totalorder %s223, %s225
      %p232 = scmp.eq.s32.totalorder %s26, 1
      %p233 = por %p231, %p232
      %p234 = scmp.ne.s32.totalorder %s225, %s226
      %p235 = scmp.eq.s32.totalorder %s26, 0
      %p236 = por %p234, %p235
      %p237 = scmp.ne.s32.totalorder %s225, %s226
      %p238 = scmp.eq.s32.totalorder %s27, 1
      %p239 = por %p237, %p238
      %p241 = scmp.ne.s32.totalorder %s226, %s240
      %p242 = scmp.eq.s32.totalorder %s27, 0
      %p243 = por %p241, %p242
      %s245 = sadd.s32 %s244, 1
      %p248 = scmp.eq.s32.totalorder %s21, 1
      %p249 = scmp.ne.s32.totalorder %s244, %s246
      %p250 = scmp.eq.s32.totalorder %s21, 0
      %p251 = por %p249, %p250
      %p252 = scmp.ne.s32.totalorder %s244, %s246
      %p253 = scmp.eq.s32.totalorder %s26, 1
      %p254 = por %p252, %p253
      %p255 = scmp.ne.s32.totalorder %s246, %s247
      %p256 = scmp.eq.s32.totalorder %s26, 0
      %p257 = por %p255, %p256
      %p258 = scmp.ne.s32.totalorder %s246, %s247
      %p259 = scmp.eq.s32.totalorder %s27, 1
      %p260 = por %p258, %p259
      %p262 = scmp.ne.s32.totalorder %s247, %s261
      %p263 = scmp.eq.s32.totalorder %s27, 0
      %p264 = por %p262, %p263
      %s266 = sadd.s32 %s265, 1
      %p269 = scmp.eq.s32.totalorder %s21, 1
      %p270 = scmp.ne.s32.totalorder %s265, %s267
      %p271 = scmp.eq.s32.totalorder %s21, 0
      %p272 = por %p270, %p271
      %p273 = scmp.ne.s32.totalorder %s265, %s267
      %p274 = scmp.eq.s32.totalorder %s26, 1
      %p275 = por %p273, %p274
      %p276 = scmp.ne.s32.totalorder %s267, %s268
      %p277 = scmp.eq.s32.totalorder %s26, 0
      %p278 = por %p276, %p277
      %p279 = scmp.ne.s32.totalorder %s267, %s268
      %p280 = scmp.eq.s32.totalorder %s27, 1
      %p281 = por %p279, %p280
      %p283 = scmp.ne.s32.totalorder %s268, %s282
      %p284 = scmp.eq.s32.totalorder %s27, 0
      %p285 = por %p283, %p284
      %s286 = ssub.s32 %s21, %s28
      %p287 = scmp.eq.s32.totalorder %s286, 0
      %s289 = sadd.s32 %s288, 1
      %s290 = scalar_select %p287, %s288, %s289
      %p293 = pneg %p287
      %p294 = scmp.eq.s32.totalorder %s21, 1
      %p295 = por %p293, %p294
      %p296 = scmp.ne.s32.totalorder %s288, %s291
      %p297 = scmp.eq.s32.totalorder %s21, 0
      %p298 = por %p296, %p297
      %p299 = scmp.ne.s32.totalorder %s288, %s291
      %p300 = scmp.eq.s32.totalorder %s26, 1
      %p301 = por %p299, %p300
      %p302 = scmp.ne.s32.totalorder %s291, %s292
      %p303 = scmp.eq.s32.totalorder %s26, 0
      %p304 = por %p302, %p303
      %p305 = scmp.ne.s32.totalorder %s291, %s292
      %p306 = scmp.eq.s32.totalorder %s27, 1
      %p307 = por %p305, %p306
      %p309 = scmp.ne.s32.totalorder %s292, %s308
      %p310 = scmp.eq.s32.totalorder %s27, 0
      %p311 = por %p309, %p310
      %p312 = scmp.le.s32.totalorder 1, %s21
      %p313 = scmp.lt.s32.totalorder %s21, 3
      %p314 = pnand %p312, %p313
      %p315 = pneg %p314
      // Predicated region
      $region9: #{tpu_custom_call.1} parent=5 // pred_check
        _
      $region10: #{tpu_custom_call.1} parent=5 // pred_check_branch
        %317 = sbr.rel (%p314) target = $region12
      $region11: #{tpu_custom_call.1} parent=5 // pred_region
        %s318 = ssub.s32 %s21, 1
        // Predicated region
        $region13: #{tpu_custom_call.1} parent=11 // pred_check
          %p319 = pneg %p68
        $region14: #{tpu_custom_call.1} parent=11 // pred_check_branch
          %321 = sbr.rel (%p319) target = $region16
        $region15: #{tpu_custom_call.1} parent=11 // pred_region
          _
        $region16: #{tpu_custom_call.1} parent=11 // pred_fallthru
          _
        // Predicated region
        $region17: #{tpu_custom_call.1} parent=11 // pred_check
          %p322 = pneg %p89
        $region18: #{tpu_custom_call.1} parent=11 // pred_check_branch
          %324 = sbr.rel (%p322) target = $region20
        $region19: #{tpu_custom_call.1} parent=11 // pred_region
          _
        $region20: #{tpu_custom_call.1} parent=11 // pred_fallthru
          _
        // Predicated region
        $region21: #{tpu_custom_call.1} parent=11 // pred_check
          %p325 = pneg %p110
        $region22: #{tpu_custom_call.1} parent=11 // pred_check_branch
          %327 = sbr.rel (%p325) target = $region24
        $region23: #{tpu_custom_call.1} parent=11 // pred_region
          _
        $region24: #{tpu_custom_call.1} parent=11 // pred_fallthru
          _
        // Predicated region
        $region25: #{tpu_custom_call.1} parent=11 // pred_check
          %p328 = pneg %p131
        $region26: #{tpu_custom_call.1} parent=11 // pred_check_branch
          %330 = sbr.rel (%p328) target = $region28
        $region27: #{tpu_custom_call.1} parent=11 // pred_region
          _
        $region28: #{tpu_custom_call.1} parent=11 // pred_fallthru
          _
        // Predicated region
        $region29: #{tpu_custom_call.1} parent=11 // pred_check
          %p331 = pneg %p152
        $region30: #{tpu_custom_call.1} parent=11 // pred_check_branch
          %333 = sbr.rel (%p331) target = $region32
        $region31: #{tpu_custom_call.1} parent=11 // pred_region
          _
        $region32: #{tpu_custom_call.1} parent=11 // pred_fallthru
          _
        // Predicated region
        $region33: #{tpu_custom_call.1} parent=11 // pred_check
          %p334 = pneg %p173
        $region34: #{tpu_custom_call.1} parent=11 // pred_check_branch
          %336 = sbr.rel (%p334) target = $region36
        $region35: #{tpu_custom_call.1} parent=11 // pred_region
          _
        $region36: #{tpu_custom_call.1} parent=11 // pred_fallthru
          _
        // Predicated region
        $region37: #{tpu_custom_call.1} parent=11 // pred_check
          %p337 = pneg %p194
        $region38: #{tpu_custom_call.1} parent=11 // pred_check_branch
          %339 = sbr.rel (%p337) target = $region40
        $region39: #{tpu_custom_call.1} parent=11 // pred_region
          _
        $region40: #{tpu_custom_call.1} parent=11 // pred_fallthru
          _
        // Predicated region
        $region41: #{tpu_custom_call.1} parent=11 // pred_check
          %p340 = pneg %p215
        $region42: #{tpu_custom_call.1} parent=11 // pred_check_branch
          %342 = sbr.rel (%p340) target = $region44
        $region43: #{tpu_custom_call.1} parent=11 // pred_region
          _
        $region44: #{tpu_custom_call.1} parent=11 // pred_fallthru
          _
        // Predicated region
        $region45: #{tpu_custom_call.1} parent=11 // pred_check
          %p343 = pneg %p236
        $region46: #{tpu_custom_call.1} parent=11 // pred_check_branch
          %345 = sbr.rel (%p343) target = $region48
        $region47: #{tpu_custom_call.1} parent=11 // pred_region
          _
        $region48: #{tpu_custom_call.1} parent=11 // pred_fallthru
          _
        // Predicated region
        $region49: #{tpu_custom_call.1} parent=11 // pred_check
          %p346 = pneg %p257
        $region50: #{tpu_custom_call.1} parent=11 // pred_check_branch
          %348 = sbr.rel (%p346) target = $region52
        $region51: #{tpu_custom_call.1} parent=11 // pred_region
          _
        $region52: #{tpu_custom_call.1} parent=11 // pred_fallthru
          _
        // Predicated region
        $region53: #{tpu_custom_call.1} parent=11 // pred_check
          %p349 = pneg %p278
        $region54: #{tpu_custom_call.1} parent=11 // pred_check_branch
          %351 = sbr.rel (%p349) target = $region56
        $region55: #{tpu_custom_call.1} parent=11 // pred_region
          _
        $region56: #{tpu_custom_call.1} parent=11 // pred_fallthru
          _
      $region12: #{tpu_custom_call.1} parent=5 // pred_fallthru
        _
      %p352 = scmp.lt.s32.totalorder %s21, 2
      // Predicated region
      $region57: #{tpu_custom_call.1} parent=5 // pred_check
        %p353 = pneg %p352
      $region58: #{tpu_custom_call.1} parent=5 // pred_check_branch
        %355 = sbr.rel (%p353) target = $region60
      $region59: #{tpu_custom_call.1} parent=5 // pred_region
        // Predicated region
        $region61: #{tpu_custom_call.1} parent=59 // pred_check
          %p356 = pneg %p41
        $region62: #{tpu_custom_call.1} parent=59 // pred_check_branch
          %358 = sbr.rel (%p356) target = $region64
        $region63: #{tpu_custom_call.1} parent=59 // pred_region
          %p359 = scmp.lt.s32.totalorder %s21, 1
          %s360 = scalar_select %p359, %s21, 1
          %s361 = smul.addr %s360, 4
          %s362 = smul.addr %s361, 8
          %s363 = scalar_lea.vmem %s0, %s362
        $region64: #{tpu_custom_call.1} parent=59 // pred_fallthru
          _
      $region60: #{tpu_custom_call.1} parent=5 // pred_fallthru
        _
      %p364 = scmp.le.s32.totalorder 1, %s21
      %p365 = scmp.lt.s32.totalorder %s21, 3
      %p366 = pnand %p364, %p365
      %p367 = pneg %p366
      // Predicated region
      $region65: #{tpu_custom_call.1} parent=5 // pred_check
        _
      $region66: #{tpu_custom_call.1} parent=5 // pred_check_branch
        %369 = sbr.rel (%p366) target = $region68
      $region67: #{tpu_custom_call.1} parent=5 // pred_region
        %s370 = ssub.s32 %s21, 1
        %p371 = scmp.lt.s32.totalorder %s26, 1
        %s372 = scalar_select %p371, %s26, 1
        %s373 = smul.addr %s372, 4
        %s374 = smul.addr %s373, 8
        %s375 = scalar_lea.vmem %s0, %s374
        %p376 = pneg %p47
        %p377 = pneg %p44
        %p378 = pneg %p68
        %p379 = pneg %p65
        %p380 = pneg %p89
        %p381 = pneg %p86
        %p382 = pneg %p110
        %p383 = pneg %p107
        %p384 = pneg %p131
        %p385 = pneg %p128
        %p386 = pneg %p152
        %p387 = pneg %p149
        %p388 = pneg %p173
        %p389 = pneg %p170
        %p390 = pneg %p194
        %p391 = pneg %p191
        %p392 = pneg %p215
        %p393 = pneg %p212
        %p394 = pneg %p236
        %p395 = pneg %p233
        %p396 = pneg %p257
        %p397 = pneg %p254
        %p398 = pneg %p278
        %p399 = pneg %p275
        %p400 = pneg %p304
        %p401 = pneg %p301
        %s402 = sand.u32 %s291, 1
        %s403 = scalar_lea.sflag [#allocation5], %s402
        %s404 = sand.u32 %s291, 1
        %s405 = smul.addr %s404, 32
        %s406 = scalar_lea.vmem [#allocation4], %s405
        %p407 = scmp.lt.s32.totalorder %s26, 1
        %s408 = scalar_select %p407, %s26, 1
        %s409 = smul.addr %s408, 4
        %s410 = smul.addr %s409, 8
        %s411 = scalar_lea.vmem %s0, %s410
        %v413 = vld [vmem:[%s411] sm:$0xff]
        %v414 = vld [vmem:[%s411 + $0x8] sm:$0xff]
        %v415 = vld [vmem:[%s411 + $0x10] sm:$0xff]
        %v416 = vld [vmem:[%s411 + $0x18] sm:$0xff]
        %417 = vst [vmem:[#allocation2] sm:$0xff] 0.0
        %418 = vst [vmem:[#allocation2 + $0x8] sm:$0xff] 0.0
        %419 = vst [vmem:[#allocation2 + $0x10] sm:$0xff] 0.0
        %420 = vst [vmem:[#allocation2 + $0x18] sm:$0xff] 0.0
        %421 = vst [vmem:[#allocation2 + $0x20] sm:$0xff] 0.0
        %422 = vst [vmem:[#allocation2 + $0x28] sm:$0xff] 0.0
        %423 = vst [vmem:[#allocation2 + $0x30] sm:$0xff] 0.0
        %424 = vst [vmem:[#allocation2 + $0x38] sm:$0xff] 0.0
        %v425 = vld [vmem:[%s2] sm:$0xff]
        %v426 = vld [vmem:[%s2 + $0x8] sm:$0xff]
        %v427 = vld [vmem:[%s3] sm:$0xff]
        %v428 = vld [vmem:[%s3 + $0x8] sm:$0xff]
        %429 = vst [vmem:[#allocation2 + $0x8] sm:$0xff] %v413
        %430 = vst [vmem:[#allocation2 + $0x10] sm:$0xff] %v414
        %431 = vst [vmem:[#allocation2 + $0x28] sm:$0xff] %v415
        %432 = vst [vmem:[#allocation2 + $0x30] sm:$0xff] %v416
        %v433 = vld [vmem:[#allocation2] sm:$0xff]
        %v434 = vld [vmem:[#allocation2 + $0x8] sm:$0xff]
        %v435 = vld [vmem:[#allocation2 + $0x10] sm:$0xff]
        %v436 = vld [vmem:[#allocation2 + $0x20] sm:$0xff]
        %v437 = vld [vmem:[#allocation2 + $0x28] sm:$0xff]
        %v438 = vld [vmem:[#allocation2 + $0x30] sm:$0xff]
        %v439 = vld [vmem:[%s1] sm:$0x3]
        %v441 = vlaneseq
        %v442 = vshrl.u32 %v441, 7
        %v443 = vsub.s32 0, %v442
        %v444 = vrot.slane %v439, %v443
        %v445 = vlaneseq
        %v446 = vshrl.u32 %v445, 7
        %v447 = vsub.s32 1, %v446
        %v448 = vrot.slane %v439, %v447
        %449 = vrot.lane.b32.xlu0 %v444, 111
        %v450 = vpop.permute.xlu0 %449
        %451 = vrot.lane.b32.xlu0 %v448, 111
        %v452 = vpop.permute.xlu0 %451
        %vm453 = vcmask 908288
        %v454 = vsel %vm453, %v450, %v452
        %v458 = vmul.f32 %v433, %v450
        %v459 = vmul.f32 %v434, %v454
        %v460 = vmul.f32 %v435, %v452
        %v461 = vmul.f32 %v436, %v450
        %v462 = vmul.f32 %v437, %v454
        %v463 = vmul.f32 %v438, %v452
        %v464 = vpack.c.bf16 %v461, %v458
        %v465 = vpack.c.bf16 %v462, %v459
        %v466 = vpack.c.bf16 %v463, %v460
        %470 = vrot.lane.b32.xlu0 %v464, 17
        %v471 = vpop.permute.xlu0 %470
        %472 = vrot.lane.b32.xlu0 %v465, 17
        %v473 = vpop.permute.xlu0 %472
        %474 = vrot.lane.b32.xlu0 %v466, 17
        %v475 = vpop.permute.xlu0 %474
        %vm476 = vcmask 138240
        %v477 = vsel %vm476, %v471, %v473
        %v478 = vsel %vm476, %v473, %v475
        %481 = vst [vmem:[#allocation3] sm:$0xff] %v477
        %482 = vst [vmem:[#allocation3 + $0x8] sm:$0xff] %v478
        %v483 = vld [vmem:[#allocation2] sm:$0xff]
        %v484 = vld [vmem:[#allocation2 + $0x8] sm:$0xff]
        %v485 = vld [vmem:[#allocation2 + $0x10] sm:$0xff]
        %v486 = vld [vmem:[#allocation2 + $0x20] sm:$0xff]
        %v487 = vld [vmem:[#allocation2 + $0x28] sm:$0xff]
        %v488 = vld [vmem:[#allocation2 + $0x30] sm:$0xff]
        %s489 = scalar_lea.vmem %s1, 2
        %v490 = vld [vmem:[%s489] sm:$0x3]
        %v492 = vlaneseq
        %v493 = vshrl.u32 %v492, 7
        %v494 = vsub.s32 0, %v493
        %v495 = vrot.slane %v490, %v494
        %v496 = vlaneseq
        %v497 = vshrl.u32 %v496, 7
        %v498 = vsub.s32 1, %v497
        %v499 = vrot.slane %v490, %v498
        %500 = vrot.lane.b32.xlu0 %v495, 112
        %v501 = vpop.permute.xlu0 %500
        %502 = vrot.lane.b32.xlu0 %v499, 112
        %v503 = vpop.permute.xlu0 %502
        %vm504 = vcmask 916480
        %v505 = vsel %vm504, %v501, %v503
        %v509 = vmul.f32 %v483, %v501
        %v510 = vmul.f32 %v484, %v505
        %v511 = vmul.f32 %v485, %v503
        %v512 = vmul.f32 %v486, %v501
        %v513 = vmul.f32 %v487, %v505
        %v514 = vmul.f32 %v488, %v503
        %v515 = vpack.c.bf16 %v512, %v509
        %v516 = vpack.c.bf16 %v513, %v510
        %v517 = vpack.c.bf16 %v514, %v511
        %521 = vrot.lane.b32.xlu0 %v515, 16
        %v522 = vpop.permute.xlu0 %521
        %523 = vrot.lane.b32.xlu0 %v516, 16
        %v524 = vpop.permute.xlu0 %523
        %525 = vrot.lane.b32.xlu0 %v517, 16
        %v526 = vpop.permute.xlu0 %525
        %vm527 = vcmask 130048
        %v528 = vsel %vm527, %v522, %v524
        %v529 = vsel %vm527, %v524, %v526
        %532 = vst [vmem:[#allocation3 + $0x10] sm:$0xff] %v528
        %533 = vst [vmem:[#allocation3 + $0x18] sm:$0xff] %v529
        %v534 = vld [vmem:[#allocation2] sm:$0xff]
        %v535 = vld [vmem:[#allocation2 + $0x8] sm:$0xff]
        %v536 = vld [vmem:[#allocation2 + $0x10] sm:$0xff]
        %v537 = vld [vmem:[#allocation2 + $0x20] sm:$0xff]
        %v538 = vld [vmem:[#allocation2 + $0x28] sm:$0xff]
        %v539 = vld [vmem:[#allocation2 + $0x30] sm:$0xff]
        %s540 = scalar_lea.vmem %s1, 4
        %v541 = vld [vmem:[%s540] sm:$0x3]
        %v543 = vlaneseq
        %v544 = vshrl.u32 %v543, 7
        %v545 = vsub.s32 0, %v544
        %v546 = vrot.slane %v541, %v545
        %v547 = vlaneseq
        %v548 = vshrl.u32 %v547, 7
        %v549 = vsub.s32 1, %v548
        %v550 = vrot.slane %v541, %v549
        %551 = vrot.lane.b32.xlu0 %v546, 113
        %v552 = vpop.permute.xlu0 %551
        %553 = vrot.lane.b32.xlu0 %v550, 113
        %v554 = vpop.permute.xlu0 %553
        %vm555 = vcmask 924672
        %v556 = vsel %vm555, %v552, %v554
        %v560 = vmul.f32 %v534, %v552
        %v561 = vmul.f32 %v535, %v556
        %v562 = vmul.f32 %v536, %v554
        %v563 = vmul.f32 %v537, %v552
        %v564 = vmul.f32 %v538, %v556
        %v565 = vmul.f32 %v539, %v554
        %v566 = vpack.c.bf16 %v563, %v560
        %v567 = vpack.c.bf16 %v564, %v561
        %v568 = vpack.c.bf16 %v565, %v562
        %572 = vrot.lane.b32.xlu0 %v566, 15
        %v573 = vpop.permute.xlu0 %572
        %574 = vrot.lane.b32.xlu0 %v567, 15
        %v575 = vpop.permute.xlu0 %574
        %576 = vrot.lane.b32.xlu0 %v568, 15
        %v577 = vpop.permute.xlu0 %576
        %vm578 = vcmask 121856
        %v579 = vsel %vm578, %v573, %v575
        %v580 = vsel %vm578, %v575, %v577
        %583 = vst [vmem:[#allocation3 + $0x20] sm:$0xff] %v579
        %584 = vst [vmem:[#allocation3 + $0x28] sm:$0xff] %v580
        %v585 = vld [vmem:[#allocation2] sm:$0xff]
        %v586 = vld [vmem:[#allocation2 + $0x8] sm:$0xff]
        %v587 = vld [vmem:[#allocation2 + $0x10] sm:$0xff]
        %v588 = vld [vmem:[#allocation2 + $0x20] sm:$0xff]
        %v589 = vld [vmem:[#allocation2 + $0x28] sm:$0xff]
        %v590 = vld [vmem:[#allocation2 + $0x30] sm:$0xff]
        %s591 = scalar_lea.vmem %s1, 6
        %v592 = vld [vmem:[%s591] sm:$0x3]
        %v594 = vlaneseq
        %v595 = vshrl.u32 %v594, 7
        %v596 = vsub.s32 0, %v595
        %v597 = vrot.slane %v592, %v596
        %v598 = vlaneseq
        %v599 = vshrl.u32 %v598, 7
        %v600 = vsub.s32 1, %v599
        %v601 = vrot.slane %v592, %v600
        %602 = vrot.lane.b32.xlu0 %v597, 127
        %v603 = vpop.permute.xlu0 %602
        %604 = vrot.lane.b32.xlu0 %v601, 127
        %v605 = vpop.permute.xlu0 %604
        %vm606 = vcmask 1039360
        %v607 = vsel %vm606, %v603, %v605
        %v611 = vmul.f32 %v585, %v603
        %v612 = vmul.f32 %v586, %v607
        %v613 = vmul.f32 %v587, %v605
        %v614 = vmul.f32 %v588, %v603
        %v615 = vmul.f32 %v589, %v607
        %v616 = vmul.f32 %v590, %v605
        %v617 = vpack.c.bf16 %v614, %v611
        %v618 = vpack.c.bf16 %v615, %v612
        %v619 = vpack.c.bf16 %v616, %v613
        %623 = vrot.lane.b32.xlu0 %v617, 1
        %v624 = vpop.permute.xlu0 %623
        %625 = vrot.lane.b32.xlu0 %v618, 1
        %v626 = vpop.permute.xlu0 %625
        %627 = vrot.lane.b32.xlu0 %v619, 1
        %v628 = vpop.permute.xlu0 %627
        %vm629 = vcmask 7168
        %v630 = vsel %vm629, %v624, %v626
        %v631 = vsel %vm629, %v626, %v628
        %634 = vst [vmem:[#allocation3 + $0x30] sm:$0xff] %v630
        %635 = vst [vmem:[#allocation3 + $0x38] sm:$0xff] %v631
        %v636 = vld [vmem:[#allocation2 + $0x8] sm:$0xff]
        %v637 = vld [vmem:[#allocation2 + $0x10] sm:$0xff]
        %v638 = vld [vmem:[#allocation2 + $0x28] sm:$0xff]
        %v639 = vld [vmem:[#allocation2 + $0x30] sm:$0xff]
        %v640 = vpack.c.bf16 %v638, %v636
        %v641 = vpack.c.bf16 %v639, %v637
        %642 = vst [vmem:[#allocation3 + $0x40] sm:$0xff] %v640
        %643 = vst [vmem:[#allocation3 + $0x48] sm:$0xff] %v641
        %v644 = vld [vmem:[#allocation2 + $0x8] sm:$0xff]
        %v645 = vld [vmem:[#allocation2 + $0x10] sm:$0xff]
        %v646 = vld [vmem:[#allocation2 + $0x18] sm:$0xff]
        %v647 = vld [vmem:[#allocation2 + $0x28] sm:$0xff]
        %v648 = vld [vmem:[#allocation2 + $0x30] sm:$0xff]
        %v649 = vld [vmem:[#allocation2 + $0x38] sm:$0xff]
        %s650 = scalar_lea.vmem %s1, 10
        %v651 = vld [vmem:[%s650] sm:$0x3]
        %v653 = vlaneseq
        %v654 = vshrl.u32 %v653, 7
        %v655 = vsub.s32 0, %v654
        %v656 = vrot.slane %v651, %v655
        %v657 = vlaneseq
        %v658 = vshrl.u32 %v657, 7
        %v659 = vsub.s32 1, %v658
        %v660 = vrot.slane %v651, %v659
        %661 = vrot.lane.b32.xlu0 %v656, 1
        %v662 = vpop.permute.xlu0 %661
        %663 = vrot.lane.b32.xlu0 %v660, 1
        %v664 = vpop.permute.xlu0 %663
        %vm665 = vcmask 7168
        %v666 = vsel %vm665, %v662, %v664
        %v670 = vmul.f32 %v644, %v662
        %v671 = vmul.f32 %v645, %v666
        %v672 = vmul.f32 %v646, %v664
        %v673 = vmul.f32 %v647, %v662
        %v674 = vmul.f32 %v648, %v666
        %v675 = vmul.f32 %v649, %v664
        %v676 = vpack.c.bf16 %v673, %v670
        %v677 = vpack.c.bf16 %v674, %v671
        %v678 = vpack.c.bf16 %v675, %v672
        %682 = vrot.lane.b32.xlu0 %v676, 127
        %v683 = vpop.permute.xlu0 %682
        %684 = vrot.lane.b32.xlu0 %v677, 127
        %v685 = vpop.permute.xlu0 %684
        %686 = vrot.lane.b32.xlu0 %v678, 127
        %v687 = vpop.permute.xlu0 %686
        %vm688 = vcmask 1039360
        %v689 = vsel %vm688, %v683, %v685
        %v690 = vsel %vm688, %v685, %v687
        %693 = vst [vmem:[#allocation3 + $0x50] sm:$0xff] %v689
        %694 = vst [vmem:[#allocation3 + $0x58] sm:$0xff] %v690
        %v695 = vld [vmem:[#allocation2 + $0x8] sm:$0xff]
        %v696 = vld [vmem:[#allocation2 + $0x10] sm:$0xff]
        %v697 = vld [vmem:[#allocation2 + $0x18] sm:$0xff]
        %v698 = vld [vmem:[#allocation2 + $0x28] sm:$0xff]
        %v699 = vld [vmem:[#allocation2 + $0x30] sm:$0xff]
        %v700 = vld [vmem:[#allocation2 + $0x38] sm:$0xff]
        %s701 = scalar_lea.vmem %s1, 12
        %v702 = vld [vmem:[%s701] sm:$0x3]
        %v704 = vlaneseq
        %v705 = vshrl.u32 %v704, 7
        %v706 = vsub.s32 0, %v705
        %v707 = vrot.slane %v702, %v706
        %v708 = vlaneseq
        %v709 = vshrl.u32 %v708, 7
        %v710 = vsub.s32 1, %v709
        %v711 = vrot.slane %v702, %v710
        %712 = vrot.lane.b32.xlu0 %v707, 15
        %v713 = vpop.permute.xlu0 %712
        %714 = vrot.lane.b32.xlu0 %v711, 15
        %v715 = vpop.permute.xlu0 %714
        %vm716 = vcmask 121856
        %v717 = vsel %vm716, %v713, %v715
        %v721 = vmul.f32 %v695, %v713
        %v722 = vmul.f32 %v696, %v717
        %v723 = vmul.f32 %v697, %v715
        %v724 = vmul.f32 %v698, %v713
        %v725 = vmul.f32 %v699, %v717
        %v726 = vmul.f32 %v700, %v715
        %v727 = vpack.c.bf16 %v724, %v721
        %v728 = vpack.c.bf16 %v725, %v722
        %v729 = vpack.c.bf16 %v726, %v723
        %733 = vrot.lane.b32.xlu0 %v727, 113
        %v734 = vpop.permute.xlu0 %733
        %735 = vrot.lane.b32.xlu0 %v728, 113
        %v736 = vpop.permute.xlu0 %735
        %737 = vrot.lane.b32.xlu0 %v729, 113
        %v738 = vpop.permute.xlu0 %737
        %vm739 = vcmask 924672
        %v740 = vsel %vm739, %v734, %v736
        %v741 = vsel %vm739, %v736, %v738
        %744 = vst [vmem:[#allocation3 + $0x60] sm:$0xff] %v740
        %745 = vst [vmem:[#allocation3 + $0x68] sm:$0xff] %v741
        %v746 = vld [vmem:[#allocation2 + $0x8] sm:$0xff]
        %v747 = vld [vmem:[#allocation2 + $0x10] sm:$0xff]
        %v748 = vld [vmem:[#allocation2 + $0x18] sm:$0xff]
        %v749 = vld [vmem:[#allocation2 + $0x28] sm:$0xff]
        %v750 = vld [vmem:[#allocation2 + $0x30] sm:$0xff]
        %v751 = vld [vmem:[#allocation2 + $0x38] sm:$0xff]
        %s752 = scalar_lea.vmem %s1, 14
        %v753 = vld [vmem:[%s752] sm:$0x3]
        %v755 = vlaneseq
        %v756 = vshrl.u32 %v755, 7
        %v757 = vsub.s32 0, %v756
        %v758 = vrot.slane %v753, %v757
        %v759 = vlaneseq
        %v760 = vshrl.u32 %v759, 7
        %v761 = vsub.s32 1, %v760
        %v762 = vrot.slane %v753, %v761
        %763 = vrot.lane.b32.xlu0 %v758, 16
        %v764 = vpop.permute.xlu0 %763
        %765 = vrot.lane.b32.xlu0 %v762, 16
        %v766 = vpop.permute.xlu0 %765
        %vm767 = vcmask 130048
        %v768 = vsel %vm767, %v764, %v766
        %v772 = vmul.f32 %v746, %v764
        %v773 = vmul.f32 %v747, %v768
        %v774 = vmul.f32 %v748, %v766
        %v775 = vmul.f32 %v749, %v764
        %v776 = vmul.f32 %v750, %v768
        %v777 = vmul.f32 %v751, %v766
        %v778 = vpack.c.bf16 %v775, %v772
        %v779 = vpack.c.bf16 %v776, %v773
        %v780 = vpack.c.bf16 %v777, %v774
        %784 = vrot.lane.b32.xlu0 %v778, 112
        %v785 = vpop.permute.xlu0 %784
        %786 = vrot.lane.b32.xlu0 %v779, 112
        %v787 = vpop.permute.xlu0 %786
        %788 = vrot.lane.b32.xlu0 %v780, 112
        %v789 = vpop.permute.xlu0 %788
        %vm790 = vcmask 916480
        %v791 = vsel %vm790, %v785, %v787
        %v792 = vsel %vm790, %v787, %v789
        %795 = vst [vmem:[#allocation3 + $0x70] sm:$0xff] %v791
        %796 = vst [vmem:[#allocation3 + $0x78] sm:$0xff] %v792
        %v797 = vld [vmem:[#allocation2 + $0x8] sm:$0xff]
        %v798 = vld [vmem:[#allocation2 + $0x10] sm:$0xff]
        %v799 = vld [vmem:[#allocation2 + $0x18] sm:$0xff]
        %v800 = vld [vmem:[#allocation2 + $0x28] sm:$0xff]
        %v801 = vld [vmem:[#allocation2 + $0x30] sm:$0xff]
        %v802 = vld [vmem:[#allocation2 + $0x38] sm:$0xff]
        %s803 = scalar_lea.vmem %s1, 16
        %v804 = vld [vmem:[%s803] sm:$0x3]
        %v806 = vlaneseq
        %v807 = vshrl.u32 %v806, 7
        %v808 = vsub.s32 0, %v807
        %v809 = vrot.slane %v804, %v808
        %v810 = vlaneseq
        %v811 = vshrl.u32 %v810, 7
        %v812 = vsub.s32 1, %v811
        %v813 = vrot.slane %v804, %v812
        %814 = vrot.lane.b32.xlu0 %v809, 17
        %v815 = vpop.permute.xlu0 %814
        %816 = vrot.lane.b32.xlu0 %v813, 17
        %v817 = vpop.permute.xlu0 %816
        %vm818 = vcmask 138240
        %v819 = vsel %vm818, %v815, %v817
        %v823 = vmul.f32 %v797, %v815
        %v824 = vmul.f32 %v798, %v819
        %v825 = vmul.f32 %v799, %v817
        %v826 = vmul.f32 %v800, %v815
        %v827 = vmul.f32 %v801, %v819
        %v828 = vmul.f32 %v802, %v817
        %v829 = vpack.c.bf16 %v826, %v823
        %v830 = vpack.c.bf16 %v827, %v824
        %v831 = vpack.c.bf16 %v828, %v825
        %835 = vrot.lane.b32.xlu0 %v829, 111
        %v836 = vpop.permute.xlu0 %835
        %837 = vrot.lane.b32.xlu0 %v830, 111
        %v838 = vpop.permute.xlu0 %837
        %839 = vrot.lane.b32.xlu0 %v831, 111
        %v840 = vpop.permute.xlu0 %839
        %vm841 = vcmask 908288
        %v842 = vsel %vm841, %v836, %v838
        %v843 = vsel %vm841, %v838, %v840
        %846 = vst [vmem:[#allocation3 + $0x80] sm:$0xff] %v842
        %847 = vst [vmem:[#allocation3 + $0x88] sm:$0xff] %v843
        %v848 = vld [vmem:[#allocation3] sm:$0xff]
        %v849 = vld [vmem:[#allocation3 + $0x8] sm:$0xff]
        %v850 = vld [vmem:[#allocation3 + $0x10] sm:$0xff]
        %v851 = vld [vmem:[#allocation3 + $0x18] sm:$0xff]
        %v852 = vld [vmem:[#allocation3 + $0x20] sm:$0xff]
        %v853 = vld [vmem:[#allocation3 + $0x28] sm:$0xff]
        %v854 = vld [vmem:[#allocation3 + $0x30] sm:$0xff]
        %v855 = vld [vmem:[#allocation3 + $0x38] sm:$0xff]
        %v856 = vld [vmem:[#allocation3 + $0x40] sm:$0xff]
        %v857 = vld [vmem:[#allocation3 + $0x48] sm:$0xff]
        %v858 = vld [vmem:[#allocation3 + $0x50] sm:$0xff]
        %v859 = vld [vmem:[#allocation3 + $0x58] sm:$0xff]
        %v860 = vld [vmem:[#allocation3 + $0x60] sm:$0xff]
        %v861 = vld [vmem:[#allocation3 + $0x68] sm:$0xff]
        %v862 = vld [vmem:[#allocation3 + $0x70] sm:$0xff]
        %v863 = vld [vmem:[#allocation3 + $0x78] sm:$0xff]
        %v864 = vld [vmem:[#allocation3 + $0x80] sm:$0xff]
        %v865 = vld [vmem:[#allocation3 + $0x88] sm:$0xff]
        %867 = vset.pattern.permute.xlu0 0
        %868 = vperm.xlu0 %867, %v427
        %v869 = vpop.permute.xlu0 %868
        %872 = vset.pattern.permute.xlu0 0
        %873 = vperm.xlu0 %872, %v428
        %v874 = vpop.permute.xlu0 %873
        %v878 = vunpack.c.l.b16 %v425
        %v879 = vunpack.c.h.b16 %v425
        %v880 = vunpack.c.l.b16 %v426
        %v881 = vunpack.c.h.b16 %v426
        %v882 = vpack.c.b16 %v880, %v878
        %v883 = vpack.c.b16 %v881, %v879
        %v886 = vsel %vm767, %v883, 0
        %888 = vmatprep.subr.bf16.mxu0 %v849
        %889 = vmatpush1.bf16.msra.mxu0 %v848
        %890 = vmatprep.subr.bf16.mxu0 %v851
        %891 = vmatpush1.bf16.msra.mxu0 %v850
        %892 = vmatprep.subr.bf16.mxu0 %v853
        %893 = vmatpush1.bf16.msra.mxu0 %v852
        %894 = vmatprep.subr.bf16.mxu0 %v855
        %895 = vmatpush1.bf16.msra.mxu0 %v854
        %896 = vmatprep.subr.bf16.mxu0 %v857
        %897 = vmatpush1.bf16.msra.mxu0 %v856
        %898 = vmatprep.subr.bf16.mxu0 %v859
        %899 = vmatpush1.bf16.msra.mxu0 %v858
        %900 = vmatprep.subr.bf16.mxu0 %v861
        %901 = vmatpush1.bf16.msra.mxu0 %v860
        %902 = vmatprep.subr.bf16.mxu0 %v863
        %903 = vmatpush1.bf16.msra.mxu0 %v862
        %904 = vmatprep.subr.bf16.mxu0 %v865
        %905 = vmatpush1.bf16.msra.mxu0 %v864
        %906 = vmatprep.subr.bf16.mxu0 0
        %907 = vmatpush1.bf16.msra.mxu0 0
        %908 = vmatprep.subr.bf16.mxu0 0
        %909 = vmatpush1.bf16.msra.mxu0 0
        %910 = vmatprep.subr.bf16.mxu0 0
        %911 = vmatpush1.bf16.msra.mxu0 0
        %912 = vmatprep.subr.bf16.mxu0 0
        %913 = vmatpush1.bf16.msra.mxu0 0
        %914 = vmatprep.subr.bf16.mxu0 0
        %915 = vmatpush1.bf16.msra.mxu0 0
        %916 = vmatprep.subr.bf16.mxu0 0
        %917 = vmatpush1.bf16.msra.mxu0 0
        %918 = vmatprep.subr.bf16.mxu0 0
        %919 = vmatpush1.bf16.msra.mxu0 0
        %920 = vmatprep.mubr.bf16.mxu0 %v886
        %921 = vmatmul.mubr.bf16.gmra.mrb[0].mxu0 %v882
        %v922 = vpop.f32.mrb[0].mxu0
        %v923 = vadd.f32 %v869, %v922
        %v924 = vpop.f32.mrb[0].mxu0
        %v925 = vadd.f32 %v869, %v924
        %v926 = vpop.f32.mrb[0].mxu0
        %v927 = vadd.f32 %v874, %v926
        %v928 = vpop.f32.mrb[0].mxu0
        %v929 = vadd.f32 %v874, %v928
        %930 = vdwg.mxu0
        %v931 = vmax.f32 %v923, 0.0
        %v932 = vmax.f32 %v925, 0.0
        %v933 = vmax.f32 %v927, 0.0
        %v934 = vmax.f32 %v929, 0.0
        %v935 = vld [vmem:[%s4] sm:$0xff]
        %v936 = vld [vmem:[%s4 + $0x8] sm:$0xff]
        %v937 = vld [vmem:[%s5] sm:$0xff]
        %v938 = vld [vmem:[%s5 + $0x8] sm:$0xff]
        %939 = vst [vmem:[#allocation2 + $0x8] sm:$0xff] %v931
        %940 = vst [vmem:[#allocation2 + $0x10] sm:$0xff] %v932
        %941 = vst [vmem:[#allocation2 + $0x28] sm:$0xff] %v933
        %942 = vst [vmem:[#allocation2 + $0x30] sm:$0xff] %v934
        %v943 = vld [vmem:[#allocation2] sm:$0xff]
        %v944 = vld [vmem:[#allocation2 + $0x8] sm:$0xff]
        %v945 = vld [vmem:[#allocation2 + $0x10] sm:$0xff]
        %v946 = vld [vmem:[#allocation2 + $0x20] sm:$0xff]
        %v947 = vld [vmem:[#allocation2 + $0x28] sm:$0xff]
        %v948 = vld [vmem:[#allocation2 + $0x30] sm:$0xff]
        %v949 = vld [vmem:[%s1] sm:$0x3]
        %v951 = vlaneseq
        %v952 = vshrl.u32 %v951, 7
        %v953 = vsub.s32 0, %v952
        %v954 = vrot.slane %v949, %v953
        %v955 = vlaneseq
        %v956 = vshrl.u32 %v955, 7
        %v957 = vsub.s32 1, %v956
        %v958 = vrot.slane %v949, %v957
        %959 = vrot.lane.b32.xlu0 %v954, 111
        %v960 = vpop.permute.xlu0 %959
        %961 = vrot.lane.b32.xlu0 %v958, 111
        %v962 = vpop.permute.xlu0 %961
        %v963 = vsel %vm453, %v960, %v962
        %v967 = vmul.f32 %v943, %v960
        %v968 = vmul.f32 %v944, %v963
        %v969 = vmul.f32 %v945, %v962
        %v970 = vmul.f32 %v946, %v960
        %v971 = vmul.f32 %v947, %v963
        %v972 = vmul.f32 %v948, %v962
        %v973 = vpack.c.bf16 %v970, %v967
        %v974 = vpack.c.bf16 %v971, %v968
        %v975 = vpack.c.bf16 %v972, %v969
        %979 = vrot.lane.b32.xlu0 %v973, 17
        %v980 = vpop.permute.xlu0 %979
        %981 = vrot.lane.b32.xlu0 %v974, 17
        %v982 = vpop.permute.xlu0 %981
        %983 = vrot.lane.b32.xlu0 %v975, 17
        %v984 = vpop.permute.xlu0 %983
        %v985 = vsel %vm476, %v980, %v982
        %v986 = vsel %vm476, %v982, %v984
        %989 = vst [vmem:[#allocation3] sm:$0xff] %v985
        %990 = vst [vmem:[#allocation3 + $0x8] sm:$0xff] %v986
        %v991 = vld [vmem:[#allocation2] sm:$0xff]
        %v992 = vld [vmem:[#allocation2 + $0x8] sm:$0xff]
        %v993 = vld [vmem:[#allocation2 + $0x10] sm:$0xff]
        %v994 = vld [vmem:[#allocation2 + $0x20] sm:$0xff]
        %v995 = vld [vmem:[#allocation2 + $0x28] sm:$0xff]
        %v996 = vld [vmem:[#allocation2 + $0x30] sm:$0xff]
        %v997 = vld [vmem:[%s489] sm:$0x3]
        %v999 = vlaneseq
        %v1000 = vshrl.u32 %v999, 7
        %v1001 = vsub.s32 0, %v1000
        %v1002 = vrot.slane %v997, %v1001
        %v1003 = vlaneseq
        %v1004 = vshrl.u32 %v1003, 7
        %v1005 = vsub.s32 1, %v1004
        %v1006 = vrot.slane %v997, %v1005
        %1007 = vrot.lane.b32.xlu0 %v1002, 112
        %v1008 = vpop.permute.xlu0 %1007
        %1009 = vrot.lane.b32.xlu0 %v1006, 112
        %v1010 = vpop.permute.xlu0 %1009
        %v1011 = vsel %vm504, %v1008, %v1010
        %v1015 = vmul.f32 %v991, %v1008
        %v1016 = vmul.f32 %v992, %v1011
        %v1017 = vmul.f32 %v993, %v1010
        %v1018 = vmul.f32 %v994, %v1008
        %v1019 = vmul.f32 %v995, %v1011
        %v1020 = vmul.f32 %v996, %v1010
        %v1021 = vpack.c.bf16 %v1018, %v1015
        %v1022 = vpack.c.bf16 %v1019, %v1016
        %v1023 = vpack.c.bf16 %v1020, %v1017
        %1027 = vrot.lane.b32.xlu0 %v1021, 16
        %v1028 = vpop.permute.xlu0 %1027
        %1029 = vrot.lane.b32.xlu0 %v1022, 16
        %v1030 = vpop.permute.xlu0 %1029
        %1031 = vrot.lane.b32.xlu0 %v1023, 16
        %v1032 = vpop.permute.xlu0 %1031
        %v1033 = vsel %vm527, %v1028, %v1030
        %v1034 = vsel %vm527, %v1030, %v1032
        %1037 = vst [vmem:[#allocation3 + $0x10] sm:$0xff] %v1033
        %1038 = vst [vmem:[#allocation3 + $0x18] sm:$0xff] %v1034
        %v1039 = vld [vmem:[#allocation2] sm:$0xff]
        %v1040 = vld [vmem:[#allocation2 + $0x8] sm:$0xff]
        %v1041 = vld [vmem:[#allocation2 + $0x10] sm:$0xff]
        %v1042 = vld [vmem:[#allocation2 + $0x20] sm:$0xff]
        %v1043 = vld [vmem:[#allocation2 + $0x28] sm:$0xff]
        %v1044 = vld [vmem:[#allocation2 + $0x30] sm:$0xff]
        %v1045 = vld [vmem:[%s540] sm:$0x3]
        %v1047 = vlaneseq
        %v1048 = vshrl.u32 %v1047, 7
        %v1049 = vsub.s32 0, %v1048
        %v1050 = vrot.slane %v1045, %v1049
        %v1051 = vlaneseq
        %v1052 = vshrl.u32 %v1051, 7
        %v1053 = vsub.s32 1, %v1052
        %v1054 = vrot.slane %v1045, %v1053
        %1055 = vrot.lane.b32.xlu0 %v1050, 113
        %v1056 = vpop.permute.xlu0 %1055
        %1057 = vrot.lane.b32.xlu0 %v1054, 113
        %v1058 = vpop.permute.xlu0 %1057
        %v1059 = vsel %vm555, %v1056, %v1058
        %v1063 = vmul.f32 %v1039, %v1056
        %v1064 = vmul.f32 %v1040, %v1059
        %v1065 = vmul.f32 %v1041, %v1058
        %v1066 = vmul.f32 %v1042, %v1056
        %v1067 = vmul.f32 %v1043, %v1059
        %v1068 = vmul.f32 %v1044, %v1058
        %v1069 = vpack.c.bf16 %v1066, %v1063
        %v1070 = vpack.c.bf16 %v1067, %v1064
        %v1071 = vpack.c.bf16 %v1068, %v1065
        %1075 = vrot.lane.b32.xlu0 %v1069, 15
        %v1076 = vpop.permute.xlu0 %1075
        %1077 = vrot.lane.b32.xlu0 %v1070, 15
        %v1078 = vpop.permute.xlu0 %1077
        %1079 = vrot.lane.b32.xlu0 %v1071, 15
        %v1080 = vpop.permute.xlu0 %1079
        %v1081 = vsel %vm578, %v1076, %v1078
        %v1082 = vsel %vm578, %v1078, %v1080
        %1085 = vst [vmem:[#allocation3 + $0x20] sm:$0xff] %v1081
        %1086 = vst [vmem:[#allocation3 + $0x28] sm:$0xff] %v1082
        %v1087 = vld [vmem:[#allocation2] sm:$0xff]
        %v1088 = vld [vmem:[#allocation2 + $0x8] sm:$0xff]
        %v1089 = vld [vmem:[#allocation2 + $0x10] sm:$0xff]
        %v1090 = vld [vmem:[#allocation2 + $0x20] sm:$0xff]
        %v1091 = vld [vmem:[#allocation2 + $0x28] sm:$0xff]
        %v1092 = vld [vmem:[#allocation2 + $0x30] sm:$0xff]
        %v1093 = vld [vmem:[%s591] sm:$0x3]
        %v1095 = vlaneseq
        %v1096 = vshrl.u32 %v1095, 7
        %v1097 = vsub.s32 0, %v1096
        %v1098 = vrot.slane %v1093, %v1097
        %v1099 = vlaneseq
        %v1100 = vshrl.u32 %v1099, 7
        %v1101 = vsub.s32 1, %v1100
        %v1102 = vrot.slane %v1093, %v1101
        %1103 = vrot.lane.b32.xlu0 %v1098, 127
        %v1104 = vpop.permute.xlu0 %1103
        %1105 = vrot.lane.b32.xlu0 %v1102, 127
        %v1106 = vpop.permute.xlu0 %1105
        %v1107 = vsel %vm606, %v1104, %v1106
        %v1111 = vmul.f32 %v1087, %v1104
        %v1112 = vmul.f32 %v1088, %v1107
        %v1113 = vmul.f32 %v1089, %v1106
        %v1114 = vmul.f32 %v1090, %v1104
        %v1115 = vmul.f32 %v1091, %v1107
        %v1116 = vmul.f32 %v1092, %v1106
        %v1117 = vpack.c.bf16 %v1114, %v1111
        %v1118 = vpack.c.bf16 %v1115, %v1112
        %v1119 = vpack.c.bf16 %v1116, %v1113
        %1123 = vrot.lane.b32.xlu0 %v1117, 1
        %v1124 = vpop.permute.xlu0 %1123
        %1125 = vrot.lane.b32.xlu0 %v1118, 1
        %v1126 = vpop.permute.xlu0 %1125
        %1127 = vrot.lane.b32.xlu0 %v1119, 1
        %v1128 = vpop.permute.xlu0 %1127
        %v1129 = vsel %vm629, %v1124, %v1126
        %v1130 = vsel %vm629, %v1126, %v1128
        %1133 = vst [vmem:[#allocation3 + $0x30] sm:$0xff] %v1129
        %1134 = vst [vmem:[#allocation3 + $0x38] sm:$0xff] %v1130
        %v1135 = vld [vmem:[#allocation2 + $0x8] sm:$0xff]
        %v1136 = vld [vmem:[#allocation2 + $0x10] sm:$0xff]
        %v1137 = vld [vmem:[#allocation2 + $0x28] sm:$0xff]
        %v1138 = vld [vmem:[#allocation2 + $0x30] sm:$0xff]
        %v1139 = vpack.c.bf16 %v1137, %v1135
        %v1140 = vpack.c.bf16 %v1138, %v1136
        %1141 = vst [vmem:[#allocation3 + $0x40] sm:$0xff] %v1139
        %1142 = vst [vmem:[#allocation3 + $0x48] sm:$0xff] %v1140
        %v1143 = vld [vmem:[#allocation2 + $0x8] sm:$0xff]
        %v1144 = vld [vmem:[#allocation2 + $0x10] sm:$0xff]
        %v1145 = vld [vmem:[#allocation2 + $0x18] sm:$0xff]
        %v1146 = vld [vmem:[#allocation2 + $0x28] sm:$0xff]
        %v1147 = vld [vmem:[#allocation2 + $0x30] sm:$0xff]
        %v1148 = vld [vmem:[#allocation2 + $0x38] sm:$0xff]
        %v1149 = vld [vmem:[%s650] sm:$0x3]
        %v1151 = vlaneseq
        %v1152 = vshrl.u32 %v1151, 7
        %v1153 = vsub.s32 0, %v1152
        %v1154 = vrot.slane %v1149, %v1153
        %v1155 = vlaneseq
        %v1156 = vshrl.u32 %v1155, 7
        %v1157 = vsub.s32 1, %v1156
        %v1158 = vrot.slane %v1149, %v1157
        %1159 = vrot.lane.b32.xlu0 %v1154, 1
        %v1160 = vpop.permute.xlu0 %1159
        %1161 = vrot.lane.b32.xlu0 %v1158, 1
        %v1162 = vpop.permute.xlu0 %1161
        %v1163 = vsel %vm665, %v1160, %v1162
        %v1167 = vmul.f32 %v1143, %v1160
        %v1168 = vmul.f32 %v1144, %v1163
        %v1169 = vmul.f32 %v1145, %v1162
        %v1170 = vmul.f32 %v1146, %v1160
        %v1171 = vmul.f32 %v1147, %v1163
        %v1172 = vmul.f32 %v1148, %v1162
        %v1173 = vpack.c.bf16 %v1170, %v1167
        %v1174 = vpack.c.bf16 %v1171, %v1168
        %v1175 = vpack.c.bf16 %v1172, %v1169
        %1179 = vrot.lane.b32.xlu0 %v1173, 127
        %v1180 = vpop.permute.xlu0 %1179
        %1181 = vrot.lane.b32.xlu0 %v1174, 127
        %v1182 = vpop.permute.xlu0 %1181
        %1183 = vrot.lane.b32.xlu0 %v1175, 127
        %v1184 = vpop.permute.xlu0 %1183
        %v1185 = vsel %vm688, %v1180, %v1182
        %v1186 = vsel %vm688, %v1182, %v1184
        %1189 = vst [vmem:[#allocation3 + $0x50] sm:$0xff] %v1185
        %1190 = vst [vmem:[#allocation3 + $0x58] sm:$0xff] %v1186
        %v1191 = vld [vmem:[#allocation2 + $0x8] sm:$0xff]
        %v1192 = vld [vmem:[#allocation2 + $0x10] sm:$0xff]
        %v1193 = vld [vmem:[#allocation2 + $0x18] sm:$0xff]
        %v1194 = vld [vmem:[#allocation2 + $0x28] sm:$0xff]
        %v1195 = vld [vmem:[#allocation2 + $0x30] sm:$0xff]
        %v1196 = vld [vmem:[#allocation2 + $0x38] sm:$0xff]
        %v1197 = vld [vmem:[%s701] sm:$0x3]
        %v1199 = vlaneseq
        %v1200 = vshrl.u32 %v1199, 7
        %v1201 = vsub.s32 0, %v1200
        %v1202 = vrot.slane %v1197, %v1201
        %v1203 = vlaneseq
        %v1204 = vshrl.u32 %v1203, 7
        %v1205 = vsub.s32 1, %v1204
        %v1206 = vrot.slane %v1197, %v1205
        %1207 = vrot.lane.b32.xlu0 %v1202, 15
        %v1208 = vpop.permute.xlu0 %1207
        %1209 = vrot.lane.b32.xlu0 %v1206, 15
        %v1210 = vpop.permute.xlu0 %1209
        %v1211 = vsel %vm716, %v1208, %v1210
        %v1215 = vmul.f32 %v1191, %v1208
        %v1216 = vmul.f32 %v1192, %v1211
        %v1217 = vmul.f32 %v1193, %v1210
        %v1218 = vmul.f32 %v1194, %v1208
        %v1219 = vmul.f32 %v1195, %v1211
        %v1220 = vmul.f32 %v1196, %v1210
        %v1221 = vpack.c.bf16 %v1218, %v1215
        %v1222 = vpack.c.bf16 %v1219, %v1216
        %v1223 = vpack.c.bf16 %v1220, %v1217
        %1227 = vrot.lane.b32.xlu0 %v1221, 113
        %v1228 = vpop.permute.xlu0 %1227
        %1229 = vrot.lane.b32.xlu0 %v1222, 113
        %v1230 = vpop.permute.xlu0 %1229
        %1231 = vrot.lane.b32.xlu0 %v1223, 113
        %v1232 = vpop.permute.xlu0 %1231
        %v1233 = vsel %vm739, %v1228, %v1230
        %v1234 = vsel %vm739, %v1230, %v1232
        %1237 = vst [vmem:[#allocation3 + $0x60] sm:$0xff] %v1233
        %1238 = vst [vmem:[#allocation3 + $0x68] sm:$0xff] %v1234
        %v1239 = vld [vmem:[#allocation2 + $0x8] sm:$0xff]
        %v1240 = vld [vmem:[#allocation2 + $0x10] sm:$0xff]
        %v1241 = vld [vmem:[#allocation2 + $0x18] sm:$0xff]
        %v1242 = vld [vmem:[#allocation2 + $0x28] sm:$0xff]
        %v1243 = vld [vmem:[#allocation2 + $0x30] sm:$0xff]
        %v1244 = vld [vmem:[#allocation2 + $0x38] sm:$0xff]
        %v1245 = vld [vmem:[%s752] sm:$0x3]
        %v1247 = vlaneseq
        %v1248 = vshrl.u32 %v1247, 7
        %v1249 = vsub.s32 0, %v1248
        %v1250 = vrot.slane %v1245, %v1249
        %v1251 = vlaneseq
        %v1252 = vshrl.u32 %v1251, 7
        %v1253 = vsub.s32 1, %v1252
        %v1254 = vrot.slane %v1245, %v1253
        %1255 = vrot.lane.b32.xlu0 %v1250, 16
        %v1256 = vpop.permute.xlu0 %1255
        %1257 = vrot.lane.b32.xlu0 %v1254, 16
        %v1258 = vpop.permute.xlu0 %1257
        %v1259 = vsel %vm767, %v1256, %v1258
        %v1263 = vmul.f32 %v1239, %v1256
        %v1264 = vmul.f32 %v1240, %v1259
        %v1265 = vmul.f32 %v1241, %v1258
        %v1266 = vmul.f32 %v1242, %v1256
        %v1267 = vmul.f32 %v1243, %v1259
        %v1268 = vmul.f32 %v1244, %v1258
        %v1269 = vpack.c.bf16 %v1266, %v1263
        %v1270 = vpack.c.bf16 %v1267, %v1264
        %v1271 = vpack.c.bf16 %v1268, %v1265
        %1275 = vrot.lane.b32.xlu0 %v1269, 112
        %v1276 = vpop.permute.xlu0 %1275
        %1277 = vrot.lane.b32.xlu0 %v1270, 112
        %v1278 = vpop.permute.xlu0 %1277
        %1279 = vrot.lane.b32.xlu0 %v1271, 112
        %v1280 = vpop.permute.xlu0 %1279
        %v1281 = vsel %vm790, %v1276, %v1278
        %v1282 = vsel %vm790, %v1278, %v1280
        %1285 = vst [vmem:[#allocation3 + $0x70] sm:$0xff] %v1281
        %1286 = vst [vmem:[#allocation3 + $0x78] sm:$0xff] %v1282
        %v1287 = vld [vmem:[#allocation2 + $0x8] sm:$0xff]
        %v1288 = vld [vmem:[#allocation2 + $0x10] sm:$0xff]
        %v1289 = vld [vmem:[#allocation2 + $0x18] sm:$0xff]
        %v1290 = vld [vmem:[#allocation2 + $0x28] sm:$0xff]
        %v1291 = vld [vmem:[#allocation2 + $0x30] sm:$0xff]
        %v1292 = vld [vmem:[#allocation2 + $0x38] sm:$0xff]
        %v1293 = vld [vmem:[%s803] sm:$0x3]
        %v1295 = vlaneseq
        %v1296 = vshrl.u32 %v1295, 7
        %v1297 = vsub.s32 0, %v1296
        %v1298 = vrot.slane %v1293, %v1297
        %v1299 = vlaneseq
        %v1300 = vshrl.u32 %v1299, 7
        %v1301 = vsub.s32 1, %v1300
        %v1302 = vrot.slane %v1293, %v1301
        %1303 = vrot.lane.b32.xlu0 %v1298, 17
        %v1304 = vpop.permute.xlu0 %1303
        %1305 = vrot.lane.b32.xlu0 %v1302, 17
        %v1306 = vpop.permute.xlu0 %1305
        %v1307 = vsel %vm818, %v1304, %v1306
        %v1311 = vmul.f32 %v1287, %v1304
        %v1312 = vmul.f32 %v1288, %v1307
        %v1313 = vmul.f32 %v1289, %v1306
        %v1314 = vmul.f32 %v1290, %v1304
        %v1315 = vmul.f32 %v1291, %v1307
        %v1316 = vmul.f32 %v1292, %v1306
        %v1317 = vpack.c.bf16 %v1314, %v1311
        %v1318 = vpack.c.bf16 %v1315, %v1312
        %v1319 = vpack.c.bf16 %v1316, %v1313
        %1323 = vrot.lane.b32.xlu0 %v1317, 111
        %v1324 = vpop.permute.xlu0 %1323
        %1325 = vrot.lane.b32.xlu0 %v1318, 111
        %v1326 = vpop.permute.xlu0 %1325
        %1327 = vrot.lane.b32.xlu0 %v1319, 111
        %v1328 = vpop.permute.xlu0 %1327
        %v1329 = vsel %vm841, %v1324, %v1326
        %v1330 = vsel %vm841, %v1326, %v1328
        %1333 = vst [vmem:[#allocation3 + $0x80] sm:$0xff] %v1329
        %1334 = vst [vmem:[#allocation3 + $0x88] sm:$0xff] %v1330
        %v1335 = vld [vmem:[#allocation3] sm:$0xff]
        %v1336 = vld [vmem:[#allocation3 + $0x8] sm:$0xff]
        %v1337 = vld [vmem:[#allocation3 + $0x10] sm:$0xff]
        %v1338 = vld [vmem:[#allocation3 + $0x18] sm:$0xff]
        %v1339 = vld [vmem:[#allocation3 + $0x20] sm:$0xff]
        %v1340 = vld [vmem:[#allocation3 + $0x28] sm:$0xff]
        %v1341 = vld [vmem:[#allocation3 + $0x30] sm:$0xff]
        %v1342 = vld [vmem:[#allocation3 + $0x38] sm:$0xff]
        %v1343 = vld [vmem:[#allocation3 + $0x40] sm:$0xff]
        %v1344 = vld [vmem:[#allocation3 + $0x48] sm:$0xff]
        %v1345 = vld [vmem:[#allocation3 + $0x50] sm:$0xff]
        %v1346 = vld [vmem:[#allocation3 + $0x58] sm:$0xff]
        %v1347 = vld [vmem:[#allocation3 + $0x60] sm:$0xff]
        %v1348 = vld [vmem:[#allocation3 + $0x68] sm:$0xff]
        %v1349 = vld [vmem:[#allocation3 + $0x70] sm:$0xff]
        %v1350 = vld [vmem:[#allocation3 + $0x78] sm:$0xff]
        %v1351 = vld [vmem:[#allocation3 + $0x80] sm:$0xff]
        %v1352 = vld [vmem:[#allocation3 + $0x88] sm:$0xff]
        %1354 = vset.pattern.permute.xlu0 0
        %1355 = vperm.xlu0 %1354, %v937
        %v1356 = vpop.permute.xlu0 %1355
        %1359 = vset.pattern.permute.xlu0 0
        %1360 = vperm.xlu0 %1359, %v938
        %v1361 = vpop.permute.xlu0 %1360
        %v1365 = vunpack.c.l.b16 %v935
        %v1366 = vunpack.c.h.b16 %v935
        %v1367 = vunpack.c.l.b16 %v936
        %v1368 = vunpack.c.h.b16 %v936
        %v1369 = vpack.c.b16 %v1367, %v1365
        %v1370 = vpack.c.b16 %v1368, %v1366
        %v1373 = vsel %vm767, %v1370, 0
        %1375 = vmatprep.subr.bf16.mxu0 %v1336
        %1376 = vmatpush1.bf16.msra.mxu0 %v1335
        %1377 = vmatprep.subr.bf16.mxu0 %v1338
        %1378 = vmatpush1.bf16.msra.mxu0 %v1337
        %1379 = vmatprep.subr.bf16.mxu0 %v1340
        %1380 = vmatpush1.bf16.msra.mxu0 %v1339
        %1381 = vmatprep.subr.bf16.mxu0 %v1342
        %1382 = vmatpush1.bf16.msra.mxu0 %v1341
        %1383 = vmatprep.subr.bf16.mxu0 %v1344
        %1384 = vmatpush1.bf16.msra.mxu0 %v1343
        %1385 = vmatprep.subr.bf16.mxu0 %v1346
        %1386 = vmatpush1.bf16.msra.mxu0 %v1345
        %1387 = vmatprep.subr.bf16.mxu0 %v1348
        %1388 = vmatpush1.bf16.msra.mxu0 %v1347
        %1389 = vmatprep.subr.bf16.mxu0 %v1350
        %1390 = vmatpush1.bf16.msra.mxu0 %v1349
        %1391 = vmatprep.subr.bf16.mxu0 %v1352
        %1392 = vmatpush1.bf16.msra.mxu0 %v1351
        %1393 = vmatprep.subr.bf16.mxu0 0
        %1394 = vmatpush1.bf16.msra.mxu0 0
        %1395 = vmatprep.subr.bf16.mxu0 0
        %1396 = vmatpush1.bf16.msra.mxu0 0
        %1397 = vmatprep.subr.bf16.mxu0 0
        %1398 = vmatpush1.bf16.msra.mxu0 0
        %1399 = vmatprep.subr.bf16.mxu0 0
        %1400 = vmatpush1.bf16.msra.mxu0 0
        %1401 = vmatprep.subr.bf16.mxu0 0
        %1402 = vmatpush1.bf16.msra.mxu0 0
        %1403 = vmatprep.subr.bf16.mxu0 0
        %1404 = vmatpush1.bf16.msra.mxu0 0
        %1405 = vmatprep.subr.bf16.mxu0 0
        %1406 = vmatpush1.bf16.msra.mxu0 0
        %1407 = vmatprep.mubr.bf16.mxu0 %v1373
        %1408 = vmatmul.mubr.bf16.gmra.mrb[0].mxu0 %v1369
        %v1409 = vpop.f32.mrb[0].mxu0
        %v1410 = vadd.f32 %v1356, %v1409
        %v1411 = vpop.f32.mrb[0].mxu0
        %v1412 = vadd.f32 %v1356, %v1411
        %v1413 = vpop.f32.mrb[0].mxu0
        %v1414 = vadd.f32 %v1361, %v1413
        %v1415 = vpop.f32.mrb[0].mxu0
        %v1416 = vadd.f32 %v1361, %v1415
        %1417 = vdwg.mxu0
        %v1418 = vadd.f32 %v1410, %v1412
        %1419 = vadd.xlane.f32.xlu0 %v1418
        %v1420 = vpop.xlane.xlu0 %1419
        %v1421 = vadd.f32 %v1414, %v1416
        %1422 = vadd.xlane.f32.xlu0 %v1421
        %v1423 = vpop.xlane.xlu0 %1422
        %v1424 = vrcp.pop 256.0
        %v1425 = vmul.f32 %v1420, %v1424
        %v1426 = vmul.f32 %v1423, %v1424
        %v1427 = vld [vmem:[%s6] sm:$0xf]
        %v1428 = vld [vmem:[%s7] sm:$0xf]
        %v1430 = vsel %vm767, %v1427, 0
        %1432 = vmatprep.subr.mxu0 0.0
        %1433 = vmatpush1.msra.mxu0 %v1425
        %1434 = vmatprep.subr.mxu0 0.0
        %1435 = vmatpush1.msra.mxu0 %v1426
        %1436 = vmatprep.subr.mxu0 0.0
        %1437 = vmatpush1.msra.mxu0 0.0
        %1438 = vmatprep.subr.mxu0 0.0
        %1439 = vmatpush1.msra.mxu0 0.0
        %1440 = vmatprep.subr.mxu0 0.0
        %1441 = vmatpush1.msra.mxu0 0.0
        %1442 = vmatprep.subr.mxu0 0.0
        %1443 = vmatpush1.msra.mxu0 0.0
        %1444 = vmatprep.subr.mxu0 0.0
        %1445 = vmatpush1.msra.mxu0 0.0
        %1446 = vmatprep.subr.mxu0 0.0
        %1447 = vmatpush1.msra.mxu0 0.0
        %1448 = vmatprep.subr.mxu0 0.0
        %1449 = vmatpush1.msra.mxu0 0.0
        %1450 = vmatprep.subr.mxu0 0.0
        %1451 = vmatpush1.msra.mxu0 0.0
        %1452 = vmatprep.subr.mxu0 0.0
        %1453 = vmatpush1.msra.mxu0 0.0
        %1454 = vmatprep.subr.mxu0 0.0
        %1455 = vmatpush1.msra.mxu0 0.0
        %1456 = vmatprep.subr.mxu0 0.0
        %1457 = vmatpush1.msra.mxu0 0.0
        %1458 = vmatprep.subr.mxu0 0.0
        %1459 = vmatpush1.msra.mxu0 0.0
        %1460 = vmatprep.subr.mxu0 0.0
        %1461 = vmatpush1.msra.mxu0 0.0
        %1462 = vmatprep.subr.mxu0 0.0
        %1463 = vmatpush1.msra.mxu0 0.0
        %1464 = vmatprep.subr.mxu0 0.0
        %1465 = vmatpush1.msra.mxu0 0.0
        %1466 = vmatprep.subr.mxu0 0.0
        %1467 = vmatpush1.msra.mxu0 0.0
        %1468 = vmatprep.subr.mxu0 0.0
        %1469 = vmatpush1.msra.mxu0 0.0
        %1470 = vmatprep.subr.mxu0 0.0
        %1471 = vmatpush1.msra.mxu0 0.0
        %1472 = vmatprep.subr.mxu0 0.0
        %1473 = vmatpush1.msra.mxu0 0.0
        %1474 = vmatprep.subr.mxu0 0.0
        %1475 = vmatpush1.msra.mxu0 0.0
        %1476 = vmatprep.subr.mxu0 0.0
        %1477 = vmatpush1.msra.mxu0 0.0
        %1478 = vmatprep.subr.mxu0 0.0
        %1479 = vmatpush1.msra.mxu0 0.0
        %1480 = vmatprep.subr.mxu0 0.0
        %1481 = vmatpush1.msra.mxu0 0.0
        %1482 = vmatprep.subr.mxu0 0.0
        %1483 = vmatpush1.msra.mxu0 0.0
        %1484 = vmatprep.subr.mxu0 0.0
        %1485 = vmatpush1.msra.mxu0 0.0
        %1486 = vmatprep.subr.mxu0 0.0
        %1487 = vmatpush1.msra.mxu0 0.0
        %1488 = vmatprep.subr.mxu0 0.0
        %1489 = vmatpush1.msra.mxu0 0.0
        %1490 = vmatprep.subr.mxu0 0.0
        %1491 = vmatpush1.msra.mxu0 0.0
        %1492 = vmatprep.subr.mxu0 0.0
        %1493 = vmatpush1.msra.mxu0 0.0
        %1494 = vmatprep.subr.mxu0 0.0
        %1495 = vmatpush1.msra.mxu0 0.0
        %1496 = vmatprep.mubr.f32.mxu0 0.0
        %1497 = vmatmul.mubr.f32.gmra.mrb[0].mxu0 %v1430
        %v1498 = vpop.f32.mrb[0].mxu0
        %v1499 = vadd.f32 %v1428, %v1498
        %v1500 = vpop.f32.mrb[0].mxu0
        %1501 = vdwg.mxu0
        %v1502 = vmax.f32 %v1499, 0.0
        %v1503 = vld [vmem:[%s8] sm:$0xff]
        %v1504 = vld [vmem:[%s8 + $0x8] sm:$0xff]
        %v1505 = vld [vmem:[%s9] sm:$0xff]
        %v1506 = vld [vmem:[%s9 + $0x8] sm:$0xff]
        %vm1507 = vcmask 31744
        %v1509 = vsel %vm1507, %v1503, 0
        %v1512 = vsel %vm1507, %v1504, 0
        %vm1514 = vcmask 1043456
        %v1516 = vsel %vm1514, %v1502, 0
        %1518 = vmatprep.subr.mxu0 0.0
        %1519 = vmatpush1.msra.mxu0 %v1516
        %1520 = vmatprep.subr.mxu0 0.0
        %1521 = vmatpush1.msra.mxu0 0.0
        %1522 = vmatprep.subr.mxu0 0.0
        %1523 = vmatpush1.msra.mxu0 0.0
        %1524 = vmatprep.subr.mxu0 0.0
        %1525 = vmatpush1.msra.mxu0 0.0
        %1526 = vmatprep.subr.mxu0 0.0
        %1527 = vmatpush1.msra.mxu0 0.0
        %1528 = vmatprep.subr.mxu0 0.0
        %1529 = vmatpush1.msra.mxu0 0.0
        %1530 = vmatprep.subr.mxu0 0.0
        %1531 = vmatpush1.msra.mxu0 0.0
        %1532 = vmatprep.subr.mxu0 0.0
        %1533 = vmatpush1.msra.mxu0 0.0
        %1534 = vmatprep.subr.mxu0 0.0
        %1535 = vmatpush1.msra.mxu0 0.0
        %1536 = vmatprep.subr.mxu0 0.0
        %1537 = vmatpush1.msra.mxu0 0.0
        %1538 = vmatprep.subr.mxu0 0.0
        %1539 = vmatpush1.msra.mxu0 0.0
        %1540 = vmatprep.subr.mxu0 0.0
        %1541 = vmatpush1.msra.mxu0 0.0
        %1542 = vmatprep.subr.mxu0 0.0
        %1543 = vmatpush1.msra.mxu0 0.0
        %1544 = vmatprep.subr.mxu0 0.0
        %1545 = vmatpush1.msra.mxu0 0.0
        %1546 = vmatprep.subr.mxu0 0.0
        %1547 = vmatpush1.msra.mxu0 0.0
        %1548 = vmatprep.subr.mxu0 0.0
        %1549 = vmatpush1.msra.mxu0 0.0
        %1550 = vmatprep.subr.mxu0 0.0
        %1551 = vmatpush1.msra.mxu0 0.0
        %1552 = vmatprep.subr.mxu0 0.0
        %1553 = vmatpush1.msra.mxu0 0.0
        %1554 = vmatprep.subr.mxu0 0.0
        %1555 = vmatpush1.msra.mxu0 0.0
        %1556 = vmatprep.subr.mxu0 0.0
        %1557 = vmatpush1.msra.mxu0 0.0
        %1558 = vmatprep.subr.mxu0 0.0
        %1559 = vmatpush1.msra.mxu0 0.0
        %1560 = vmatprep.subr.mxu0 0.0
        %1561 = vmatpush1.msra.mxu0 0.0
        %1562 = vmatprep.subr.mxu0 0.0
        %1563 = vmatpush1.msra.mxu0 0.0
        %1564 = vmatprep.subr.mxu0 0.0
        %1565 = vmatpush1.msra.mxu0 0.0
        %1566 = vmatprep.subr.mxu0 0.0
        %1567 = vmatpush1.msra.mxu0 0.0
        %1568 = vmatprep.subr.mxu0 0.0
        %1569 = vmatpush1.msra.mxu0 0.0
        %1570 = vmatprep.subr.mxu0 0.0
        %1571 = vmatpush1.msra.mxu0 0.0
        %1572 = vmatprep.subr.mxu0 0.0
        %1573 = vmatpush1.msra.mxu0 0.0
        %1574 = vmatprep.subr.mxu0 0.0
        %1575 = vmatpush1.msra.mxu0 0.0
        %1576 = vmatprep.subr.mxu0 0.0
        %1577 = vmatpush1.msra.mxu0 0.0
        %1578 = vmatprep.subr.mxu0 0.0
        %1579 = vmatpush1.msra.mxu0 0.0
        %1580 = vmatprep.subr.mxu0 0.0
        %1581 = vmatpush1.msra.mxu0 0.0
        %1582 = vmatprep.mubr.f32.mxu0 0.0
        %1583 = vmatmul.mubr.f32.gmra.mrb[0].mxu0 %v1509
        %v1584 = vpop.f32.mrb[0].mxu0
        %v1585 = vadd.f32 %v1505, %v1584
        %v1586 = vpop.f32.mrb[0].mxu0
        %1587 = vmatprep.mubr.f32.mxu0 0.0
        %1588 = vmatmul.mubr.f32.gmra.mrb[0].mxu0 %v1512
        %v1589 = vpop.f32.mrb[0].mxu0
        %v1590 = vadd.f32 %v1506, %v1589
        %v1591 = vpop.f32.mrb[0].mxu0
        %1592 = vdwg.mxu0
        %v1593 = vsub.f32 0.0, %v1585
        %v1594 = vsub.f32 0.0, %v1590
        %v1595 = vmul.f32 %v1593, 1.442695
        %v1596 = vpow.pop %v1595
        %v1597 = vmul.f32 %v1594, 1.442695
        %v1598 = vpow.pop %v1597
        %v1599 = vadd.f32 %v1596, 1.0
        %v1600 = vadd.f32 %v1598, 1.0
        %v1601 = vrcp.pop %v1599
        %v1602 = vrcp.pop %v1600
        %1604 = vset.pattern.permute.xlu0 0
        %1605 = vperm.xlu0 %1604, %v1601
        %v1606 = vpop.permute.xlu0 %1605
        %1609 = vset.pattern.permute.xlu0 0
        %1610 = vperm.xlu0 %1609, %v1602
        %v1611 = vpop.permute.xlu0 %1610
        %v1613 = vmul.f32 %v1410, %v1606
        %v1614 = vmul.f32 %v1412, %v1606
        %v1615 = vmul.f32 %v1414, %v1611
        %v1616 = vmul.f32 %v1416, %v1611
        %v1617 = vadd.f32 %v1613, %v413
        %v1618 = vadd.f32 %v1614, %v414
        %v1619 = vadd.f32 %v1615, %v415
        %v1620 = vadd.f32 %v1616, %v416
        %s1621 = scalar_lea.vmem %s2, 16
        %v1622 = vld [vmem:[%s1621] sm:$0xff]
        %v1623 = vld [vmem:[%s1621 + $0x8] sm:$0xff]
        %s1624 = scalar_lea.vmem %s3, 16
        %v1625 = vld [vmem:[%s1624] sm:$0xff]
        %v1626 = vld [vmem:[%s1624 + $0x8] sm:$0xff]
        %1627 = vst [vmem:[#allocation2 + $0x8] sm:$0xff] %v1617
        %1628 = vst [vmem:[#allocation2 + $0x10] sm:$0xff] %v1618
        %1629 = vst [vmem:[#allocation2 + $0x28] sm:$0xff] %v1619
        %1630 = vst [vmem:[#allocation2 + $0x30] sm:$0xff] %v1620
        %v1631 = vld [vmem:[#allocation2] sm:$0xff]
        %v1632 = vld [vmem:[#allocation2 + $0x8] sm:$0xff]
        %v1633 = vld [vmem:[#allocation2 + $0x10] sm:$0xff]
        %v1634 = vld [vmem:[#allocation2 + $0x20] sm:$0xff]
        %v1635 = vld [vmem:[#allocation2 + $0x28] sm:$0xff]
        %v1636 = vld [vmem:[#allocation2 + $0x30] sm:$0xff]
        %v1637 = vld [vmem:[%s1] sm:$0x3]
        %v1639 = vlaneseq
        %v1640 = vshrl.u32 %v1639, 7
        %v1641 = vsub.s32 0, %v1640
        %v1642 = vrot.slane %v1637, %v1641
        %v1643 = vlaneseq
        %v1644 = vshrl.u32 %v1643, 7
        %v1645 = vsub.s32 1, %v1644
        %v1646 = vrot.slane %v1637, %v1645
        %1647 = vrot.lane.b32.xlu0 %v1642, 111
        %v1648 = vpop.permute.xlu0 %1647
        %1649 = vrot.lane.b32.xlu0 %v1646, 111
        %v1650 = vpop.permute.xlu0 %1649
        %v1651 = vsel %vm453, %v1648, %v1650
        %v1655 = vmul.f32 %v1631, %v1648
        %v1656 = vmul.f32 %v1632, %v1651
        %v1657 = vmul.f32 %v1633, %v1650
        %v1658 = vmul.f32 %v1634, %v1648
        %v1659 = vmul.f32 %v1635, %v1651
        %v1660 = vmul.f32 %v1636, %v1650
        %v1661 = vpack.c.bf16 %v1658, %v1655
        %v1662 = vpack.c.bf16 %v1659, %v1656
        %v1663 = vpack.c.bf16 %v1660, %v1657
        %1667 = vrot.lane.b32.xlu0 %v1661, 17
        %v1668 = vpop.permute.xlu0 %1667
        %1669 = vrot.lane.b32.xlu0 %v1662, 17
        %v1670 = vpop.permute.xlu0 %1669
        %1671 = vrot.lane.b32.xlu0 %v1663, 17
        %v1672 = vpop.permute.xlu0 %1671
        %v1673 = vsel %vm476, %v1668, %v1670
        %v1674 = vsel %vm476, %v1670, %v1672
        %1677 = vst [vmem:[#allocation3] sm:$0xff] %v1673
        %1678 = vst [vmem:[#allocation3 + $0x8] sm:$0xff] %v1674
        %v1679 = vld [vmem:[#allocation2] sm:$0xff]
        %v1680 = vld [vmem:[#allocation2 + $0x8] sm:$0xff]
        %v1681 = vld [vmem:[#allocation2 + $0x10] sm:$0xff]
        %v1682 = vld [vmem:[#allocation2 + $0x20] sm:$0xff]
        %v1683 = vld [vmem:[#allocation2 + $0x28] sm:$0xff]
        %v1684 = vld [vmem:[#allocation2 + $0x30] sm:$0xff]
        %v1685 = vld [vmem:[%s489] sm:$0x3]
        %v1687 = vlaneseq
        %v1688 = vshrl.u32 %v1687, 7
        %v1689 = vsub.s32 0, %v1688
        %v1690 = vrot.slane %v1685, %v1689
        %v1691 = vlaneseq
        %v1692 = vshrl.u32 %v1691, 7
        %v1693 = vsub.s32 1, %v1692
        %v1694 = vrot.slane %v1685, %v1693
        %1695 = vrot.lane.b32.xlu0 %v1690, 112
        %v1696 = vpop.permute.xlu0 %1695
        %1697 = vrot.lane.b32.xlu0 %v1694, 112
        %v1698 = vpop.permute.xlu0 %1697
        %v1699 = vsel %vm504, %v1696, %v1698
        %v1703 = vmul.f32 %v1679, %v1696
        %v1704 = vmul.f32 %v1680, %v1699
        %v1705 = vmul.f32 %v1681, %v1698
        %v1706 = vmul.f32 %v1682, %v1696
        %v1707 = vmul.f32 %v1683, %v1699
        %v1708 = vmul.f32 %v1684, %v1698
        %v1709 = vpack.c.bf16 %v1706, %v1703
        %v1710 = vpack.c.bf16 %v1707, %v1704
        %v1711 = vpack.c.bf16 %v1708, %v1705
        %1715 = vrot.lane.b32.xlu0 %v1709, 16
        %v1716 = vpop.permute.xlu0 %1715
        %1717 = vrot.lane.b32.xlu0 %v1710, 16
        %v1718 = vpop.permute.xlu0 %1717
        %1719 = vrot.lane.b32.xlu0 %v1711, 16
        %v1720 = vpop.permute.xlu0 %1719
        %v1721 = vsel %vm527, %v1716, %v1718
        %v1722 = vsel %vm527, %v1718, %v1720
        %1725 = vst [vmem:[#allocation3 + $0x10] sm:$0xff] %v1721
        %1726 = vst [vmem:[#allocation3 + $0x18] sm:$0xff] %v1722
        %v1727 = vld [vmem:[#allocation2] sm:$0xff]
        %v1728 = vld [vmem:[#allocation2 + $0x8] sm:$0xff]
        %v1729 = vld [vmem:[#allocation2 + $0x10] sm:$0xff]
        %v1730 = vld [vmem:[#allocation2 + $0x20] sm:$0xff]
        %v1731 = vld [vmem:[#allocation2 + $0x28] sm:$0xff]
        %v1732 = vld [vmem:[#allocation2 + $0x30] sm:$0xff]
        %v1733 = vld [vmem:[%s540] sm:$0x3]
        %v1735 = vlaneseq
        %v1736 = vshrl.u32 %v1735, 7
        %v1737 = vsub.s32 0, %v1736
        %v1738 = vrot.slane %v1733, %v1737
        %v1739 = vlaneseq
        %v1740 = vshrl.u32 %v1739, 7
        %v1741 = vsub.s32 1, %v1740
        %v1742 = vrot.slane %v1733, %v1741
        %1743 = vrot.lane.b32.xlu0 %v1738, 113
        %v1744 = vpop.permute.xlu0 %1743
        %1745 = vrot.lane.b32.xlu0 %v1742, 113
        %v1746 = vpop.permute.xlu0 %1745
        %v1747 = vsel %vm555, %v1744, %v1746
        %v1751 = vmul.f32 %v1727, %v1744
        %v1752 = vmul.f32 %v1728, %v1747
        %v1753 = vmul.f32 %v1729, %v1746
        %v1754 = vmul.f32 %v1730, %v1744
        %v1755 = vmul.f32 %v1731, %v1747
        %v1756 = vmul.f32 %v1732, %v1746
        %v1757 = vpack.c.bf16 %v1754, %v1751
        %v1758 = vpack.c.bf16 %v1755, %v1752
        %v1759 = vpack.c.bf16 %v1756, %v1753
        %1763 = vrot.lane.b32.xlu0 %v1757, 15
        %v1764 = vpop.permute.xlu0 %1763
        %1765 = vrot.lane.b32.xlu0 %v1758, 15
        %v1766 = vpop.permute.xlu0 %1765
        %1767 = vrot.lane.b32.xlu0 %v1759, 15
        %v1768 = vpop.permute.xlu0 %1767
        %v1769 = vsel %vm578, %v1764, %v1766
        %v1770 = vsel %vm578, %v1766, %v1768
        %1773 = vst [vmem:[#allocation3 + $0x20] sm:$0xff] %v1769
        %1774 = vst [vmem:[#allocation3 + $0x28] sm:$0xff] %v1770
        %v1775 = vld [vmem:[#allocation2] sm:$0xff]
        %v1776 = vld [vmem:[#allocation2 + $0x8] sm:$0xff]
        %v1777 = vld [vmem:[#allocation2 + $0x10] sm:$0xff]
        %v1778 = vld [vmem:[#allocation2 + $0x20] sm:$0xff]
        %v1779 = vld [vmem:[#allocation2 + $0x28] sm:$0xff]
        %v1780 = vld [vmem:[#allocation2 + $0x30] sm:$0xff]
        %v1781 = vld [vmem:[%s591] sm:$0x3]
        %v1783 = vlaneseq
        %v1784 = vshrl.u32 %v1783, 7
        %v1785 = vsub.s32 0, %v1784
        %v1786 = vrot.slane %v1781, %v1785
        %v1787 = vlaneseq
        %v1788 = vshrl.u32 %v1787, 7
        %v1789 = vsub.s32 1, %v1788
        %v1790 = vrot.slane %v1781, %v1789
        %1791 = vrot.lane.b32.xlu0 %v1786, 127
        %v1792 = vpop.permute.xlu0 %1791
        %1793 = vrot.lane.b32.xlu0 %v1790, 127
        %v1794 = vpop.permute.xlu0 %1793
        %v1795 = vsel %vm606, %v1792, %v1794
        %v1799 = vmul.f32 %v1775, %v1792
        %v1800 = vmul.f32 %v1776, %v1795
        %v1801 = vmul.f32 %v1777, %v1794
        %v1802 = vmul.f32 %v1778, %v1792
        %v1803 = vmul.f32 %v1779, %v1795
        %v1804 = vmul.f32 %v1780, %v1794
        %v1805 = vpack.c.bf16 %v1802, %v1799
        %v1806 = vpack.c.bf16 %v1803, %v1800
        %v1807 = vpack.c.bf16 %v1804, %v1801
        %1811 = vrot.lane.b32.xlu0 %v1805, 1
        %v1812 = vpop.permute.xlu0 %1811
        %1813 = vrot.lane.b32.xlu0 %v1806, 1
        %v1814 = vpop.permute.xlu0 %1813
        %1815 = vrot.lane.b32.xlu0 %v1807, 1
        %v1816 = vpop.permute.xlu0 %1815
        %v1817 = vsel %vm629, %v1812, %v1814
        %v1818 = vsel %vm629, %v1814, %v1816
        %1821 = vst [vmem:[#allocation3 + $0x30] sm:$0xff] %v1817
        %1822 = vst [vmem:[#allocation3 + $0x38] sm:$0xff] %v1818
        %v1823 = vld [vmem:[#allocation2 + $0x8] sm:$0xff]
        %v1824 = vld [vmem:[#allocation2 + $0x10] sm:$0xff]
        %v1825 = vld [vmem:[#allocation2 + $0x28] sm:$0xff]
        %v1826 = vld [vmem:[#allocation2 + $0x30] sm:$0xff]
        %v1827 = vpack.c.bf16 %v1825, %v1823
        %v1828 = vpack.c.bf16 %v1826, %v1824
        %1829 = vst [vmem:[#allocation3 + $0x40] sm:$0xff] %v1827
        %1830 = vst [vmem:[#allocation3 + $0x48] sm:$0xff] %v1828
        %v1831 = vld [vmem:[#allocation2 + $0x8] sm:$0xff]
        %v1832 = vld [vmem:[#allocation2 + $0x10] sm:$0xff]
        %v1833 = vld [vmem:[#allocation2 + $0x18] sm:$0xff]
        %v1834 = vld [vmem:[#allocation2 + $0x28] sm:$0xff]
        %v1835 = vld [vmem:[#allocation2 + $0x30] sm:$0xff]
        %v1836 = vld [vmem:[#allocation2 + $0x38] sm:$0xff]
        %v1837 = vld [vmem:[%s650] sm:$0x3]
        %v1839 = vlaneseq
        %v1840 = vshrl.u32 %v1839, 7
        %v1841 = vsub.s32 0, %v1840
        %v1842 = vrot.slane %v1837, %v1841
        %v1843 = vlaneseq
        %v1844 = vshrl.u32 %v1843, 7
        %v1845 = vsub.s32 1, %v1844
        %v1846 = vrot.slane %v1837, %v1845
        %1847 = vrot.lane.b32.xlu0 %v1842, 1
        %v1848 = vpop.permute.xlu0 %1847
        %1849 = vrot.lane.b32.xlu0 %v1846, 1
        %v1850 = vpop.permute.xlu0 %1849
        %v1851 = vsel %vm665, %v1848, %v1850
        %v1855 = vmul.f32 %v1831, %v1848
        %v1856 = vmul.f32 %v1832, %v1851
        %v1857 = vmul.f32 %v1833, %v1850
        %v1858 = vmul.f32 %v1834, %v1848
        %v1859 = vmul.f32 %v1835, %v1851
        %v1860 = vmul.f32 %v1836, %v1850
        %v1861 = vpack.c.bf16 %v1858, %v1855
        %v1862 = vpack.c.bf16 %v1859, %v1856
        %v1863 = vpack.c.bf16 %v1860, %v1857
        %1867 = vrot.lane.b32.xlu0 %v1861, 127
        %v1868 = vpop.permute.xlu0 %1867
        %1869 = vrot.lane.b32.xlu0 %v1862, 127
        %v1870 = vpop.permute.xlu0 %1869
        %1871 = vrot.lane.b32.xlu0 %v1863, 127
        %v1872 = vpop.permute.xlu0 %1871
        %v1873 = vsel %vm688, %v1868, %v1870
        %v1874 = vsel %vm688, %v1870, %v1872
        %1877 = vst [vmem:[#allocation3 + $0x50] sm:$0xff] %v1873
        %1878 = vst [vmem:[#allocation3 + $0x58] sm:$0xff] %v1874
        %v1879 = vld [vmem:[#allocation2 + $0x8] sm:$0xff]
        %v1880 = vld [vmem:[#allocation2 + $0x10] sm:$0xff]
        %v1881 = vld [vmem:[#allocation2 + $0x18] sm:$0xff]
        %v1882 = vld [vmem:[#allocation2 + $0x28] sm:$0xff]
        %v1883 = vld [vmem:[#allocation2 + $0x30] sm:$0xff]
        %v1884 = vld [vmem:[#allocation2 + $0x38] sm:$0xff]
        %v1885 = vld [vmem:[%s701] sm:$0x3]
        %v1887 = vlaneseq
        %v1888 = vshrl.u32 %v1887, 7
        %v1889 = vsub.s32 0, %v1888
        %v1890 = vrot.slane %v1885, %v1889
        %v1891 = vlaneseq
        %v1892 = vshrl.u32 %v1891, 7
        %v1893 = vsub.s32 1, %v1892
        %v1894 = vrot.slane %v1885, %v1893
        %1895 = vrot.lane.b32.xlu0 %v1890, 15
        %v1896 = vpop.permute.xlu0 %1895
        %1897 = vrot.lane.b32.xlu0 %v1894, 15
        %v1898 = vpop.permute.xlu0 %1897
        %v1899 = vsel %vm716, %v1896, %v1898
        %v1903 = vmul.f32 %v1879, %v1896
        %v1904 = vmul.f32 %v1880, %v1899
        %v1905 = vmul.f32 %v1881, %v1898
        %v1906 = vmul.f32 %v1882, %v1896
        %v1907 = vmul.f32 %v1883, %v1899
        %v1908 = vmul.f32 %v1884, %v1898
        %v1909 = vpack.c.bf16 %v1906, %v1903
        %v1910 = vpack.c.bf16 %v1907, %v1904
        %v1911 = vpack.c.bf16 %v1908, %v1905
        %1915 = vrot.lane.b32.xlu0 %v1909, 113
        %v1916 = vpop.permute.xlu0 %1915
        %1917 = vrot.lane.b32.xlu0 %v1910, 113
        %v1918 = vpop.permute.xlu0 %1917
        %1919 = vrot.lane.b32.xlu0 %v1911, 113
        %v1920 = vpop.permute.xlu0 %1919
        %v1921 = vsel %vm739, %v1916, %v1918
        %v1922 = vsel %vm739, %v1918, %v1920
        %1925 = vst [vmem:[#allocation3 + $0x60] sm:$0xff] %v1921
        %1926 = vst [vmem:[#allocation3 + $0x68] sm:$0xff] %v1922
        %v1927 = vld [vmem:[#allocation2 + $0x8] sm:$0xff]
        %v1928 = vld [vmem:[#allocation2 + $0x10] sm:$0xff]
        %v1929 = vld [vmem:[#allocation2 + $0x18] sm:$0xff]
        %v1930 = vld [vmem:[#allocation2 + $0x28] sm:$0xff]
        %v1931 = vld [vmem:[#allocation2 + $0x30] sm:$0xff]
        %v1932 = vld [vmem:[#allocation2 + $0x38] sm:$0xff]
        %v1933 = vld [vmem:[%s752] sm:$0x3]
        %v1935 = vlaneseq
        %v1936 = vshrl.u32 %v1935, 7
        %v1937 = vsub.s32 0, %v1936
        %v1938 = vrot.slane %v1933, %v1937
        %v1939 = vlaneseq
        %v1940 = vshrl.u32 %v1939, 7
        %v1941 = vsub.s32 1, %v1940
        %v1942 = vrot.slane %v1933, %v1941
        %1943 = vrot.lane.b32.xlu0 %v1938, 16
        %v1944 = vpop.permute.xlu0 %1943
        %1945 = vrot.lane.b32.xlu0 %v1942, 16
        %v1946 = vpop.permute.xlu0 %1945
        %v1947 = vsel %vm767, %v1944, %v1946
        %v1951 = vmul.f32 %v1927, %v1944
        %v1952 = vmul.f32 %v1928, %v1947
        %v1953 = vmul.f32 %v1929, %v1946
        %v1954 = vmul.f32 %v1930, %v1944
        %v1955 = vmul.f32 %v1931, %v1947
        %v1956 = vmul.f32 %v1932, %v1946
        %v1957 = vpack.c.bf16 %v1954, %v1951
        %v1958 = vpack.c.bf16 %v1955, %v1952
        %v1959 = vpack.c.bf16 %v1956, %v1953
        %1963 = vrot.lane.b32.xlu0 %v1957, 112
        %v1964 = vpop.permute.xlu0 %1963
        %1965 = vrot.lane.b32.xlu0 %v1958, 112
        %v1966 = vpop.permute.xlu0 %1965
        %1967 = vrot.lane.b32.xlu0 %v1959, 112
        %v1968 = vpop.permute.xlu0 %1967
        %v1969 = vsel %vm790, %v1964, %v1966
        %v1970 = vsel %vm790, %v1966, %v1968
        %1973 = vst [vmem:[#allocation3 + $0x70] sm:$0xff] %v1969
        %1974 = vst [vmem:[#allocation3 + $0x78] sm:$0xff] %v1970
        %v1975 = vld [vmem:[#allocation2 + $0x8] sm:$0xff]
        %v1976 = vld [vmem:[#allocation2 + $0x10] sm:$0xff]
        %v1977 = vld [vmem:[#allocation2 + $0x18] sm:$0xff]
        %v1978 = vld [vmem:[#allocation2 + $0x28] sm:$0xff]
        %v1979 = vld [vmem:[#allocation2 + $0x30] sm:$0xff]
        %v1980 = vld [vmem:[#allocation2 + $0x38] sm:$0xff]
        %v1981 = vld [vmem:[%s803] sm:$0x3]
        %v1983 = vlaneseq
        %v1984 = vshrl.u32 %v1983, 7
        %v1985 = vsub.s32 0, %v1984
        %v1986 = vrot.slane %v1981, %v1985
        %v1987 = vlaneseq
        %v1988 = vshrl.u32 %v1987, 7
        %v1989 = vsub.s32 1, %v1988
        %v1990 = vrot.slane %v1981, %v1989
        %1991 = vrot.lane.b32.xlu0 %v1986, 17
        %v1992 = vpop.permute.xlu0 %1991
        %1993 = vrot.lane.b32.xlu0 %v1990, 17
        %v1994 = vpop.permute.xlu0 %1993
        %v1995 = vsel %vm818, %v1992, %v1994
        %v1999 = vmul.f32 %v1975, %v1992
        %v2000 = vmul.f32 %v1976, %v1995
        %v2001 = vmul.f32 %v1977, %v1994
        %v2002 = vmul.f32 %v1978, %v1992
        %v2003 = vmul.f32 %v1979, %v1995
        %v2004 = vmul.f32 %v1980, %v1994
        %v2005 = vpack.c.bf16 %v2002, %v1999
        %v2006 = vpack.c.bf16 %v2003, %v2000
        %v2007 = vpack.c.bf16 %v2004, %v2001
        %2011 = vrot.lane.b32.xlu0 %v2005, 111
        %v2012 = vpop.permute.xlu0 %2011
        %2013 = vrot.lane.b32.xlu0 %v2006, 111
        %v2014 = vpop.permute.xlu0 %2013
        %2015 = vrot.lane.b32.xlu0 %v2007, 111
        %v2016 = vpop.permute.xlu0 %2015
        %v2017 = vsel %vm841, %v2012, %v2014
        %v2018 = vsel %vm841, %v2014, %v2016
        %2021 = vst [vmem:[#allocation3 + $0x80] sm:$0xff] %v2017
        %2022 = vst [vmem:[#allocation3 + $0x88] sm:$0xff] %v2018
        %v2023 = vld [vmem:[#allocation3] sm:$0xff]
        %v2024 = vld [vmem:[#allocation3 + $0x8] sm:$0xff]
        %v2025 = vld [vmem:[#allocation3 + $0x10] sm:$0xff]
        %v2026 = vld [vmem:[#allocation3 + $0x18] sm:$0xff]
        %v2027 = vld [vmem:[#allocation3 + $0x20] sm:$0xff]
        %v2028 = vld [vmem:[#allocation3 + $0x28] sm:$0xff]
        %v2029 = vld [vmem:[#allocation3 + $0x30] sm:$0xff]
        %v2030 = vld [vmem:[#allocation3 + $0x38] sm:$0xff]
        %v2031 = vld [vmem:[#allocation3 + $0x40] sm:$0xff]
        %v2032 = vld [vmem:[#allocation3 + $0x48] sm:$0xff]
        %v2033 = vld [vmem:[#allocation3 + $0x50] sm:$0xff]
        %v2034 = vld [vmem:[#allocation3 + $0x58] sm:$0xff]
        %v2035 = vld [vmem:[#allocation3 + $0x60] sm:$0xff]
        %v2036 = vld [vmem:[#allocation3 + $0x68] sm:$0xff]
        %v2037 = vld [vmem:[#allocation3 + $0x70] sm:$0xff]
        %v2038 = vld [vmem:[#allocation3 + $0x78] sm:$0xff]
        %v2039 = vld [vmem:[#allocation3 + $0x80] sm:$0xff]
        %v2040 = vld [vmem:[#allocation3 + $0x88] sm:$0xff]
        %2042 = vset.pattern.permute.xlu0 0
        %2043 = vperm.xlu0 %2042, %v1625
        %v2044 = vpop.permute.xlu0 %2043
        %2047 = vset.pattern.permute.xlu0 0
        %2048 = vperm.xlu0 %2047, %v1626
        %v2049 = vpop.permute.xlu0 %2048
        %v2053 = vunpack.c.l.b16 %v1622
        %v2054 = vunpack.c.h.b16 %v1622
        %v2055 = vunpack.c.l.b16 %v1623
        %v2056 = vunpack.c.h.b16 %v1623
        %v2057 = vpack.c.b16 %v2055, %v2053
        %v2058 = vpack.c.b16 %v2056, %v2054
        %v2061 = vsel %vm767, %v2058, 0
        %2063 = vmatprep.subr.bf16.mxu0 %v2024
        %2064 = vmatpush1.bf16.msra.mxu0 %v2023
        %2065 = vmatprep.subr.bf16.mxu0 %v2026
        %2066 = vmatpush1.bf16.msra.mxu0 %v2025
        %2067 = vmatprep.subr.bf16.mxu0 %v2028
        %2068 = vmatpush1.bf16.msra.mxu0 %v2027
        %2069 = vmatprep.subr.bf16.mxu0 %v2030
        %2070 = vmatpush1.bf16.msra.mxu0 %v2029
        %2071 = vmatprep.subr.bf16.mxu0 %v2032
        %2072 = vmatpush1.bf16.msra.mxu0 %v2031
        %2073 = vmatprep.subr.bf16.mxu0 %v2034
        %2074 = vmatpush1.bf16.msra.mxu0 %v2033
        %2075 = vmatprep.subr.bf16.mxu0 %v2036
        %2076 = vmatpush1.bf16.msra.mxu0 %v2035
        %2077 = vmatprep.subr.bf16.mxu0 %v2038
        %2078 = vmatpush1.bf16.msra.mxu0 %v2037
        %2079 = vmatprep.subr.bf16.mxu0 %v2040
        %2080 = vmatpush1.bf16.msra.mxu0 %v2039
        %2081 = vmatprep.subr.bf16.mxu0 0
        %2082 = vmatpush1.bf16.msra.mxu0 0
        %2083 = vmatprep.subr.bf16.mxu0 0
        %2084 = vmatpush1.bf16.msra.mxu0 0
        %2085 = vmatprep.subr.bf16.mxu0 0
        %2086 = vmatpush1.bf16.msra.mxu0 0
        %2087 = vmatprep.subr.bf16.mxu0 0
        %2088 = vmatpush1.bf16.msra.mxu0 0
        %2089 = vmatprep.subr.bf16.mxu0 0
        %2090 = vmatpush1.bf16.msra.mxu0 0
        %2091 = vmatprep.subr.bf16.mxu0 0
        %2092 = vmatpush1.bf16.msra.mxu0 0
        %2093 = vmatprep.subr.bf16.mxu0 0
        %2094 = vmatpush1.bf16.msra.mxu0 0
        %2095 = vmatprep.mubr.bf16.mxu0 %v2061
        %2096 = vmatmul.mubr.bf16.gmra.mrb[0].mxu0 %v2057
        %v2097 = vpop.f32.mrb[0].mxu0
        %v2098 = vadd.f32 %v2044, %v2097
        %v2099 = vpop.f32.mrb[0].mxu0
        %v2100 = vadd.f32 %v2044, %v2099
        %v2101 = vpop.f32.mrb[0].mxu0
        %v2102 = vadd.f32 %v2049, %v2101
        %v2103 = vpop.f32.mrb[0].mxu0
        %v2104 = vadd.f32 %v2049, %v2103
        %2105 = vdwg.mxu0
        %v2106 = vmax.f32 %v2098, 0.0
        %v2107 = vmax.f32 %v2100, 0.0
        %v2108 = vmax.f32 %v2102, 0.0
        %v2109 = vmax.f32 %v2104, 0.0
        %s2110 = scalar_lea.vmem %s4, 16
        %v2111 = vld [vmem:[%s2110] sm:$0xff]
        %v2112 = vld [vmem:[%s2110 + $0x8] sm:$0xff]
        %s2113 = scalar_lea.vmem %s5, 16
        %v2114 = vld [vmem:[%s2113] sm:$0xff]
        %v2115 = vld [vmem:[%s2113 + $0x8] sm:$0xff]
        %2116 = vst [vmem:[#allocation2 + $0x8] sm:$0xff] %v2106
        %2117 = vst [vmem:[#allocation2 + $0x10] sm:$0xff] %v2107
        %2118 = vst [vmem:[#allocation2 + $0x28] sm:$0xff] %v2108
        %2119 = vst [vmem:[#allocation2 + $0x30] sm:$0xff] %v2109
        %v2120 = vld [vmem:[#allocation2] sm:$0xff]
        %v2121 = vld [vmem:[#allocation2 + $0x8] sm:$0xff]
        %v2122 = vld [vmem:[#allocation2 + $0x10] sm:$0xff]
        %v2123 = vld [vmem:[#allocation2 + $0x20] sm:$0xff]
        %v2124 = vld [vmem:[#allocation2 + $0x28] sm:$0xff]
        %v2125 = vld [vmem:[#allocation2 + $0x30] sm:$0xff]
        %v2126 = vld [vmem:[%s1] sm:$0x3]
        %v2128 = vlaneseq
        %v2129 = vshrl.u32 %v2128, 7
        %v2130 = vsub.s32 0, %v2129
        %v2131 = vrot.slane %v2126, %v2130
        %v2132 = vlaneseq
        %v2133 = vshrl.u32 %v2132, 7
        %v2134 = vsub.s32 1, %v2133
        %v2135 = vrot.slane %v2126, %v2134
        %2136 = vrot.lane.b32.xlu0 %v2131, 111
        %v2137 = vpop.permute.xlu0 %2136
        %2138 = vrot.lane.b32.xlu0 %v2135, 111
        %v2139 = vpop.permute.xlu0 %2138
        %v2140 = vsel %vm453, %v2137, %v2139
        %v2144 = vmul.f32 %v2120, %v2137
        %v2145 = vmul.f32 %v2121, %v2140
        %v2146 = vmul.f32 %v2122, %v2139
        %v2147 = vmul.f32 %v2123, %v2137
        %v2148 = vmul.f32 %v2124, %v2140
        %v2149 = vmul.f32 %v2125, %v2139
        %v2150 = vpack.c.bf16 %v2147, %v2144
        %v2151 = vpack.c.bf16 %v2148, %v2145
        %v2152 = vpack.c.bf16 %v2149, %v2146
        %2156 = vrot.lane.b32.xlu0 %v2150, 17
        %v2157 = vpop.permute.xlu0 %2156
        %2158 = vrot.lane.b32.xlu0 %v2151, 17
        %v2159 = vpop.permute.xlu0 %2158
        %2160 = vrot.lane.b32.xlu0 %v2152, 17
        %v2161 = vpop.permute.xlu0 %2160
        %v2162 = vsel %vm476, %v2157, %v2159
        %v2163 = vsel %vm476, %v2159, %v2161
        %2166 = vst [vmem:[#allocation3] sm:$0xff] %v2162
        %2167 = vst [vmem:[#allocation3 + $0x8] sm:$0xff] %v2163
        %v2168 = vld [vmem:[#allocation2] sm:$0xff]
        %v2169 = vld [vmem:[#allocation2 + $0x8] sm:$0xff]
        %v2170 = vld [vmem:[#allocation2 + $0x10] sm:$0xff]
        %v2171 = vld [vmem:[#allocation2 + $0x20] sm:$0xff]
        %v2172 = vld [vmem:[#allocation2 + $0x28] sm:$0xff]
        %v2173 = vld [vmem:[#allocation2 + $0x30] sm:$0xff]
        %v2174 = vld [vmem:[%s489] sm:$0x3]
        %v2176 = vlaneseq
        %v2177 = vshrl.u32 %v2176, 7
        %v2178 = vsub.s32 0, %v2177
        %v2179 = vrot.slane %v2174, %v2178
        %v2180 = vlaneseq
        %v2181 = vshrl.u32 %v2180, 7
        %v2182 = vsub.s32 1, %v2181
        %v2183 = vrot.slane %v2174, %v2182
        %2184 = vrot.lane.b32.xlu0 %v2179, 112
        %v2185 = vpop.permute.xlu0 %2184
        %2186 = vrot.lane.b32.xlu0 %v2183, 112
        %v2187 = vpop.permute.xlu0 %2186
        %v2188 = vsel %vm504, %v2185, %v2187
        %v2192 = vmul.f32 %v2168, %v2185
        %v2193 = vmul.f32 %v2169, %v2188
        %v2194 = vmul.f32 %v2170, %v2187
        %v2195 = vmul.f32 %v2171, %v2185
        %v2196 = vmul.f32 %v2172, %v2188
        %v2197 = vmul.f32 %v2173, %v2187
        %v2198 = vpack.c.bf16 %v2195, %v2192
        %v2199 = vpack.c.bf16 %v2196, %v2193
        %v2200 = vpack.c.bf16 %v2197, %v2194
        %2204 = vrot.lane.b32.xlu0 %v2198, 16
        %v2205 = vpop.permute.xlu0 %2204
        %2206 = vrot.lane.b32.xlu0 %v2199, 16
        %v2207 = vpop.permute.xlu0 %2206
        %2208 = vrot.lane.b32.xlu0 %v2200, 16
        %v2209 = vpop.permute.xlu0 %2208
        %v2210 = vsel %vm527, %v2205, %v2207
        %v2211 = vsel %vm527, %v2207, %v2209
        %2214 = vst [vmem:[#allocation3 + $0x10] sm:$0xff] %v2210
        %2215 = vst [vmem:[#allocation3 + $0x18] sm:$0xff] %v2211
        %v2216 = vld [vmem:[#allocation2] sm:$0xff]
        %v2217 = vld [vmem:[#allocation2 + $0x8] sm:$0xff]
        %v2218 = vld [vmem:[#allocation2 + $0x10] sm:$0xff]
        %v2219 = vld [vmem:[#allocation2 + $0x20] sm:$0xff]
        %v2220 = vld [vmem:[#allocation2 + $0x28] sm:$0xff]
        %v2221 = vld [vmem:[#allocation2 + $0x30] sm:$0xff]
        %v2222 = vld [vmem:[%s540] sm:$0x3]
        %v2224 = vlaneseq
        %v2225 = vshrl.u32 %v2224, 7
        %v2226 = vsub.s32 0, %v2225
        %v2227 = vrot.slane %v2222, %v2226
        %v2228 = vlaneseq
        %v2229 = vshrl.u32 %v2228, 7
        %v2230 = vsub.s32 1, %v2229
        %v2231 = vrot.slane %v2222, %v2230
        %2232 = vrot.lane.b32.xlu0 %v2227, 113
        %v2233 = vpop.permute.xlu0 %2232
        %2234 = vrot.lane.b32.xlu0 %v2231, 113
        %v2235 = vpop.permute.xlu0 %2234
        %v2236 = vsel %vm555, %v2233, %v2235
        %v2240 = vmul.f32 %v2216, %v2233
        %v2241 = vmul.f32 %v2217, %v2236
        %v2242 = vmul.f32 %v2218, %v2235
        %v2243 = vmul.f32 %v2219, %v2233
        %v2244 = vmul.f32 %v2220, %v2236
        %v2245 = vmul.f32 %v2221, %v2235
        %v2246 = vpack.c.bf16 %v2243, %v2240
        %v2247 = vpack.c.bf16 %v2244, %v2241
        %v2248 = vpack.c.bf16 %v2245, %v2242
        %2252 = vrot.lane.b32.xlu0 %v2246, 15
        %v2253 = vpop.permute.xlu0 %2252
        %2254 = vrot.lane.b32.xlu0 %v2247, 15
        %v2255 = vpop.permute.xlu0 %2254
        %2256 = vrot.lane.b32.xlu0 %v2248, 15
        %v2257 = vpop.permute.xlu0 %2256
        %v2258 = vsel %vm578, %v2253, %v2255
        %v2259 = vsel %vm578, %v2255, %v2257
        %2262 = vst [vmem:[#allocation3 + $0x20] sm:$0xff] %v2258
        %2263 = vst [vmem:[#allocation3 + $0x28] sm:$0xff] %v2259
        %v2264 = vld [vmem:[#allocation2] sm:$0xff]
        %v2265 = vld [vmem:[#allocation2 + $0x8] sm:$0xff]
        %v2266 = vld [vmem:[#allocation2 + $0x10] sm:$0xff]
        %v2267 = vld [vmem:[#allocation2 + $0x20] sm:$0xff]
        %v2268 = vld [vmem:[#allocation2 + $0x28] sm:$0xff]
        %v2269 = vld [vmem:[#allocation2 + $0x30] sm:$0xff]
        %v2270 = vld [vmem:[%s591] sm:$0x3]
        %v2272 = vlaneseq
        %v2273 = vshrl.u32 %v2272, 7
        %v2274 = vsub.s32 0, %v2273
        %v2275 = vrot.slane %v2270, %v2274
        %v2276 = vlaneseq
        %v2277 = vshrl.u32 %v2276, 7
        %v2278 = vsub.s32 1, %v2277
        %v2279 = vrot.slane %v2270, %v2278
        %2280 = vrot.lane.b32.xlu0 %v2275, 127
        %v2281 = vpop.permute.xlu0 %2280
        %2282 = vrot.lane.b32.xlu0 %v2279, 127
        %v2283 = vpop.permute.xlu0 %2282
        %v2284 = vsel %vm606, %v2281, %v2283
        %v2288 = vmul.f32 %v2264, %v2281
        %v2289 = vmul.f32 %v2265, %v2284
        %v2290 = vmul.f32 %v2266, %v2283
        %v2291 = vmul.f32 %v2267, %v2281
        %v2292 = vmul.f32 %v2268, %v2284
        %v2293 = vmul.f32 %v2269, %v2283
        %v2294 = vpack.c.bf16 %v2291, %v2288
        %v2295 = vpack.c.bf16 %v2292, %v2289
        %v2296 = vpack.c.bf16 %v2293, %v2290
        %2300 = vrot.lane.b32.xlu0 %v2294, 1
        %v2301 = vpop.permute.xlu0 %2300
        %2302 = vrot.lane.b32.xlu0 %v2295, 1
        %v2303 = vpop.permute.xlu0 %2302
        %2304 = vrot.lane.b32.xlu0 %v2296, 1
        %v2305 = vpop.permute.xlu0 %2304
        %v2306 = vsel %vm629, %v2301, %v2303
        %v2307 = vsel %vm629, %v2303, %v2305
        %2310 = vst [vmem:[#allocation3 + $0x30] sm:$0xff] %v2306
        %2311 = vst [vmem:[#allocation3 + $0x38] sm:$0xff] %v2307
        %v2312 = vld [vmem:[#allocation2 + $0x8] sm:$0xff]
        %v2313 = vld [vmem:[#allocation2 + $0x10] sm:$0xff]
        %v2314 = vld [vmem:[#allocation2 + $0x28] sm:$0xff]
        %v2315 = vld [vmem:[#allocation2 + $0x30] sm:$0xff]
        %v2316 = vpack.c.bf16 %v2314, %v2312
        %v2317 = vpack.c.bf16 %v2315, %v2313
        %2318 = vst [vmem:[#allocation3 + $0x40] sm:$0xff] %v2316
        %2319 = vst [vmem:[#allocation3 + $0x48] sm:$0xff] %v2317
        %v2320 = vld [vmem:[#allocation2 + $0x8] sm:$0xff]
        %v2321 = vld [vmem:[#allocation2 + $0x10] sm:$0xff]
        %v2322 = vld [vmem:[#allocation2 + $0x18] sm:$0xff]
        %v2323 = vld [vmem:[#allocation2 + $0x28] sm:$0xff]
        %v2324 = vld [vmem:[#allocation2 + $0x30] sm:$0xff]
        %v2325 = vld [vmem:[#allocation2 + $0x38] sm:$0xff]
        %v2326 = vld [vmem:[%s650] sm:$0x3]
        %v2328 = vlaneseq
        %v2329 = vshrl.u32 %v2328, 7
        %v2330 = vsub.s32 0, %v2329
        %v2331 = vrot.slane %v2326, %v2330
        %v2332 = vlaneseq
        %v2333 = vshrl.u32 %v2332, 7
        %v2334 = vsub.s32 1, %v2333
        %v2335 = vrot.slane %v2326, %v2334
        %2336 = vrot.lane.b32.xlu0 %v2331, 1
        %v2337 = vpop.permute.xlu0 %2336
        %2338 = vrot.lane.b32.xlu0 %v2335, 1
        %v2339 = vpop.permute.xlu0 %2338
        %v2340 = vsel %vm665, %v2337, %v2339
        %v2344 = vmul.f32 %v2320, %v2337
        %v2345 = vmul.f32 %v2321, %v2340
        %v2346 = vmul.f32 %v2322, %v2339
        %v2347 = vmul.f32 %v2323, %v2337
        %v2348 = vmul.f32 %v2324, %v2340
        %v2349 = vmul.f32 %v2325, %v2339
        %v2350 = vpack.c.bf16 %v2347, %v2344
        %v2351 = vpack.c.bf16 %v2348, %v2345
        %v2352 = vpack.c.bf16 %v2349, %v2346
        %2356 = vrot.lane.b32.xlu0 %v2350, 127
        %v2357 = vpop.permute.xlu0 %2356
        %2358 = vrot.lane.b32.xlu0 %v2351, 127
        %v2359 = vpop.permute.xlu0 %2358
        %2360 = vrot.lane.b32.xlu0 %v2352, 127
        %v2361 = vpop.permute.xlu0 %2360
        %v2362 = vsel %vm688, %v2357, %v2359
        %v2363 = vsel %vm688, %v2359, %v2361
        %2366 = vst [vmem:[#allocation3 + $0x50] sm:$0xff] %v2362
        %2367 = vst [vmem:[#allocation3 + $0x58] sm:$0xff] %v2363
        %v2368 = vld [vmem:[#allocation2 + $0x8] sm:$0xff]
        %v2369 = vld [vmem:[#allocation2 + $0x10] sm:$0xff]
        %v2370 = vld [vmem:[#allocation2 + $0x18] sm:$0xff]
        %v2371 = vld [vmem:[#allocation2 + $0x28] sm:$0xff]
        %v2372 = vld [vmem:[#allocation2 + $0x30] sm:$0xff]
        %v2373 = vld [vmem:[#allocation2 + $0x38] sm:$0xff]
        %v2374 = vld [vmem:[%s701] sm:$0x3]
        %v2376 = vlaneseq
        %v2377 = vshrl.u32 %v2376, 7
        %v2378 = vsub.s32 0, %v2377
        %v2379 = vrot.slane %v2374, %v2378
        %v2380 = vlaneseq
        %v2381 = vshrl.u32 %v2380, 7
        %v2382 = vsub.s32 1, %v2381
        %v2383 = vrot.slane %v2374, %v2382
        %2384 = vrot.lane.b32.xlu0 %v2379, 15
        %v2385 = vpop.permute.xlu0 %2384
        %2386 = vrot.lane.b32.xlu0 %v2383, 15
        %v2387 = vpop.permute.xlu0 %2386
        %v2388 = vsel %vm716, %v2385, %v2387
        %v2392 = vmul.f32 %v2368, %v2385
        %v2393 = vmul.f32 %v2369, %v2388
        %v2394 = vmul.f32 %v2370, %v2387
        %v2395 = vmul.f32 %v2371, %v2385
        %v2396 = vmul.f32 %v2372, %v2388
        %v2397 = vmul.f32 %v2373, %v2387
        %v2398 = vpack.c.bf16 %v2395, %v2392
        %v2399 = vpack.c.bf16 %v2396, %v2393
        %v2400 = vpack.c.bf16 %v2397, %v2394
        %2404 = vrot.lane.b32.xlu0 %v2398, 113
        %v2405 = vpop.permute.xlu0 %2404
        %2406 = vrot.lane.b32.xlu0 %v2399, 113
        %v2407 = vpop.permute.xlu0 %2406
        %2408 = vrot.lane.b32.xlu0 %v2400, 113
        %v2409 = vpop.permute.xlu0 %2408
        %v2410 = vsel %vm739, %v2405, %v2407
        %v2411 = vsel %vm739, %v2407, %v2409
        %2414 = vst [vmem:[#allocation3 + $0x60] sm:$0xff] %v2410
        %2415 = vst [vmem:[#allocation3 + $0x68] sm:$0xff] %v2411
        %v2416 = vld [vmem:[#allocation2 + $0x8] sm:$0xff]
        %v2417 = vld [vmem:[#allocation2 + $0x10] sm:$0xff]
        %v2418 = vld [vmem:[#allocation2 + $0x18] sm:$0xff]
        %v2419 = vld [vmem:[#allocation2 + $0x28] sm:$0xff]
        %v2420 = vld [vmem:[#allocation2 + $0x30] sm:$0xff]
        %v2421 = vld [vmem:[#allocation2 + $0x38] sm:$0xff]
        %v2422 = vld [vmem:[%s752] sm:$0x3]
        %v2424 = vlaneseq
        %v2425 = vshrl.u32 %v2424, 7
        %v2426 = vsub.s32 0, %v2425
        %v2427 = vrot.slane %v2422, %v2426
        %v2428 = vlaneseq
        %v2429 = vshrl.u32 %v2428, 7
        %v2430 = vsub.s32 1, %v2429
        %v2431 = vrot.slane %v2422, %v2430
        %2432 = vrot.lane.b32.xlu0 %v2427, 16
        %v2433 = vpop.permute.xlu0 %2432
        %2434 = vrot.lane.b32.xlu0 %v2431, 16
        %v2435 = vpop.permute.xlu0 %2434
        %v2436 = vsel %vm767, %v2433, %v2435
        %v2440 = vmul.f32 %v2416, %v2433
        %v2441 = vmul.f32 %v2417, %v2436
        %v2442 = vmul.f32 %v2418, %v2435
        %v2443 = vmul.f32 %v2419, %v2433
        %v2444 = vmul.f32 %v2420, %v2436
        %v2445 = vmul.f32 %v2421, %v2435
        %v2446 = vpack.c.bf16 %v2443, %v2440
        %v2447 = vpack.c.bf16 %v2444, %v2441
        %v2448 = vpack.c.bf16 %v2445, %v2442
        %2452 = vrot.lane.b32.xlu0 %v2446, 112
        %v2453 = vpop.permute.xlu0 %2452
        %2454 = vrot.lane.b32.xlu0 %v2447, 112
        %v2455 = vpop.permute.xlu0 %2454
        %2456 = vrot.lane.b32.xlu0 %v2448, 112
        %v2457 = vpop.permute.xlu0 %2456
        %v2458 = vsel %vm790, %v2453, %v2455
        %v2459 = vsel %vm790, %v2455, %v2457
        %2462 = vst [vmem:[#allocation3 + $0x70] sm:$0xff] %v2458
        %2463 = vst [vmem:[#allocation3 + $0x78] sm:$0xff] %v2459
        %v2464 = vld [vmem:[#allocation2 + $0x8] sm:$0xff]
        %v2465 = vld [vmem:[#allocation2 + $0x10] sm:$0xff]
        %v2466 = vld [vmem:[#allocation2 + $0x18] sm:$0xff]
        %v2467 = vld [vmem:[#allocation2 + $0x28] sm:$0xff]
        %v2468 = vld [vmem:[#allocation2 + $0x30] sm:$0xff]
        %v2469 = vld [vmem:[#allocation2 + $0x38] sm:$0xff]
        %v2470 = vld [vmem:[%s803] sm:$0x3]
        %v2472 = vlaneseq
        %v2473 = vshrl.u32 %v2472, 7
        %v2474 = vsub.s32 0, %v2473
        %v2475 = vrot.slane %v2470, %v2474
        %v2476 = vlaneseq
        %v2477 = vshrl.u32 %v2476, 7
        %v2478 = vsub.s32 1, %v2477
        %v2479 = vrot.slane %v2470, %v2478
        %2480 = vrot.lane.b32.xlu0 %v2475, 17
        %v2481 = vpop.permute.xlu0 %2480
        %2482 = vrot.lane.b32.xlu0 %v2479, 17
        %v2483 = vpop.permute.xlu0 %2482
        %v2484 = vsel %vm818, %v2481, %v2483
        %v2488 = vmul.f32 %v2464, %v2481
        %v2489 = vmul.f32 %v2465, %v2484
        %v2490 = vmul.f32 %v2466, %v2483
        %v2491 = vmul.f32 %v2467, %v2481
        %v2492 = vmul.f32 %v2468, %v2484
        %v2493 = vmul.f32 %v2469, %v2483
        %v2494 = vpack.c.bf16 %v2491, %v2488
        %v2495 = vpack.c.bf16 %v2492, %v2489
        %v2496 = vpack.c.bf16 %v2493, %v2490
        %2500 = vrot.lane.b32.xlu0 %v2494, 111
        %v2501 = vpop.permute.xlu0 %2500
        %2502 = vrot.lane.b32.xlu0 %v2495, 111
        %v2503 = vpop.permute.xlu0 %2502
        %2504 = vrot.lane.b32.xlu0 %v2496, 111
        %v2505 = vpop.permute.xlu0 %2504
        %v2506 = vsel %vm841, %v2501, %v2503
        %v2507 = vsel %vm841, %v2503, %v2505
        %2510 = vst [vmem:[#allocation3 + $0x80] sm:$0xff] %v2506
        %2511 = vst [vmem:[#allocation3 + $0x88] sm:$0xff] %v2507
        %v2512 = vld [vmem:[#allocation3] sm:$0xff]
        %v2513 = vld [vmem:[#allocation3 + $0x8] sm:$0xff]
        %v2514 = vld [vmem:[#allocation3 + $0x10] sm:$0xff]
        %v2515 = vld [vmem:[#allocation3 + $0x18] sm:$0xff]
        %v2516 = vld [vmem:[#allocation3 + $0x20] sm:$0xff]
        %v2517 = vld [vmem:[#allocation3 + $0x28] sm:$0xff]
        %v2518 = vld [vmem:[#allocation3 + $0x30] sm:$0xff]
        %v2519 = vld [vmem:[#allocation3 + $0x38] sm:$0xff]
        %v2520 = vld [vmem:[#allocation3 + $0x40] sm:$0xff]
        %v2521 = vld [vmem:[#allocation3 + $0x48] sm:$0xff]
        %v2522 = vld [vmem:[#allocation3 + $0x50] sm:$0xff]
        %v2523 = vld [vmem:[#allocation3 + $0x58] sm:$0xff]
        %v2524 = vld [vmem:[#allocation3 + $0x60] sm:$0xff]
        %v2525 = vld [vmem:[#allocation3 + $0x68] sm:$0xff]
        %v2526 = vld [vmem:[#allocation3 + $0x70] sm:$0xff]
        %v2527 = vld [vmem:[#allocation3 + $0x78] sm:$0xff]
        %v2528 = vld [vmem:[#allocation3 + $0x80] sm:$0xff]
        %v2529 = vld [vmem:[#allocation3 + $0x88] sm:$0xff]
        %2531 = vset.pattern.permute.xlu0 0
        %2532 = vperm.xlu0 %2531, %v2114
        %v2533 = vpop.permute.xlu0 %2532
        %2536 = vset.pattern.permute.xlu0 0
        %2537 = vperm.xlu0 %2536, %v2115
        %v2538 = vpop.permute.xlu0 %2537
        %v2542 = vunpack.c.l.b16 %v2111
        %v2543 = vunpack.c.h.b16 %v2111
        %v2544 = vunpack.c.l.b16 %v2112
        %v2545 = vunpack.c.h.b16 %v2112
        %v2546 = vpack.c.b16 %v2544, %v2542
        %v2547 = vpack.c.b16 %v2545, %v2543
        %v2550 = vsel %vm767, %v2547, 0
        %2552 = vmatprep.subr.bf16.mxu0 %v2513
        %2553 = vmatpush1.bf16.msra.mxu0 %v2512
        %2554 = vmatprep.subr.bf16.mxu0 %v2515
        %2555 = vmatpush1.bf16.msra.mxu0 %v2514
        %2556 = vmatprep.subr.bf16.mxu0 %v2517
        %2557 = vmatpush1.bf16.msra.mxu0 %v2516
        %2558 = vmatprep.subr.bf16.mxu0 %v2519
        %2559 = vmatpush1.bf16.msra.mxu0 %v2518
        %2560 = vmatprep.subr.bf16.mxu0 %v2521
        %2561 = vmatpush1.bf16.msra.mxu0 %v2520
        %2562 = vmatprep.subr.bf16.mxu0 %v2523
        %2563 = vmatpush1.bf16.msra.mxu0 %v2522
        %2564 = vmatprep.subr.bf16.mxu0 %v2525
        %2565 = vmatpush1.bf16.msra.mxu0 %v2524
        %2566 = vmatprep.subr.bf16.mxu0 %v2527
        %2567 = vmatpush1.bf16.msra.mxu0 %v2526
        %2568 = vmatprep.subr.bf16.mxu0 %v2529
        %2569 = vmatpush1.bf16.msra.mxu0 %v2528
        %2570 = vmatprep.subr.bf16.mxu0 0
        %2571 = vmatpush1.bf16.msra.mxu0 0
        %2572 = vmatprep.subr.bf16.mxu0 0
        %2573 = vmatpush1.bf16.msra.mxu0 0
        %2574 = vmatprep.subr.bf16.mxu0 0
        %2575 = vmatpush1.bf16.msra.mxu0 0
        %2576 = vmatprep.subr.bf16.mxu0 0
        %2577 = vmatpush1.bf16.msra.mxu0 0
        %2578 = vmatprep.subr.bf16.mxu0 0
        %2579 = vmatpush1.bf16.msra.mxu0 0
        %2580 = vmatprep.subr.bf16.mxu0 0
        %2581 = vmatpush1.bf16.msra.mxu0 0
        %2582 = vmatprep.subr.bf16.mxu0 0
        %2583 = vmatpush1.bf16.msra.mxu0 0
        %2584 = vmatprep.mubr.bf16.mxu0 %v2550
        %2585 = vmatmul.mubr.bf16.gmra.mrb[0].mxu0 %v2546
        %v2586 = vpop.f32.mrb[0].mxu0
        %v2587 = vadd.f32 %v2533, %v2586
        %v2588 = vpop.f32.mrb[0].mxu0
        %v2589 = vadd.f32 %v2533, %v2588
        %v2590 = vpop.f32.mrb[0].mxu0
        %v2591 = vadd.f32 %v2538, %v2590
        %v2592 = vpop.f32.mrb[0].mxu0
        %v2593 = vadd.f32 %v2538, %v2592
        %2594 = vdwg.mxu0
        %v2595 = vadd.f32 %v2587, %v2589
        %2596 = vadd.xlane.f32.xlu0 %v2595
        %v2597 = vpop.xlane.xlu0 %2596
        %v2598 = vadd.f32 %v2591, %v2593
        %2599 = vadd.xlane.f32.xlu0 %v2598
        %v2600 = vpop.xlane.xlu0 %2599
        %v2601 = vmul.f32 %v2597, %v1424
        %v2602 = vmul.f32 %v2600, %v1424
        %s2603 = scalar_lea.vmem %s6, 4
        %v2604 = vld [vmem:[%s2603] sm:$0xf]
        %s2605 = scalar_lea.vmem %s7, 4
        %v2606 = vld [vmem:[%s2605] sm:$0xf]
        %v2608 = vsel %vm767, %v2604, 0
        %2610 = vmatprep.subr.mxu0 0.0
        %2611 = vmatpush1.msra.mxu0 %v2601
        %2612 = vmatprep.subr.mxu0 0.0
        %2613 = vmatpush1.msra.mxu0 %v2602
        %2614 = vmatprep.subr.mxu0 0.0
        %2615 = vmatpush1.msra.mxu0 0.0
        %2616 = vmatprep.subr.mxu0 0.0
        %2617 = vmatpush1.msra.mxu0 0.0
        %2618 = vmatprep.subr.mxu0 0.0
        %2619 = vmatpush1.msra.mxu0 0.0
        %2620 = vmatprep.subr.mxu0 0.0
        %2621 = vmatpush1.msra.mxu0 0.0
        %2622 = vmatprep.subr.mxu0 0.0
        %2623 = vmatpush1.msra.mxu0 0.0
        %2624 = vmatprep.subr.mxu0 0.0
        %2625 = vmatpush1.msra.mxu0 0.0
        %2626 = vmatprep.subr.mxu0 0.0
        %2627 = vmatpush1.msra.mxu0 0.0
        %2628 = vmatprep.subr.mxu0 0.0
        %2629 = vmatpush1.msra.mxu0 0.0
        %2630 = vmatprep.subr.mxu0 0.0
        %2631 = vmatpush1.msra.mxu0 0.0
        %2632 = vmatprep.subr.mxu0 0.0
        %2633 = vmatpush1.msra.mxu0 0.0
        %2634 = vmatprep.subr.mxu0 0.0
        %2635 = vmatpush1.msra.mxu0 0.0
        %2636 = vmatprep.subr.mxu0 0.0
        %2637 = vmatpush1.msra.mxu0 0.0
        %2638 = vmatprep.subr.mxu0 0.0
        %2639 = vmatpush1.msra.mxu0 0.0
        %2640 = vmatprep.subr.mxu0 0.0
        %2641 = vmatpush1.msra.mxu0 0.0
        %2642 = vmatprep.subr.mxu0 0.0
        %2643 = vmatpush1.msra.mxu0 0.0
        %2644 = vmatprep.subr.mxu0 0.0
        %2645 = vmatpush1.msra.mxu0 0.0
        %2646 = vmatprep.subr.mxu0 0.0
        %2647 = vmatpush1.msra.mxu0 0.0
        %2648 = vmatprep.subr.mxu0 0.0
        %2649 = vmatpush1.msra.mxu0 0.0
        %2650 = vmatprep.subr.mxu0 0.0
        %2651 = vmatpush1.msra.mxu0 0.0
        %2652 = vmatprep.subr.mxu0 0.0
        %2653 = vmatpush1.msra.mxu0 0.0
        %2654 = vmatprep.subr.mxu0 0.0
        %2655 = vmatpush1.msra.mxu0 0.0
        %2656 = vmatprep.subr.mxu0 0.0
        %2657 = vmatpush1.msra.mxu0 0.0
        %2658 = vmatprep.subr.mxu0 0.0
        %2659 = vmatpush1.msra.mxu0 0.0
        %2660 = vmatprep.subr.mxu0 0.0
        %2661 = vmatpush1.msra.mxu0 0.0
        %2662 = vmatprep.subr.mxu0 0.0
        %2663 = vmatpush1.msra.mxu0 0.0
        %2664 = vmatprep.subr.mxu0 0.0
        %2665 = vmatpush1.msra.mxu0 0.0
        %2666 = vmatprep.subr.mxu0 0.0
        %2667 = vmatpush1.msra.mxu0 0.0
        %2668 = vmatprep.subr.mxu0 0.0
        %2669 = vmatpush1.msra.mxu0 0.0
        %2670 = vmatprep.subr.mxu0 0.0
        %2671 = vmatpush1.msra.mxu0 0.0
        %2672 = vmatprep.subr.mxu0 0.0
        %2673 = vmatpush1.msra.mxu0 0.0
        %2674 = vmatprep.mubr.f32.mxu0 0.0
        %2675 = vmatmul.mubr.f32.gmra.mrb[0].mxu0 %v2608
        %v2676 = vpop.f32.mrb[0].mxu0
        %v2677 = vadd.f32 %v2606, %v2676
        %v2678 = vpop.f32.mrb[0].mxu0
        %2679 = vdwg.mxu0
        %v2680 = vmax.f32 %v2677, 0.0
        %s2681 = scalar_lea.vmem %s8, 16
        %v2682 = vld [vmem:[%s2681] sm:$0xff]
        %v2683 = vld [vmem:[%s2681 + $0x8] sm:$0xff]
        %s2684 = scalar_lea.vmem %s9, 16
        %v2685 = vld [vmem:[%s2684] sm:$0xff]
        %v2686 = vld [vmem:[%s2684 + $0x8] sm:$0xff]
        %v2688 = vsel %vm1507, %v2682, 0
        %v2691 = vsel %vm1507, %v2683, 0
        %v2694 = vsel %vm1514, %v2680, 0
        %2696 = vmatprep.subr.mxu0 0.0
        %2697 = vmatpush1.msra.mxu0 %v2694
        %2698 = vmatprep.subr.mxu0 0.0
        %2699 = vmatpush1.msra.mxu0 0.0
        %2700 = vmatprep.subr.mxu0 0.0
        %2701 = vmatpush1.msra.mxu0 0.0
        %2702 = vmatprep.subr.mxu0 0.0
        %2703 = vmatpush1.msra.mxu0 0.0
        %2704 = vmatprep.subr.mxu0 0.0
        %2705 = vmatpush1.msra.mxu0 0.0
        %2706 = vmatprep.subr.mxu0 0.0
        %2707 = vmatpush1.msra.mxu0 0.0
        %2708 = vmatprep.subr.mxu0 0.0
        %2709 = vmatpush1.msra.mxu0 0.0
        %2710 = vmatprep.subr.mxu0 0.0
        %2711 = vmatpush1.msra.mxu0 0.0
        %2712 = vmatprep.subr.mxu0 0.0
        %2713 = vmatpush1.msra.mxu0 0.0
        %2714 = vmatprep.subr.mxu0 0.0
        %2715 = vmatpush1.msra.mxu0 0.0
        %2716 = vmatprep.subr.mxu0 0.0
        %2717 = vmatpush1.msra.mxu0 0.0
        %2718 = vmatprep.subr.mxu0 0.0
        %2719 = vmatpush1.msra.mxu0 0.0
        %2720 = vmatprep.subr.mxu0 0.0
        %2721 = vmatpush1.msra.mxu0 0.0
        %2722 = vmatprep.subr.mxu0 0.0
        %2723 = vmatpush1.msra.mxu0 0.0
        %2724 = vmatprep.subr.mxu0 0.0
        %2725 = vmatpush1.msra.mxu0 0.0
        %2726 = vmatprep.subr.mxu0 0.0
        %2727 = vmatpush1.msra.mxu0 0.0
        %2728 = vmatprep.subr.mxu0 0.0
        %2729 = vmatpush1.msra.mxu0 0.0
        %2730 = vmatprep.subr.mxu0 0.0
        %2731 = vmatpush1.msra.mxu0 0.0
        %2732 = vmatprep.subr.mxu0 0.0
        %2733 = vmatpush1.msra.mxu0 0.0
        %2734 = vmatprep.subr.mxu0 0.0
        %2735 = vmatpush1.msra.mxu0 0.0
        %2736 = vmatprep.subr.mxu0 0.0
        %2737 = vmatpush1.msra.mxu0 0.0
        %2738 = vmatprep.subr.mxu0 0.0
        %2739 = vmatpush1.msra.mxu0 0.0
        %2740 = vmatprep.subr.mxu0 0.0
        %2741 = vmatpush1.msra.mxu0 0.0
        %2742 = vmatprep.subr.mxu0 0.0
        %2743 = vmatpush1.msra.mxu0 0.0
        %2744 = vmatprep.subr.mxu0 0.0
        %2745 = vmatpush1.msra.mxu0 0.0
        %2746 = vmatprep.subr.mxu0 0.0
        %2747 = vmatpush1.msra.mxu0 0.0
        %2748 = vmatprep.subr.mxu0 0.0
        %2749 = vmatpush1.msra.mxu0 0.0
        %2750 = vmatprep.subr.mxu0 0.0
        %2751 = vmatpush1.msra.mxu0 0.0
        %2752 = vmatprep.subr.mxu0 0.0
        %2753 = vmatpush1.msra.mxu0 0.0
        %2754 = vmatprep.subr.mxu0 0.0
        %2755 = vmatpush1.msra.mxu0 0.0
        %2756 = vmatprep.subr.mxu0 0.0
        %2757 = vmatpush1.msra.mxu0 0.0
        %2758 = vmatprep.subr.mxu0 0.0
        %2759 = vmatpush1.msra.mxu0 0.0
        %2760 = vmatprep.mubr.f32.mxu0 0.0
        %2761 = vmatmul.mubr.f32.gmra.mrb[0].mxu0 %v2688
        %v2762 = vpop.f32.mrb[0].mxu0
        %v2763 = vadd.f32 %v2685, %v2762
        %v2764 = vpop.f32.mrb[0].mxu0
        %2765 = vmatprep.mubr.f32.mxu0 0.0
        %2766 = vmatmul.mubr.f32.gmra.mrb[0].mxu0 %v2691
        %v2767 = vpop.f32.mrb[0].mxu0
        %v2768 = vadd.f32 %v2686, %v2767
        %v2769 = vpop.f32.mrb[0].mxu0
        %2770 = vdwg.mxu0
        %v2771 = vsub.f32 0.0, %v2763
        %v2772 = vsub.f32 0.0, %v2768
        %v2773 = vmul.f32 %v2771, 1.442695
        %v2774 = vpow.pop %v2773
        %v2775 = vmul.f32 %v2772, 1.442695
        %v2776 = vpow.pop %v2775
        %v2777 = vadd.f32 %v2774, 1.0
        %v2778 = vadd.f32 %v2776, 1.0
        %v2779 = vrcp.pop %v2777
        %v2780 = vrcp.pop %v2778
        %2782 = vset.pattern.permute.xlu0 0
        %2783 = vperm.xlu0 %2782, %v2779
        %v2784 = vpop.permute.xlu0 %2783
        %2787 = vset.pattern.permute.xlu0 0
        %2788 = vperm.xlu0 %2787, %v2780
        %v2789 = vpop.permute.xlu0 %2788
        %v2791 = vmul.f32 %v2587, %v2784
        %v2792 = vmul.f32 %v2589, %v2784
        %v2793 = vmul.f32 %v2591, %v2789
        %v2794 = vmul.f32 %v2593, %v2789
        %v2795 = vadd.f32 %v2791, %v1617
        %v2796 = vadd.f32 %v2792, %v1618
        %v2797 = vadd.f32 %v2793, %v1619
        %v2798 = vadd.f32 %v2794, %v1620
        %v2799 = vld [vmem:[%s10] sm:$0xff]
        %v2800 = vld [vmem:[%s10 + $0x8] sm:$0xff]
        %v2801 = vld [vmem:[%s11] sm:$0xff]
        %v2802 = vld [vmem:[%s11 + $0x8] sm:$0xff]
        %2803 = vst [vmem:[#allocation2 + $0x8] sm:$0xff] %v2795
        %2804 = vst [vmem:[#allocation2 + $0x10] sm:$0xff] %v2796
        %2805 = vst [vmem:[#allocation2 + $0x28] sm:$0xff] %v2797
        %2806 = vst [vmem:[#allocation2 + $0x30] sm:$0xff] %v2798
        %v2807 = vld [vmem:[#allocation2] sm:$0xff]
        %v2808 = vld [vmem:[#allocation2 + $0x8] sm:$0xff]
        %v2809 = vld [vmem:[#allocation2 + $0x10] sm:$0xff]
        %v2810 = vld [vmem:[#allocation2 + $0x20] sm:$0xff]
        %v2811 = vld [vmem:[#allocation2 + $0x28] sm:$0xff]
        %v2812 = vld [vmem:[#allocation2 + $0x30] sm:$0xff]
        %v2813 = vld [vmem:[%s1] sm:$0x3]
        %v2815 = vlaneseq
        %v2816 = vshrl.u32 %v2815, 7
        %v2817 = vsub.s32 0, %v2816
        %v2818 = vrot.slane %v2813, %v2817
        %v2819 = vlaneseq
        %v2820 = vshrl.u32 %v2819, 7
        %v2821 = vsub.s32 1, %v2820
        %v2822 = vrot.slane %v2813, %v2821
        %2823 = vrot.lane.b32.xlu0 %v2818, 111
        %v2824 = vpop.permute.xlu0 %2823
        %2825 = vrot.lane.b32.xlu0 %v2822, 111
        %v2826 = vpop.permute.xlu0 %2825
        %v2827 = vsel %vm453, %v2824, %v2826
        %v2831 = vmul.f32 %v2807, %v2824
        %v2832 = vmul.f32 %v2808, %v2827
        %v2833 = vmul.f32 %v2809, %v2826
        %v2834 = vmul.f32 %v2810, %v2824
        %v2835 = vmul.f32 %v2811, %v2827
        %v2836 = vmul.f32 %v2812, %v2826
        %v2837 = vpack.c.bf16 %v2834, %v2831
        %v2838 = vpack.c.bf16 %v2835, %v2832
        %v2839 = vpack.c.bf16 %v2836, %v2833
        %2843 = vrot.lane.b32.xlu0 %v2837, 17
        %v2844 = vpop.permute.xlu0 %2843
        %2845 = vrot.lane.b32.xlu0 %v2838, 17
        %v2846 = vpop.permute.xlu0 %2845
        %2847 = vrot.lane.b32.xlu0 %v2839, 17
        %v2848 = vpop.permute.xlu0 %2847
        %v2849 = vsel %vm476, %v2844, %v2846
        %v2850 = vsel %vm476, %v2846, %v2848
        %2853 = vst [vmem:[#allocation3] sm:$0xff] %v2849
        %2854 = vst [vmem:[#allocation3 + $0x8] sm:$0xff] %v2850
        %v2855 = vld [vmem:[#allocation2] sm:$0xff]
        %v2856 = vld [vmem:[#allocation2 + $0x8] sm:$0xff]
        %v2857 = vld [vmem:[#allocation2 + $0x10] sm:$0xff]
        %v2858 = vld [vmem:[#allocation2 + $0x20] sm:$0xff]
        %v2859 = vld [vmem:[#allocation2 + $0x28] sm:$0xff]
        %v2860 = vld [vmem:[#allocation2 + $0x30] sm:$0xff]
        %v2861 = vld [vmem:[%s489] sm:$0x3]
        %v2863 = vlaneseq
        %v2864 = vshrl.u32 %v2863, 7
        %v2865 = vsub.s32 0, %v2864
        %v2866 = vrot.slane %v2861, %v2865
        %v2867 = vlaneseq
        %v2868 = vshrl.u32 %v2867, 7
        %v2869 = vsub.s32 1, %v2868
        %v2870 = vrot.slane %v2861, %v2869
        %2871 = vrot.lane.b32.xlu0 %v2866, 112
        %v2872 = vpop.permute.xlu0 %2871
        %2873 = vrot.lane.b32.xlu0 %v2870, 112
        %v2874 = vpop.permute.xlu0 %2873
        %v2875 = vsel %vm504, %v2872, %v2874
        %v2879 = vmul.f32 %v2855, %v2872
        %v2880 = vmul.f32 %v2856, %v2875
        %v2881 = vmul.f32 %v2857, %v2874
        %v2882 = vmul.f32 %v2858, %v2872
        %v2883 = vmul.f32 %v2859, %v2875
        %v2884 = vmul.f32 %v2860, %v2874
        %v2885 = vpack.c.bf16 %v2882, %v2879
        %v2886 = vpack.c.bf16 %v2883, %v2880
        %v2887 = vpack.c.bf16 %v2884, %v2881
        %2891 = vrot.lane.b32.xlu0 %v2885, 16
        %v2892 = vpop.permute.xlu0 %2891
        %2893 = vrot.lane.b32.xlu0 %v2886, 16
        %v2894 = vpop.permute.xlu0 %2893
        %2895 = vrot.lane.b32.xlu0 %v2887, 16
        %v2896 = vpop.permute.xlu0 %2895
        %v2897 = vsel %vm527, %v2892, %v2894
        %v2898 = vsel %vm527, %v2894, %v2896
        %2901 = vst [vmem:[#allocation3 + $0x10] sm:$0xff] %v2897
        %2902 = vst [vmem:[#allocation3 + $0x18] sm:$0xff] %v2898
        %v2903 = vld [vmem:[#allocation2] sm:$0xff]
        %v2904 = vld [vmem:[#allocation2 + $0x8] sm:$0xff]
        %v2905 = vld [vmem:[#allocation2 + $0x10] sm:$0xff]
        %v2906 = vld [vmem:[#allocation2 + $0x20] sm:$0xff]
        %v2907 = vld [vmem:[#allocation2 + $0x28] sm:$0xff]
        %v2908 = vld [vmem:[#allocation2 + $0x30] sm:$0xff]
        %v2909 = vld [vmem:[%s540] sm:$0x3]
        %v2911 = vlaneseq
        %v2912 = vshrl.u32 %v2911, 7
        %v2913 = vsub.s32 0, %v2912
        %v2914 = vrot.slane %v2909, %v2913
        %v2915 = vlaneseq
        %v2916 = vshrl.u32 %v2915, 7
        %v2917 = vsub.s32 1, %v2916
        %v2918 = vrot.slane %v2909, %v2917
        %2919 = vrot.lane.b32.xlu0 %v2914, 113
        %v2920 = vpop.permute.xlu0 %2919
        %2921 = vrot.lane.b32.xlu0 %v2918, 113
        %v2922 = vpop.permute.xlu0 %2921
        %v2923 = vsel %vm555, %v2920, %v2922
        %v2927 = vmul.f32 %v2903, %v2920
        %v2928 = vmul.f32 %v2904, %v2923
        %v2929 = vmul.f32 %v2905, %v2922
        %v2930 = vmul.f32 %v2906, %v2920
        %v2931 = vmul.f32 %v2907, %v2923
        %v2932 = vmul.f32 %v2908, %v2922
        %v2933 = vpack.c.bf16 %v2930, %v2927
        %v2934 = vpack.c.bf16 %v2931, %v2928
        %v2935 = vpack.c.bf16 %v2932, %v2929
        %2939 = vrot.lane.b32.xlu0 %v2933, 15
        %v2940 = vpop.permute.xlu0 %2939
        %2941 = vrot.lane.b32.xlu0 %v2934, 15
        %v2942 = vpop.permute.xlu0 %2941
        %2943 = vrot.lane.b32.xlu0 %v2935, 15
        %v2944 = vpop.permute.xlu0 %2943
        %v2945 = vsel %vm578, %v2940, %v2942
        %v2946 = vsel %vm578, %v2942, %v2944
        %2949 = vst [vmem:[#allocation3 + $0x20] sm:$0xff] %v2945
        %2950 = vst [vmem:[#allocation3 + $0x28] sm:$0xff] %v2946
        %v2951 = vld [vmem:[#allocation2] sm:$0xff]
        %v2952 = vld [vmem:[#allocation2 + $0x8] sm:$0xff]
        %v2953 = vld [vmem:[#allocation2 + $0x10] sm:$0xff]
        %v2954 = vld [vmem:[#allocation2 + $0x20] sm:$0xff]
        %v2955 = vld [vmem:[#allocation2 + $0x28] sm:$0xff]
        %v2956 = vld [vmem:[#allocation2 + $0x30] sm:$0xff]
        %v2957 = vld [vmem:[%s591] sm:$0x3]
        %v2959 = vlaneseq
        %v2960 = vshrl.u32 %v2959, 7
        %v2961 = vsub.s32 0, %v2960
        %v2962 = vrot.slane %v2957, %v2961
        %v2963 = vlaneseq
        %v2964 = vshrl.u32 %v2963, 7
        %v2965 = vsub.s32 1, %v2964
        %v2966 = vrot.slane %v2957, %v2965
        %2967 = vrot.lane.b32.xlu0 %v2962, 127
        %v2968 = vpop.permute.xlu0 %2967
        %2969 = vrot.lane.b32.xlu0 %v2966, 127
        %v2970 = vpop.permute.xlu0 %2969
        %v2971 = vsel %vm606, %v2968, %v2970
        %v2975 = vmul.f32 %v2951, %v2968
        %v2976 = vmul.f32 %v2952, %v2971
        %v2977 = vmul.f32 %v2953, %v2970
        %v2978 = vmul.f32 %v2954, %v2968
        %v2979 = vmul.f32 %v2955, %v2971
        %v2980 = vmul.f32 %v2956, %v2970
        %v2981 = vpack.c.bf16 %v2978, %v2975
        %v2982 = vpack.c.bf16 %v2979, %v2976
        %v2983 = vpack.c.bf16 %v2980, %v2977
        %2987 = vrot.lane.b32.xlu0 %v2981, 1
        %v2988 = vpop.permute.xlu0 %2987
        %2989 = vrot.lane.b32.xlu0 %v2982, 1
        %v2990 = vpop.permute.xlu0 %2989
        %2991 = vrot.lane.b32.xlu0 %v2983, 1
        %v2992 = vpop.permute.xlu0 %2991
        %v2993 = vsel %vm629, %v2988, %v2990
        %v2994 = vsel %vm629, %v2990, %v2992
        %2997 = vst [vmem:[#allocation3 + $0x30] sm:$0xff] %v2993
        %2998 = vst [vmem:[#allocation3 + $0x38] sm:$0xff] %v2994
        %v2999 = vld [vmem:[#allocation2 + $0x8] sm:$0xff]
        %v3000 = vld [vmem:[#allocation2 + $0x10] sm:$0xff]
        %v3001 = vld [vmem:[#allocation2 + $0x28] sm:$0xff]
        %v3002 = vld [vmem:[#allocation2 + $0x30] sm:$0xff]
        %v3003 = vpack.c.bf16 %v3001, %v2999
        %v3004 = vpack.c.bf16 %v3002, %v3000
        %3005 = vst [vmem:[#allocation3 + $0x40] sm:$0xff] %v3003
        %3006 = vst [vmem:[#allocation3 + $0x48] sm:$0xff] %v3004
        %v3007 = vld [vmem:[#allocation2 + $0x8] sm:$0xff]
        %v3008 = vld [vmem:[#allocation2 + $0x10] sm:$0xff]
        %v3009 = vld [vmem:[#allocation2 + $0x18] sm:$0xff]
        %v3010 = vld [vmem:[#allocation2 + $0x28] sm:$0xff]
        %v3011 = vld [vmem:[#allocation2 + $0x30] sm:$0xff]
        %v3012 = vld [vmem:[#allocation2 + $0x38] sm:$0xff]
        %v3013 = vld [vmem:[%s650] sm:$0x3]
        %v3015 = vlaneseq
        %v3016 = vshrl.u32 %v3015, 7
        %v3017 = vsub.s32 0, %v3016
        %v3018 = vrot.slane %v3013, %v3017
        %v3019 = vlaneseq
        %v3020 = vshrl.u32 %v3019, 7
        %v3021 = vsub.s32 1, %v3020
        %v3022 = vrot.slane %v3013, %v3021
        %3023 = vrot.lane.b32.xlu0 %v3018, 1
        %v3024 = vpop.permute.xlu0 %3023
        %3025 = vrot.lane.b32.xlu0 %v3022, 1
        %v3026 = vpop.permute.xlu0 %3025
        %v3027 = vsel %vm665, %v3024, %v3026
        %v3031 = vmul.f32 %v3007, %v3024
        %v3032 = vmul.f32 %v3008, %v3027
        %v3033 = vmul.f32 %v3009, %v3026
        %v3034 = vmul.f32 %v3010, %v3024
        %v3035 = vmul.f32 %v3011, %v3027
        %v3036 = vmul.f32 %v3012, %v3026
        %v3037 = vpack.c.bf16 %v3034, %v3031
        %v3038 = vpack.c.bf16 %v3035, %v3032
        %v3039 = vpack.c.bf16 %v3036, %v3033
        %3043 = vrot.lane.b32.xlu0 %v3037, 127
        %v3044 = vpop.permute.xlu0 %3043
        %3045 = vrot.lane.b32.xlu0 %v3038, 127
        %v3046 = vpop.permute.xlu0 %3045
        %3047 = vrot.lane.b32.xlu0 %v3039, 127
        %v3048 = vpop.permute.xlu0 %3047
        %v3049 = vsel %vm688, %v3044, %v3046
        %v3050 = vsel %vm688, %v3046, %v3048
        %3053 = vst [vmem:[#allocation3 + $0x50] sm:$0xff] %v3049
        %3054 = vst [vmem:[#allocation3 + $0x58] sm:$0xff] %v3050
        %v3055 = vld [vmem:[#allocation2 + $0x8] sm:$0xff]
        %v3056 = vld [vmem:[#allocation2 + $0x10] sm:$0xff]
        %v3057 = vld [vmem:[#allocation2 + $0x18] sm:$0xff]
        %v3058 = vld [vmem:[#allocation2 + $0x28] sm:$0xff]
        %v3059 = vld [vmem:[#allocation2 + $0x30] sm:$0xff]
        %v3060 = vld [vmem:[#allocation2 + $0x38] sm:$0xff]
        %v3061 = vld [vmem:[%s701] sm:$0x3]
        %v3063 = vlaneseq
        %v3064 = vshrl.u32 %v3063, 7
        %v3065 = vsub.s32 0, %v3064
        %v3066 = vrot.slane %v3061, %v3065
        %v3067 = vlaneseq
        %v3068 = vshrl.u32 %v3067, 7
        %v3069 = vsub.s32 1, %v3068
        %v3070 = vrot.slane %v3061, %v3069
        %3071 = vrot.lane.b32.xlu0 %v3066, 15
        %v3072 = vpop.permute.xlu0 %3071
        %3073 = vrot.lane.b32.xlu0 %v3070, 15
        %v3074 = vpop.permute.xlu0 %3073
        %v3075 = vsel %vm716, %v3072, %v3074
        %v3079 = vmul.f32 %v3055, %v3072
        %v3080 = vmul.f32 %v3056, %v3075
        %v3081 = vmul.f32 %v3057, %v3074
        %v3082 = vmul.f32 %v3058, %v3072
        %v3083 = vmul.f32 %v3059, %v3075
        %v3084 = vmul.f32 %v3060, %v3074
        %v3085 = vpack.c.bf16 %v3082, %v3079
        %v3086 = vpack.c.bf16 %v3083, %v3080
        %v3087 = vpack.c.bf16 %v3084, %v3081
        %3091 = vrot.lane.b32.xlu0 %v3085, 113
        %v3092 = vpop.permute.xlu0 %3091
        %3093 = vrot.lane.b32.xlu0 %v3086, 113
        %v3094 = vpop.permute.xlu0 %3093
        %3095 = vrot.lane.b32.xlu0 %v3087, 113
        %v3096 = vpop.permute.xlu0 %3095
        %v3097 = vsel %vm739, %v3092, %v3094
        %v3098 = vsel %vm739, %v3094, %v3096
        %3101 = vst [vmem:[#allocation3 + $0x60] sm:$0xff] %v3097
        %3102 = vst [vmem:[#allocation3 + $0x68] sm:$0xff] %v3098
        %v3103 = vld [vmem:[#allocation2 + $0x8] sm:$0xff]
        %v3104 = vld [vmem:[#allocation2 + $0x10] sm:$0xff]
        %v3105 = vld [vmem:[#allocation2 + $0x18] sm:$0xff]
        %v3106 = vld [vmem:[#allocation2 + $0x28] sm:$0xff]
        %v3107 = vld [vmem:[#allocation2 + $0x30] sm:$0xff]
        %v3108 = vld [vmem:[#allocation2 + $0x38] sm:$0xff]
        %v3109 = vld [vmem:[%s752] sm:$0x3]
        %v3111 = vlaneseq
        %v3112 = vshrl.u32 %v3111, 7
        %v3113 = vsub.s32 0, %v3112
        %v3114 = vrot.slane %v3109, %v3113
        %v3115 = vlaneseq
        %v3116 = vshrl.u32 %v3115, 7
        %v3117 = vsub.s32 1, %v3116
        %v3118 = vrot.slane %v3109, %v3117
        %3119 = vrot.lane.b32.xlu0 %v3114, 16
        %v3120 = vpop.permute.xlu0 %3119
        %3121 = vrot.lane.b32.xlu0 %v3118, 16
        %v3122 = vpop.permute.xlu0 %3121
        %v3123 = vsel %vm767, %v3120, %v3122
        %v3127 = vmul.f32 %v3103, %v3120
        %v3128 = vmul.f32 %v3104, %v3123
        %v3129 = vmul.f32 %v3105, %v3122
        %v3130 = vmul.f32 %v3106, %v3120
        %v3131 = vmul.f32 %v3107, %v3123
        %v3132 = vmul.f32 %v3108, %v3122
        %v3133 = vpack.c.bf16 %v3130, %v3127
        %v3134 = vpack.c.bf16 %v3131, %v3128
        %v3135 = vpack.c.bf16 %v3132, %v3129
        %3139 = vrot.lane.b32.xlu0 %v3133, 112
        %v3140 = vpop.permute.xlu0 %3139
        %3141 = vrot.lane.b32.xlu0 %v3134, 112
        %v3142 = vpop.permute.xlu0 %3141
        %3143 = vrot.lane.b32.xlu0 %v3135, 112
        %v3144 = vpop.permute.xlu0 %3143
        %v3145 = vsel %vm790, %v3140, %v3142
        %v3146 = vsel %vm790, %v3142, %v3144
        %3149 = vst [vmem:[#allocation3 + $0x70] sm:$0xff] %v3145
        %3150 = vst [vmem:[#allocation3 + $0x78] sm:$0xff] %v3146
        %v3151 = vld [vmem:[#allocation2 + $0x8] sm:$0xff]
        %v3152 = vld [vmem:[#allocation2 + $0x10] sm:$0xff]
        %v3153 = vld [vmem:[#allocation2 + $0x18] sm:$0xff]
        %v3154 = vld [vmem:[#allocation2 + $0x28] sm:$0xff]
        %v3155 = vld [vmem:[#allocation2 + $0x30] sm:$0xff]
        %v3156 = vld [vmem:[#allocation2 + $0x38] sm:$0xff]
        %v3157 = vld [vmem:[%s803] sm:$0x3]
        %v3159 = vlaneseq
        %v3160 = vshrl.u32 %v3159, 7
        %v3161 = vsub.s32 0, %v3160
        %v3162 = vrot.slane %v3157, %v3161
        %v3163 = vlaneseq
        %v3164 = vshrl.u32 %v3163, 7
        %v3165 = vsub.s32 1, %v3164
        %v3166 = vrot.slane %v3157, %v3165
        %3167 = vrot.lane.b32.xlu0 %v3162, 17
        %v3168 = vpop.permute.xlu0 %3167
        %3169 = vrot.lane.b32.xlu0 %v3166, 17
        %v3170 = vpop.permute.xlu0 %3169
        %v3171 = vsel %vm818, %v3168, %v3170
        %v3175 = vmul.f32 %v3151, %v3168
        %v3176 = vmul.f32 %v3152, %v3171
        %v3177 = vmul.f32 %v3153, %v3170
        %v3178 = vmul.f32 %v3154, %v3168
        %v3179 = vmul.f32 %v3155, %v3171
        %v3180 = vmul.f32 %v3156, %v3170
        %v3181 = vpack.c.bf16 %v3178, %v3175
        %v3182 = vpack.c.bf16 %v3179, %v3176
        %v3183 = vpack.c.bf16 %v3180, %v3177
        %3187 = vrot.lane.b32.xlu0 %v3181, 111
        %v3188 = vpop.permute.xlu0 %3187
        %3189 = vrot.lane.b32.xlu0 %v3182, 111
        %v3190 = vpop.permute.xlu0 %3189
        %3191 = vrot.lane.b32.xlu0 %v3183, 111
        %v3192 = vpop.permute.xlu0 %3191
        %v3193 = vsel %vm841, %v3188, %v3190
        %v3194 = vsel %vm841, %v3190, %v3192
        %3197 = vst [vmem:[#allocation3 + $0x80] sm:$0xff] %v3193
        %3198 = vst [vmem:[#allocation3 + $0x88] sm:$0xff] %v3194
        %v3199 = vld [vmem:[#allocation3] sm:$0xff]
        %v3200 = vld [vmem:[#allocation3 + $0x8] sm:$0xff]
        %v3201 = vld [vmem:[#allocation3 + $0x10] sm:$0xff]
        %v3202 = vld [vmem:[#allocation3 + $0x18] sm:$0xff]
        %v3203 = vld [vmem:[#allocation3 + $0x20] sm:$0xff]
        %v3204 = vld [vmem:[#allocation3 + $0x28] sm:$0xff]
        %v3205 = vld [vmem:[#allocation3 + $0x30] sm:$0xff]
        %v3206 = vld [vmem:[#allocation3 + $0x38] sm:$0xff]
        %v3207 = vld [vmem:[#allocation3 + $0x40] sm:$0xff]
        %v3208 = vld [vmem:[#allocation3 + $0x48] sm:$0xff]
        %v3209 = vld [vmem:[#allocation3 + $0x50] sm:$0xff]
        %v3210 = vld [vmem:[#allocation3 + $0x58] sm:$0xff]
        %v3211 = vld [vmem:[#allocation3 + $0x60] sm:$0xff]
        %v3212 = vld [vmem:[#allocation3 + $0x68] sm:$0xff]
        %v3213 = vld [vmem:[#allocation3 + $0x70] sm:$0xff]
        %v3214 = vld [vmem:[#allocation3 + $0x78] sm:$0xff]
        %v3215 = vld [vmem:[#allocation3 + $0x80] sm:$0xff]
        %v3216 = vld [vmem:[#allocation3 + $0x88] sm:$0xff]
        %3218 = vset.pattern.permute.xlu0 0
        %3219 = vperm.xlu0 %3218, %v2801
        %v3220 = vpop.permute.xlu0 %3219
        %3223 = vset.pattern.permute.xlu0 0
        %3224 = vperm.xlu0 %3223, %v2802
        %v3225 = vpop.permute.xlu0 %3224
        %v3229 = vunpack.c.l.b16 %v2799
        %v3230 = vunpack.c.h.b16 %v2799
        %v3231 = vunpack.c.l.b16 %v2800
        %v3232 = vunpack.c.h.b16 %v2800
        %v3233 = vpack.c.b16 %v3231, %v3229
        %v3234 = vpack.c.b16 %v3232, %v3230
        %v3237 = vsel %vm767, %v3234, 0
        %3239 = vmatprep.subr.bf16.mxu0 %v3200
        %3240 = vmatpush1.bf16.msra.mxu0 %v3199
        %3241 = vmatprep.subr.bf16.mxu0 %v3202
        %3242 = vmatpush1.bf16.msra.mxu0 %v3201
        %3243 = vmatprep.subr.bf16.mxu0 %v3204
        %3244 = vmatpush1.bf16.msra.mxu0 %v3203
        %3245 = vmatprep.subr.bf16.mxu0 %v3206
        %3246 = vmatpush1.bf16.msra.mxu0 %v3205
        %3247 = vmatprep.subr.bf16.mxu0 %v3208
        %3248 = vmatpush1.bf16.msra.mxu0 %v3207
        %3249 = vmatprep.subr.bf16.mxu0 %v3210
        %3250 = vmatpush1.bf16.msra.mxu0 %v3209
        %3251 = vmatprep.subr.bf16.mxu0 %v3212
        %3252 = vmatpush1.bf16.msra.mxu0 %v3211
        %3253 = vmatprep.subr.bf16.mxu0 %v3214
        %3254 = vmatpush1.bf16.msra.mxu0 %v3213
        %3255 = vmatprep.subr.bf16.mxu0 %v3216
        %3256 = vmatpush1.bf16.msra.mxu0 %v3215
        %3257 = vmatprep.subr.bf16.mxu0 0
        %3258 = vmatpush1.bf16.msra.mxu0 0
        %3259 = vmatprep.subr.bf16.mxu0 0
        %3260 = vmatpush1.bf16.msra.mxu0 0
        %3261 = vmatprep.subr.bf16.mxu0 0
        %3262 = vmatpush1.bf16.msra.mxu0 0
        %3263 = vmatprep.subr.bf16.mxu0 0
        %3264 = vmatpush1.bf16.msra.mxu0 0
        %3265 = vmatprep.subr.bf16.mxu0 0
        %3266 = vmatpush1.bf16.msra.mxu0 0
        %3267 = vmatprep.subr.bf16.mxu0 0
        %3268 = vmatpush1.bf16.msra.mxu0 0
        %3269 = vmatprep.subr.bf16.mxu0 0
        %3270 = vmatpush1.bf16.msra.mxu0 0
        %3271 = vmatprep.mubr.bf16.mxu0 %v3237
        %3272 = vmatmul.mubr.bf16.gmra.mrb[0].mxu0 %v3233
        %v3273 = vpop.f32.mrb[0].mxu0
        %v3274 = vadd.f32 %v3220, %v3273
        %v3275 = vpop.f32.mrb[0].mxu0
        %v3276 = vadd.f32 %v3220, %v3275
        %v3277 = vpop.f32.mrb[0].mxu0
        %v3278 = vadd.f32 %v3225, %v3277
        %v3279 = vpop.f32.mrb[0].mxu0
        %v3280 = vadd.f32 %v3225, %v3279
        %3281 = vdwg.mxu0
        %v3282 = vadd.f32 %v3274, %v413
        %v3283 = vadd.f32 %v3276, %v414
        %v3284 = vadd.f32 %v3278, %v415
        %v3285 = vadd.f32 %v3280, %v416
        %3286 = vst [vmem:[%s406] sm:$0xff] %v3282
        %3287 = vst [vmem:[%s406 + $0x8] sm:$0xff] %v3283
        %3288 = vst [vmem:[%s406 + $0x10] sm:$0xff] %v3284
        %3289 = vst [vmem:[%s406 + $0x18] sm:$0xff] %v3285
        %s3290 = sand.u32 %s291, 1
        %s3291 = scalar_lea.sflag [#allocation5], %s3290
        %s3292 = sand.u32 %s291, 1
        %s3293 = smul.addr %s3292, 32
        %s3294 = scalar_lea.vmem [#allocation4], %s3293
        // Predicated region
        $region69: #{tpu_custom_call.1} parent=67 // pred_check
          %p3295 = pneg %p301
        $region70: #{tpu_custom_call.1} parent=67 // pred_check_branch
          %3297 = sbr.rel (%p3295) target = $region72
        $region71: #{tpu_custom_call.1} parent=67 // pred_region
          %s3299 = ssub.s32 512, 512
          %3300 = vsyncadd %s3291, %s3299
          %s3301 = smul.addr %s26, 4
          %s3302 = smul.addr %s3301, 128
          %s3303 = scalar_lea.hbm %s12, %s3302
          %s3304 = sshll.u32 %s3294, 4
          %s3305 = int_to_ptr.vmem [resolvable:$true] %s3304
          %3310 = dma.vmem_to_hbm [thread:$0]  %s3305, 512, %s3303, %s3291, 256, 256, 16
        $region72: #{tpu_custom_call.1} parent=67 // pred_fallthru
          _
      $region68: #{tpu_custom_call.1} parent=5 // pred_fallthru
        _
      %p3311 = scmp.le.s32.totalorder 2, %s21
      // Predicated region
      $region73: #{tpu_custom_call.1} parent=5 // pred_check
        %p3312 = pneg %p3311
      $region74: #{tpu_custom_call.1} parent=5 // pred_check_branch
        %3314 = sbr.rel (%p3312) target = $region76
      $region75: #{tpu_custom_call.1} parent=5 // pred_region
        %s3315 = ssub.s32 %s21, 2
        // Predicated region
        $region77: #{tpu_custom_call.1} parent=75 // pred_check
          %p3316 = pneg %p307
        $region78: #{tpu_custom_call.1} parent=75 // pred_check_branch
          %3318 = sbr.rel (%p3316) target = $region80
        $region79: #{tpu_custom_call.1} parent=75 // pred_region
          %s3319 = sand.u32 %s292, 1
          %s3320 = scalar_lea.sflag [#allocation5], %s3319
          %s3321 = sand.u32 %s292, 1
          %s3322 = smul.addr %s3321, 32
          %s3323 = scalar_lea.vmem [#allocation4], %s3322
          %3324 = dma.done %s3320, 512
        $region80: #{tpu_custom_call.1} parent=75 // pred_fallthru
          _
      $region76: #{tpu_custom_call.1} parent=5 // pred_fallthru
        _
    $region6: #{tpu_custom_call.1} parent=1 // loop_footer
      %s25 = sadd.s32 1, %s21
    $region7: #{tpu_custom_call.1} parent=1 // loop_footer_branch
      %20 = sbr.rel target = $region3
    $region8: #{tpu_custom_call.1} parent=1 // loop_exit
      _
    %3325 = vsyncpa [#allocation5], 1
    %s3326 = scalar_lea.sflag [#allocation5], 1
    %3327 = vsyncpa %s3326, 1

</llo_original>
